<compile_context>
chip_gen: v5e
topology: v5e:2x2
jax: 0.10.0
libtpu: 0.0.40
codegen_flags: <defaults>
</compile_context>

<pallas_src>
import functools

import jax
import jax.numpy as jnp
from jax import lax
from jax.experimental import pallas as pl
from jax.experimental.pallas import tpu as pltpu


def _conv_block_kernel(x_ref, w1_ref, w2_ref, out_ref, xpad_ref, mpad_ref, *,
                       H, W, Cin, Cmid, Cout):
    """One batch element: conv3x3+IN+LeakyReLU -> conv3x3+IN+LeakyReLU, fused.

    x_ref:    (1, Cin, H, W)        input tile (NCHW), VMEM
    w1_ref:   (Cmid*Cin*9,)  f32    layer-1 weights, flattened OIHW, SMEM
    w2_ref:   (Cout*Cmid*9,) f32    layer-2 weights, flattened OIHW, SMEM
    out_ref:  (1, Cout, H, W)       output tile (NCHW), VMEM
    xpad_ref: (Cin,  H+2, W+2) f32  zero-padded input scratch (VMEM)
    mpad_ref: (Cmid, H+2, W+2) f32  zero-padded mid-activation scratch (VMEM)
    """
    f32 = jnp.float32
    inv_hw = 1.0 / float(H * W)

    # Zero the padded scratch planes so the 1-pixel halo reads as zero
    # ("same" padding).  Cheap memset, re-done every grid step so correctness
    # never depends on per-core scratch state under megacore sharding.
    xpad_ref[...] = jnp.zeros_like(xpad_ref)
    mpad_ref[...] = jnp.zeros_like(mpad_ref)

    # Stage this batch element's interior into the padded input scratch.
    for ci in range(Cin):
        xpad_ref[ci, pl.ds(1, H), pl.ds(1, W)] = x_ref[0, ci].astype(f32)

    def conv3x3_in_lrelu(src_ref, w_ref, cin, cout):
        """3x3 'same' conv (VPU slab FMAs) + InstanceNorm(eps=1e-5) + LeakyReLU(0.2)."""
        accs = [jnp.zeros((H, W), f32) for _ in range(cout)]
        # 9*cin shifted-window slabs; each slab is read once and reused for
        # every output channel.  Weights come from SMEM (scalar loads), so the
        # slab reads are the only vector loads in this loop nest.
        for ci in range(cin):
            for ky in range(3):
                for kx in range(3):
                    slab = src_ref[ci, pl.ds(ky, H), pl.ds(kx, W)]      # (H, W)
                    base = (ci * 3 + ky) * 3 + kx
                    for co in range(cout):
                        wv = w_ref[co * cin * 9 + base]                 # SMEM scalar
                        accs[co] = accs[co] + wv * slab
        outs = []
        for co in range(cout):
            acc = accs[co]
            # InstanceNorm2d: biased variance over H*W, eps=1e-5, no affine.
            s = jnp.sum(acc, axis=1, keepdims=True)                     # lane reduce  (H, 1)
            mean = jnp.sum(s, axis=0, keepdims=True) * inv_hw           # sublane reduce (1, 1)
            c = acc - mean
            s2 = jnp.sum(c * c, axis=1, keepdims=True)
            var = jnp.sum(s2, axis=0, keepdims=True) * inv_hw
            y = c * lax.rsqrt(var + 1e-5)                               # EUP rsqrt
            # LeakyReLU(0.2) == max(y, 0.2*y) for slopes in [0, 1].
            outs.append(jnp.maximum(y, 0.2 * y))
        return outs

    # ---- layer 1: Cin -> Cmid; result stays in VMEM (padded mid scratch) ----
    mid = conv3x3_in_lrelu(xpad_ref, w1_ref, Cin, Cmid)
    for cm in range(Cmid):
        mpad_ref[cm, pl.ds(1, H), pl.ds(1, W)] = mid[cm]
    # Dropout2d(drop_prob): identity at inference time.

    # ---- layer 2: Cmid -> Cout ----
    out = conv3x3_in_lrelu(mpad_ref, w2_ref, Cmid, Cout)
    for co in range(Cout):
        out_ref[0, co] = out[co].astype(out_ref.dtype)
    # Dropout2d(drop_prob): identity at inference time.


def conv_block_bbd(x_nchw: jax.Array, w1_oihw: jax.Array, w2_oihw: jax.Array) -> jax.Array:
    """ConvBlock_BBD forward.  Input/output follow the PyTorch NCHW convention."""
    N, Cin, H, W = x_nchw.shape
    Cmid = w1_oihw.shape[0]
    Cout = w2_oihw.shape[0]

    # Pre-flatten weights (row-major OIHW) so the kernel does trivial scalar
    # SMEM reads and no per-tap 4D slicing.
    w1_flat = w1_oihw.astype(jnp.float32).reshape(-1)   # (Cmid*Cin*9,)
    w2_flat = w2_oihw.astype(jnp.float32).reshape(-1)   # (Cout*Cmid*9,)

    kernel = functools.partial(
        _conv_block_kernel, H=H, W=W, Cin=Cin, Cmid=Cmid, Cout=Cout
    )
    return pl.pallas_call(
        kernel,
        out_shape=jax.ShapeDtypeStruct((N, Cout, H, W), x_nchw.dtype),
        grid_spec=pltpu.PrefetchScalarGridSpec(
            num_scalar_prefetch=0,
            grid=(N,),
            in_specs=[
                pl.BlockSpec((1, Cin, H, W), lambda n: (n, 0, 0, 0)),
                pl.BlockSpec(memory_space=pltpu.MemorySpace.SMEM),
                pl.BlockSpec(memory_space=pltpu.MemorySpace.SMEM),
            ],
            out_specs=pl.BlockSpec((1, Cout, H, W), lambda n: (n, 0, 0, 0)),
            scratch_shapes=[
                pltpu.VMEM((Cin, H + 2, W + 2), jnp.float32),
                pltpu.VMEM((Cmid, H + 2, W + 2), jnp.float32),
            ],
        ),
        compiler_params=pltpu.CompilerParams(
            dimension_semantics=("parallel",),
        ),
    )(x_nchw, w1_flat, w2_flat)


def _reference(x_nchw, w1_oihw, w2_oihw):
    """Pure-JAX reference (lax.conv) for a sanity check."""
    def layer(x, w):
        y = lax.conv_general_dilated(
            x, w, window_strides=(1, 1), padding="SAME",
            dimension_numbers=("NCHW", "OIHW", "NCHW"),
        )
        mean = jnp.mean(y, axis=(2, 3), keepdims=True)
        var = jnp.mean((y - mean) ** 2, axis=(2, 3), keepdims=True)
        y = (y - mean) * lax.rsqrt(var + 1e-5)
        return jnp.where(y >= 0, y, 0.2 * y)

    return layer(layer(x_nchw, w1_oihw), w2_oihw)


if __name__ == "__main__":
    # Module hyperparameters (small shapes consistent with the PyTorch module).
    N, in_chans, out_chans, H, W = 2, 4, 8, 16, 16
    mid_chans = in_chans // 2
    drop_prob = 0.0  # Dropout2d is identity in eval mode.

    key = jax.random.PRNGKey(0)
    kx_, kw1, kw2 = jax.random.split(key, 3)

    x = jax.random.normal(kx_, (N, in_chans, H, W), dtype=jnp.float32)
    # Deterministic synthetic conv weights (PyTorch OIHW layout), kaiming-ish scale.
    w1 = jax.random.normal(kw1, (mid_chans, in_chans, 3, 3), dtype=jnp.float32) * 0.2
    w2 = jax.random.normal(kw2, (out_chans, mid_chans, 3, 3), dtype=jnp.float32) * 0.2

    out = jax.jit(conv_block_bbd)(x, w1, w2)
    out = jax.block_until_ready(out)

    ref = _reference(x, w1, w2)
    assert out.shape == (N, out_chans, H, W), out.shape
    max_err = float(jnp.max(jnp.abs(out - ref)))
    assert jnp.allclose(out, ref, atol=1e-3, rtol=1e-3), max_err

    print("KERNEL_OK")
</pallas_src>

<mosaic_0001>
module attributes {stable_mosaic.version = 11 : i64} {
  func.func @_conv_block_kernel(%arg0: i32, %arg1: memref<1x4x16x16xf32, #tpu.memory_space<vmem>>, %arg2: memref<72xf32, #tpu.memory_space<smem>>, %arg3: memref<144xf32, #tpu.memory_space<smem>>, %arg4: memref<1x8x16x16xf32, #tpu.memory_space<vmem>>, %arg5: memref<4x18x18xf32, #tpu.memory_space<vmem>>, %arg6: memref<2x18x18xf32, #tpu.memory_space<vmem>>) attributes {dimension_semantics = [#tpu.dimension_semantics<parallel>], iteration_bounds = array<i64: 2>, scalar_prefetch = 0 : i64, scratch_operands = 2 : i64, tpu.core_type = #tpu.core_type<tc>, window_params = [{transform_indices = @transform_0, window_bounds = array<i64: 1, 4, 16, 16>}, {transform_indices = @transform_1, window_bounds = array<i64: 72>}, {transform_indices = @transform_2, window_bounds = array<i64: 144>}, {transform_indices = @transform_3, window_bounds = array<i64: 1, 8, 16, 16>}]} {
    %cst = arith.constant 0.000000e+00 : f32
    %0 = vector.broadcast %cst : f32 to vector<4x18x18xf32>
    %c0 = arith.constant 0 : index
    %c0_0 = arith.constant 0 : index
    %c0_1 = arith.constant 0 : index
    %1 = vector.load %arg5[%c0, %c0_0, %c0_1] : memref<4x18x18xf32, #tpu.memory_space<vmem>>, vector<4x18x18xf32>
    tpu.vector_store %arg5[%c0, %c0_0, %c0_1], %0 {strides = array<i32>} : memref<4x18x18xf32, #tpu.memory_space<vmem>>, vector<4x18x18xf32>,
    %cst_2 = arith.constant 0.000000e+00 : f32
    %2 = vector.broadcast %cst_2 : f32 to vector<2x18x18xf32>
    %c0_3 = arith.constant 0 : index
    %c0_4 = arith.constant 0 : index
    %c0_5 = arith.constant 0 : index
    %3 = vector.load %arg6[%c0_3, %c0_4, %c0_5] : memref<2x18x18xf32, #tpu.memory_space<vmem>>, vector<2x18x18xf32>
    tpu.vector_store %arg6[%c0_3, %c0_4, %c0_5], %2 {strides = array<i32>} : memref<2x18x18xf32, #tpu.memory_space<vmem>>, vector<2x18x18xf32>,
    %c0_6 = arith.constant 0 : index
    %c0_7 = arith.constant 0 : index
    %c0_8 = arith.constant 0 : index
    %c0_9 = arith.constant 0 : index
    %4 = vector.load %arg1[%c0_6, %c0_7, %c0_8, %c0_9] : memref<1x4x16x16xf32, #tpu.memory_space<vmem>>, vector<1x1x16x16xf32>
    %5 = vector.shape_cast %4 : vector<1x1x16x16xf32> to vector<16x16xf32>
    %c0_10 = arith.constant 0 : index
    %c1 = arith.constant 1 : index
    %c1_11 = arith.constant 1 : index
    %6 = vector.load %arg5[%c0_10, %c1, %c1_11] : memref<4x18x18xf32, #tpu.memory_space<vmem>>, vector<1x16x16xf32>
    %7 = vector.shape_cast %6 : vector<1x16x16xf32> to vector<16x16xf32>
    %8 = vector.shape_cast %5 : vector<16x16xf32> to vector<1x16x16xf32>
    tpu.vector_store %arg5[%c0_10, %c1, %c1_11], %8 {strides = array<i32>} : memref<4x18x18xf32, #tpu.memory_space<vmem>>, vector<1x16x16xf32>,
    %c0_12 = arith.constant 0 : index
    %c1_13 = arith.constant 1 : index
    %c0_14 = arith.constant 0 : index
    %c0_15 = arith.constant 0 : index
    %9 = vector.load %arg1[%c0_12, %c1_13, %c0_14, %c0_15] : memref<1x4x16x16xf32, #tpu.memory_space<vmem>>, vector<1x1x16x16xf32>
    %10 = vector.shape_cast %9 : vector<1x1x16x16xf32> to vector<16x16xf32>
    %c1_16 = arith.constant 1 : index
    %c1_17 = arith.constant 1 : index
    %c1_18 = arith.constant 1 : index
    %11 = vector.load %arg5[%c1_16, %c1_17, %c1_18] : memref<4x18x18xf32, #tpu.memory_space<vmem>>, vector<1x16x16xf32>
    %12 = vector.shape_cast %11 : vector<1x16x16xf32> to vector<16x16xf32>
    %13 = vector.shape_cast %10 : vector<16x16xf32> to vector<1x16x16xf32>
    tpu.vector_store %arg5[%c1_16, %c1_17, %c1_18], %13 {strides = array<i32>} : memref<4x18x18xf32, #tpu.memory_space<vmem>>, vector<1x16x16xf32>,
    %c0_19 = arith.constant 0 : index
    %c2 = arith.constant 2 : index
    %c0_20 = arith.constant 0 : index
    %c0_21 = arith.constant 0 : index
    %14 = vector.load %arg1[%c0_19, %c2, %c0_20, %c0_21] : memref<1x4x16x16xf32, #tpu.memory_space<vmem>>, vector<1x1x16x16xf32>
    %15 = vector.shape_cast %14 : vector<1x1x16x16xf32> to vector<16x16xf32>
    %c2_22 = arith.constant 2 : index
    %c1_23 = arith.constant 1 : index
    %c1_24 = arith.constant 1 : index
    %16 = vector.load %arg5[%c2_22, %c1_23, %c1_24] : memref<4x18x18xf32, #tpu.memory_space<vmem>>, vector<1x16x16xf32>
    %17 = vector.shape_cast %16 : vector<1x16x16xf32> to vector<16x16xf32>
    %18 = vector.shape_cast %15 : vector<16x16xf32> to vector<1x16x16xf32>
    tpu.vector_store %arg5[%c2_22, %c1_23, %c1_24], %18 {strides = array<i32>} : memref<4x18x18xf32, #tpu.memory_space<vmem>>, vector<1x16x16xf32>,
    %c0_25 = arith.constant 0 : index
    %c3 = arith.constant 3 : index
    %c0_26 = arith.constant 0 : index
    %c0_27 = arith.constant 0 : index
    %19 = vector.load %arg1[%c0_25, %c3, %c0_26, %c0_27] : memref<1x4x16x16xf32, #tpu.memory_space<vmem>>, vector<1x1x16x16xf32>
    %20 = vector.shape_cast %19 : vector<1x1x16x16xf32> to vector<16x16xf32>
    %c3_28 = arith.constant 3 : index
    %c1_29 = arith.constant 1 : index
    %c1_30 = arith.constant 1 : index
    %21 = vector.load %arg5[%c3_28, %c1_29, %c1_30] : memref<4x18x18xf32, #tpu.memory_space<vmem>>, vector<1x16x16xf32>
    %22 = vector.shape_cast %21 : vector<1x16x16xf32> to vector<16x16xf32>
    %23 = vector.shape_cast %20 : vector<16x16xf32> to vector<1x16x16xf32>
    tpu.vector_store %arg5[%c3_28, %c1_29, %c1_30], %23 {strides = array<i32>} : memref<4x18x18xf32, #tpu.memory_space<vmem>>, vector<1x16x16xf32>,
    %cst_31 = arith.constant 0.000000e+00 : f32
    %24 = vector.broadcast %cst_31 : f32 to vector<16x16xf32>
    %cst_32 = arith.constant 0.000000e+00 : f32
    %25 = vector.broadcast %cst_32 : f32 to vector<16x16xf32>
    %c0_33 = arith.constant 0 : index
    %c0_34 = arith.constant 0 : index
    %c0_35 = arith.constant 0 : index
    %26 = vector.load %arg5[%c0_33, %c0_34, %c0_35] : memref<4x18x18xf32, #tpu.memory_space<vmem>>, vector<1x16x16xf32>
    %27 = vector.shape_cast %26 : vector<1x16x16xf32> to vector<16x16xf32>
    %c0_36 = arith.constant 0 : index
    %28 = memref.load %arg2[%c0_36] : memref<72xf32, #tpu.memory_space<smem>>
    %29 = vector.broadcast %28 : f32 to vector<16x16xf32>
    %30 = arith.mulf %29, %27 : vector<16x16xf32>
    %31 = arith.addf %24, %30 : vector<16x16xf32>
    %c36 = arith.constant 36 : index
    %32 = memref.load %arg2[%c36] : memref<72xf32, #tpu.memory_space<smem>>
    %33 = vector.broadcast %32 : f32 to vector<16x16xf32>
    %34 = arith.mulf %33, %27 : vector<16x16xf32>
    %35 = arith.addf %25, %34 : vector<16x16xf32>
    %c0_37 = arith.constant 0 : index
    %c0_38 = arith.constant 0 : index
    %c1_39 = arith.constant 1 : index
    %36 = vector.load %arg5[%c0_37, %c0_38, %c1_39] : memref<4x18x18xf32, #tpu.memory_space<vmem>>, vector<1x16x16xf32>
    %37 = vector.shape_cast %36 : vector<1x16x16xf32> to vector<16x16xf32>
    %c1_40 = arith.constant 1 : index
    %38 = memref.load %arg2[%c1_40] : memref<72xf32, #tpu.memory_space<smem>>
    %39 = vector.broadcast %38 : f32 to vector<16x16xf32>
    %40 = arith.mulf %39, %37 : vector<16x16xf32>
    %41 = arith.addf %31, %40 : vector<16x16xf32>
    %c37 = arith.constant 37 : index
    %42 = memref.load %arg2[%c37] : memref<72xf32, #tpu.memory_space<smem>>
    %43 = vector.broadcast %42 : f32 to vector<16x16xf32>
    %44 = arith.mulf %43, %37 : vector<16x16xf32>
    %45 = arith.addf %35, %44 : vector<16x16xf32>
    %c0_41 = arith.constant 0 : index
    %c0_42 = arith.constant 0 : index
    %c2_43 = arith.constant 2 : index
    %46 = vector.load %arg5[%c0_41, %c0_42, %c2_43] : memref<4x18x18xf32, #tpu.memory_space<vmem>>, vector<1x16x16xf32>
    %47 = vector.shape_cast %46 : vector<1x16x16xf32> to vector<16x16xf32>
    %c2_44 = arith.constant 2 : index
    %48 = memref.load %arg2[%c2_44] : memref<72xf32, #tpu.memory_space<smem>>
    %49 = vector.broadcast %48 : f32 to vector<16x16xf32>
    %50 = arith.mulf %49, %47 : vector<16x16xf32>
    %51 = arith.addf %41, %50 : vector<16x16xf32>
    %c38 = arith.constant 38 : index
    %52 = memref.load %arg2[%c38] : memref<72xf32, #tpu.memory_space<smem>>
    %53 = vector.broadcast %52 : f32 to vector<16x16xf32>
    %54 = arith.mulf %53, %47 : vector<16x16xf32>
    %55 = arith.addf %45, %54 : vector<16x16xf32>
    %c0_45 = arith.constant 0 : index
    %c1_46 = arith.constant 1 : index
    %c0_47 = arith.constant 0 : index
    %56 = vector.load %arg5[%c0_45, %c1_46, %c0_47] : memref<4x18x18xf32, #tpu.memory_space<vmem>>, vector<1x16x16xf32>
    %57 = vector.shape_cast %56 : vector<1x16x16xf32> to vector<16x16xf32>
    %c3_48 = arith.constant 3 : index
    %58 = memref.load %arg2[%c3_48] : memref<72xf32, #tpu.memory_space<smem>>
    %59 = vector.broadcast %58 : f32 to vector<16x16xf32>
    %60 = arith.mulf %59, %57 : vector<16x16xf32>
    %61 = arith.addf %51, %60 : vector<16x16xf32>
    %c39 = arith.constant 39 : index
    %62 = memref.load %arg2[%c39] : memref<72xf32, #tpu.memory_space<smem>>
    %63 = vector.broadcast %62 : f32 to vector<16x16xf32>
    %64 = arith.mulf %63, %57 : vector<16x16xf32>
    %65 = arith.addf %55, %64 : vector<16x16xf32>
    %c0_49 = arith.constant 0 : index
    %c1_50 = arith.constant 1 : index
    %c1_51 = arith.constant 1 : index
    %66 = vector.load %arg5[%c0_49, %c1_50, %c1_51] : memref<4x18x18xf32, #tpu.memory_space<vmem>>, vector<1x16x16xf32>
    %67 = vector.shape_cast %66 : vector<1x16x16xf32> to vector<16x16xf32>
    %c4 = arith.constant 4 : index
    %68 = memref.load %arg2[%c4] : memref<72xf32, #tpu.memory_space<smem>>
    %69 = vector.broadcast %68 : f32 to vector<16x16xf32>
    %70 = arith.mulf %69, %67 : vector<16x16xf32>
    %71 = arith.addf %61, %70 : vector<16x16xf32>
    %c40 = arith.constant 40 : index
    %72 = memref.load %arg2[%c40] : memref<72xf32, #tpu.memory_space<smem>>
    %73 = vector.broadcast %72 : f32 to vector<16x16xf32>
    %74 = arith.mulf %73, %67 : vector<16x16xf32>
    %75 = arith.addf %65, %74 : vector<16x16xf32>
    %c0_52 = arith.constant 0 : index
    %c1_53 = arith.constant 1 : index
    %c2_54 = arith.constant 2 : index
    %76 = vector.load %arg5[%c0_52, %c1_53, %c2_54] : memref<4x18x18xf32, #tpu.memory_space<vmem>>, vector<1x16x16xf32>
    %77 = vector.shape_cast %76 : vector<1x16x16xf32> to vector<16x16xf32>
    %c5 = arith.constant 5 : index
    %78 = memref.load %arg2[%c5] : memref<72xf32, #tpu.memory_space<smem>>
    %79 = vector.broadcast %78 : f32 to vector<16x16xf32>
    %80 = arith.mulf %79, %77 : vector<16x16xf32>
    %81 = arith.addf %71, %80 : vector<16x16xf32>
    %c41 = arith.constant 41 : index
    %82 = memref.load %arg2[%c41] : memref<72xf32, #tpu.memory_space<smem>>
    %83 = vector.broadcast %82 : f32 to vector<16x16xf32>
    %84 = arith.mulf %83, %77 : vector<16x16xf32>
    %85 = arith.addf %75, %84 : vector<16x16xf32>
    %c0_55 = arith.constant 0 : index
    %c2_56 = arith.constant 2 : index
    %c0_57 = arith.constant 0 : index
    %86 = vector.load %arg5[%c0_55, %c2_56, %c0_57] : memref<4x18x18xf32, #tpu.memory_space<vmem>>, vector<1x16x16xf32>
    %87 = vector.shape_cast %86 : vector<1x16x16xf32> to vector<16x16xf32>
    %c6 = arith.constant 6 : index
    %88 = memref.load %arg2[%c6] : memref<72xf32, #tpu.memory_space<smem>>
    %89 = vector.broadcast %88 : f32 to vector<16x16xf32>
    %90 = arith.mulf %89, %87 : vector<16x16xf32>
    %91 = arith.addf %81, %90 : vector<16x16xf32>
    %c42 = arith.constant 42 : index
    %92 = memref.load %arg2[%c42] : memref<72xf32, #tpu.memory_space<smem>>
    %93 = vector.broadcast %92 : f32 to vector<16x16xf32>
    %94 = arith.mulf %93, %87 : vector<16x16xf32>
    %95 = arith.addf %85, %94 : vector<16x16xf32>
    %c0_58 = arith.constant 0 : index
    %c2_59 = arith.constant 2 : index
    %c1_60 = arith.constant 1 : index
    %96 = vector.load %arg5[%c0_58, %c2_59, %c1_60] : memref<4x18x18xf32, #tpu.memory_space<vmem>>, vector<1x16x16xf32>
    %97 = vector.shape_cast %96 : vector<1x16x16xf32> to vector<16x16xf32>
    %c7 = arith.constant 7 : index
    %98 = memref.load %arg2[%c7] : memref<72xf32, #tpu.memory_space<smem>>
    %99 = vector.broadcast %98 : f32 to vector<16x16xf32>
    %100 = arith.mulf %99, %97 : vector<16x16xf32>
    %101 = arith.addf %91, %100 : vector<16x16xf32>
    %c43 = arith.constant 43 : index
    %102 = memref.load %arg2[%c43] : memref<72xf32, #tpu.memory_space<smem>>
    %103 = vector.broadcast %102 : f32 to vector<16x16xf32>
    %104 = arith.mulf %103, %97 : vector<16x16xf32>
    %105 = arith.addf %95, %104 : vector<16x16xf32>
    %c0_61 = arith.constant 0 : index
    %c2_62 = arith.constant 2 : index
    %c2_63 = arith.constant 2 : index
    %106 = vector.load %arg5[%c0_61, %c2_62, %c2_63] : memref<4x18x18xf32, #tpu.memory_space<vmem>>, vector<1x16x16xf32>
    %107 = vector.shape_cast %106 : vector<1x16x16xf32> to vector<16x16xf32>
    %c8 = arith.constant 8 : index
    %108 = memref.load %arg2[%c8] : memref<72xf32, #tpu.memory_space<smem>>
    %109 = vector.broadcast %108 : f32 to vector<16x16xf32>
    %110 = arith.mulf %109, %107 : vector<16x16xf32>
    %111 = arith.addf %101, %110 : vector<16x16xf32>
    %c44 = arith.constant 44 : index
    %112 = memref.load %arg2[%c44] : memref<72xf32, #tpu.memory_space<smem>>
    %113 = vector.broadcast %112 : f32 to vector<16x16xf32>
    %114 = arith.mulf %113, %107 : vector<16x16xf32>
    %115 = arith.addf %105, %114 : vector<16x16xf32>
    %c1_64 = arith.constant 1 : index
    %c0_65 = arith.constant 0 : index
    %c0_66 = arith.constant 0 : index
    %116 = vector.load %arg5[%c1_64, %c0_65, %c0_66] : memref<4x18x18xf32, #tpu.memory_space<vmem>>, vector<1x16x16xf32>
    %117 = vector.shape_cast %116 : vector<1x16x16xf32> to vector<16x16xf32>
    %c9 = arith.constant 9 : index
    %118 = memref.load %arg2[%c9] : memref<72xf32, #tpu.memory_space<smem>>
    %119 = vector.broadcast %118 : f32 to vector<16x16xf32>
    %120 = arith.mulf %119, %117 : vector<16x16xf32>
    %121 = arith.addf %111, %120 : vector<16x16xf32>
    %c45 = arith.constant 45 : index
    %122 = memref.load %arg2[%c45] : memref<72xf32, #tpu.memory_space<smem>>
    %123 = vector.broadcast %122 : f32 to vector<16x16xf32>
    %124 = arith.mulf %123, %117 : vector<16x16xf32>
    %125 = arith.addf %115, %124 : vector<16x16xf32>
    %c1_67 = arith.constant 1 : index
    %c0_68 = arith.constant 0 : index
    %c1_69 = arith.constant 1 : index
    %126 = vector.load %arg5[%c1_67, %c0_68, %c1_69] : memref<4x18x18xf32, #tpu.memory_space<vmem>>, vector<1x16x16xf32>
    %127 = vector.shape_cast %126 : vector<1x16x16xf32> to vector<16x16xf32>
    %c10 = arith.constant 10 : index
    %128 = memref.load %arg2[%c10] : memref<72xf32, #tpu.memory_space<smem>>
    %129 = vector.broadcast %128 : f32 to vector<16x16xf32>
    %130 = arith.mulf %129, %127 : vector<16x16xf32>
    %131 = arith.addf %121, %130 : vector<16x16xf32>
    %c46 = arith.constant 46 : index
    %132 = memref.load %arg2[%c46] : memref<72xf32, #tpu.memory_space<smem>>
    %133 = vector.broadcast %132 : f32 to vector<16x16xf32>
    %134 = arith.mulf %133, %127 : vector<16x16xf32>
    %135 = arith.addf %125, %134 : vector<16x16xf32>
    %c1_70 = arith.constant 1 : index
    %c0_71 = arith.constant 0 : index
    %c2_72 = arith.constant 2 : index
    %136 = vector.load %arg5[%c1_70, %c0_71, %c2_72] : memref<4x18x18xf32, #tpu.memory_space<vmem>>, vector<1x16x16xf32>
    %137 = vector.shape_cast %136 : vector<1x16x16xf32> to vector<16x16xf32>
    %c11 = arith.constant 11 : index
    %138 = memref.load %arg2[%c11] : memref<72xf32, #tpu.memory_space<smem>>
    %139 = vector.broadcast %138 : f32 to vector<16x16xf32>
    %140 = arith.mulf %139, %137 : vector<16x16xf32>
    %141 = arith.addf %131, %140 : vector<16x16xf32>
    %c47 = arith.constant 47 : index
    %142 = memref.load %arg2[%c47] : memref<72xf32, #tpu.memory_space<smem>>
    %143 = vector.broadcast %142 : f32 to vector<16x16xf32>
    %144 = arith.mulf %143, %137 : vector<16x16xf32>
    %145 = arith.addf %135, %144 : vector<16x16xf32>
    %c1_73 = arith.constant 1 : index
    %c1_74 = arith.constant 1 : index
    %c0_75 = arith.constant 0 : index
    %146 = vector.load %arg5[%c1_73, %c1_74, %c0_75] : memref<4x18x18xf32, #tpu.memory_space<vmem>>, vector<1x16x16xf32>
    %147 = vector.shape_cast %146 : vector<1x16x16xf32> to vector<16x16xf32>
    %c12 = arith.constant 12 : index
    %148 = memref.load %arg2[%c12] : memref<72xf32, #tpu.memory_space<smem>>
    %149 = vector.broadcast %148 : f32 to vector<16x16xf32>
    %150 = arith.mulf %149, %147 : vector<16x16xf32>
    %151 = arith.addf %141, %150 : vector<16x16xf32>
    %c48 = arith.constant 48 : index
    %152 = memref.load %arg2[%c48] : memref<72xf32, #tpu.memory_space<smem>>
    %153 = vector.broadcast %152 : f32 to vector<16x16xf32>
    %154 = arith.mulf %153, %147 : vector<16x16xf32>
    %155 = arith.addf %145, %154 : vector<16x16xf32>
    %c1_76 = arith.constant 1 : index
    %c1_77 = arith.constant 1 : index
    %c1_78 = arith.constant 1 : index
    %156 = vector.load %arg5[%c1_76, %c1_77, %c1_78] : memref<4x18x18xf32, #tpu.memory_space<vmem>>, vector<1x16x16xf32>
    %157 = vector.shape_cast %156 : vector<1x16x16xf32> to vector<16x16xf32>
    %c13 = arith.constant 13 : index
    %158 = memref.load %arg2[%c13] : memref<72xf32, #tpu.memory_space<smem>>
    %159 = vector.broadcast %158 : f32 to vector<16x16xf32>
    %160 = arith.mulf %159, %157 : vector<16x16xf32>
    %161 = arith.addf %151, %160 : vector<16x16xf32>
    %c49 = arith.constant 49 : index
    %162 = memref.load %arg2[%c49] : memref<72xf32, #tpu.memory_space<smem>>
    %163 = vector.broadcast %162 : f32 to vector<16x16xf32>
    %164 = arith.mulf %163, %157 : vector<16x16xf32>
    %165 = arith.addf %155, %164 : vector<16x16xf32>
    %c1_79 = arith.constant 1 : index
    %c1_80 = arith.constant 1 : index
    %c2_81 = arith.constant 2 : index
    %166 = vector.load %arg5[%c1_79, %c1_80, %c2_81] : memref<4x18x18xf32, #tpu.memory_space<vmem>>, vector<1x16x16xf32>
    %167 = vector.shape_cast %166 : vector<1x16x16xf32> to vector<16x16xf32>
    %c14 = arith.constant 14 : index
    %168 = memref.load %arg2[%c14] : memref<72xf32, #tpu.memory_space<smem>>
    %169 = vector.broadcast %168 : f32 to vector<16x16xf32>
    %170 = arith.mulf %169, %167 : vector<16x16xf32>
    %171 = arith.addf %161, %170 : vector<16x16xf32>
    %c50 = arith.constant 50 : index
    %172 = memref.load %arg2[%c50] : memref<72xf32, #tpu.memory_space<smem>>
    %173 = vector.broadcast %172 : f32 to vector<16x16xf32>
    %174 = arith.mulf %173, %167 : vector<16x16xf32>
    %175 = arith.addf %165, %174 : vector<16x16xf32>
    %c1_82 = arith.constant 1 : index
    %c2_83 = arith.constant 2 : index
    %c0_84 = arith.constant 0 : index
    %176 = vector.load %arg5[%c1_82, %c2_83, %c0_84] : memref<4x18x18xf32, #tpu.memory_space<vmem>>, vector<1x16x16xf32>
    %177 = vector.shape_cast %176 : vector<1x16x16xf32> to vector<16x16xf32>
    %c15 = arith.constant 15 : index
    %178 = memref.load %arg2[%c15] : memref<72xf32, #tpu.memory_space<smem>>
    %179 = vector.broadcast %178 : f32 to vector<16x16xf32>
    %180 = arith.mulf %179, %177 : vector<16x16xf32>
    %181 = arith.addf %171, %180 : vector<16x16xf32>
    %c51 = arith.constant 51 : index
    %182 = memref.load %arg2[%c51] : memref<72xf32, #tpu.memory_space<smem>>
    %183 = vector.broadcast %182 : f32 to vector<16x16xf32>
    %184 = arith.mulf %183, %177 : vector<16x16xf32>
    %185 = arith.addf %175, %184 : vector<16x16xf32>
    %c1_85 = arith.constant 1 : index
    %c2_86 = arith.constant 2 : index
    %c1_87 = arith.constant 1 : index
    %186 = vector.load %arg5[%c1_85, %c2_86, %c1_87] : memref<4x18x18xf32, #tpu.memory_space<vmem>>, vector<1x16x16xf32>
    %187 = vector.shape_cast %186 : vector<1x16x16xf32> to vector<16x16xf32>
    %c16 = arith.constant 16 : index
    %188 = memref.load %arg2[%c16] : memref<72xf32, #tpu.memory_space<smem>>
    %189 = vector.broadcast %188 : f32 to vector<16x16xf32>
    %190 = arith.mulf %189, %187 : vector<16x16xf32>
    %191 = arith.addf %181, %190 : vector<16x16xf32>
    %c52 = arith.constant 52 : index
    %192 = memref.load %arg2[%c52] : memref<72xf32, #tpu.memory_space<smem>>
    %193 = vector.broadcast %192 : f32 to vector<16x16xf32>
    %194 = arith.mulf %193, %187 : vector<16x16xf32>
    %195 = arith.addf %185, %194 : vector<16x16xf32>
    %c1_88 = arith.constant 1 : index
    %c2_89 = arith.constant 2 : index
    %c2_90 = arith.constant 2 : index
    %196 = vector.load %arg5[%c1_88, %c2_89, %c2_90] : memref<4x18x18xf32, #tpu.memory_space<vmem>>, vector<1x16x16xf32>
    %197 = vector.shape_cast %196 : vector<1x16x16xf32> to vector<16x16xf32>
    %c17 = arith.constant 17 : index
    %198 = memref.load %arg2[%c17] : memref<72xf32, #tpu.memory_space<smem>>
    %199 = vector.broadcast %198 : f32 to vector<16x16xf32>
    %200 = arith.mulf %199, %197 : vector<16x16xf32>
    %201 = arith.addf %191, %200 : vector<16x16xf32>
    %c53 = arith.constant 53 : index
    %202 = memref.load %arg2[%c53] : memref<72xf32, #tpu.memory_space<smem>>
    %203 = vector.broadcast %202 : f32 to vector<16x16xf32>
    %204 = arith.mulf %203, %197 : vector<16x16xf32>
    %205 = arith.addf %195, %204 : vector<16x16xf32>
    %c2_91 = arith.constant 2 : index
    %c0_92 = arith.constant 0 : index
    %c0_93 = arith.constant 0 : index
    %206 = vector.load %arg5[%c2_91, %c0_92, %c0_93] : memref<4x18x18xf32, #tpu.memory_space<vmem>>, vector<1x16x16xf32>
    %207 = vector.shape_cast %206 : vector<1x16x16xf32> to vector<16x16xf32>
    %c18 = arith.constant 18 : index
    %208 = memref.load %arg2[%c18] : memref<72xf32, #tpu.memory_space<smem>>
    %209 = vector.broadcast %208 : f32 to vector<16x16xf32>
    %210 = arith.mulf %209, %207 : vector<16x16xf32>
    %211 = arith.addf %201, %210 : vector<16x16xf32>
    %c54 = arith.constant 54 : index
    %212 = memref.load %arg2[%c54] : memref<72xf32, #tpu.memory_space<smem>>
    %213 = vector.broadcast %212 : f32 to vector<16x16xf32>
    %214 = arith.mulf %213, %207 : vector<16x16xf32>
    %215 = arith.addf %205, %214 : vector<16x16xf32>
    %c2_94 = arith.constant 2 : index
    %c0_95 = arith.constant 0 : index
    %c1_96 = arith.constant 1 : index
    %216 = vector.load %arg5[%c2_94, %c0_95, %c1_96] : memref<4x18x18xf32, #tpu.memory_space<vmem>>, vector<1x16x16xf32>
    %217 = vector.shape_cast %216 : vector<1x16x16xf32> to vector<16x16xf32>
    %c19 = arith.constant 19 : index
    %218 = memref.load %arg2[%c19] : memref<72xf32, #tpu.memory_space<smem>>
    %219 = vector.broadcast %218 : f32 to vector<16x16xf32>
    %220 = arith.mulf %219, %217 : vector<16x16xf32>
    %221 = arith.addf %211, %220 : vector<16x16xf32>
    %c55 = arith.constant 55 : index
    %222 = memref.load %arg2[%c55] : memref<72xf32, #tpu.memory_space<smem>>
    %223 = vector.broadcast %222 : f32 to vector<16x16xf32>
    %224 = arith.mulf %223, %217 : vector<16x16xf32>
    %225 = arith.addf %215, %224 : vector<16x16xf32>
    %c2_97 = arith.constant 2 : index
    %c0_98 = arith.constant 0 : index
    %c2_99 = arith.constant 2 : index
    %226 = vector.load %arg5[%c2_97, %c0_98, %c2_99] : memref<4x18x18xf32, #tpu.memory_space<vmem>>, vector<1x16x16xf32>
    %227 = vector.shape_cast %226 : vector<1x16x16xf32> to vector<16x16xf32>
    %c20 = arith.constant 20 : index
    %228 = memref.load %arg2[%c20] : memref<72xf32, #tpu.memory_space<smem>>
    %229 = vector.broadcast %228 : f32 to vector<16x16xf32>
    %230 = arith.mulf %229, %227 : vector<16x16xf32>
    %231 = arith.addf %221, %230 : vector<16x16xf32>
    %c56 = arith.constant 56 : index
    %232 = memref.load %arg2[%c56] : memref<72xf32, #tpu.memory_space<smem>>
    %233 = vector.broadcast %232 : f32 to vector<16x16xf32>
    %234 = arith.mulf %233, %227 : vector<16x16xf32>
    %235 = arith.addf %225, %234 : vector<16x16xf32>
    %c2_100 = arith.constant 2 : index
    %c1_101 = arith.constant 1 : index
    %c0_102 = arith.constant 0 : index
    %236 = vector.load %arg5[%c2_100, %c1_101, %c0_102] : memref<4x18x18xf32, #tpu.memory_space<vmem>>, vector<1x16x16xf32>
    %237 = vector.shape_cast %236 : vector<1x16x16xf32> to vector<16x16xf32>
    %c21 = arith.constant 21 : index
    %238 = memref.load %arg2[%c21] : memref<72xf32, #tpu.memory_space<smem>>
    %239 = vector.broadcast %238 : f32 to vector<16x16xf32>
    %240 = arith.mulf %239, %237 : vector<16x16xf32>
    %241 = arith.addf %231, %240 : vector<16x16xf32>
    %c57 = arith.constant 57 : index
    %242 = memref.load %arg2[%c57] : memref<72xf32, #tpu.memory_space<smem>>
    %243 = vector.broadcast %242 : f32 to vector<16x16xf32>
    %244 = arith.mulf %243, %237 : vector<16x16xf32>
    %245 = arith.addf %235, %244 : vector<16x16xf32>
    %c2_103 = arith.constant 2 : index
    %c1_104 = arith.constant 1 : index
    %c1_105 = arith.constant 1 : index
    %246 = vector.load %arg5[%c2_103, %c1_104, %c1_105] : memref<4x18x18xf32, #tpu.memory_space<vmem>>, vector<1x16x16xf32>
    %247 = vector.shape_cast %246 : vector<1x16x16xf32> to vector<16x16xf32>
    %c22 = arith.constant 22 : index
    %248 = memref.load %arg2[%c22] : memref<72xf32, #tpu.memory_space<smem>>
    %249 = vector.broadcast %248 : f32 to vector<16x16xf32>
    %250 = arith.mulf %249, %247 : vector<16x16xf32>
    %251 = arith.addf %241, %250 : vector<16x16xf32>
    %c58 = arith.constant 58 : index
    %252 = memref.load %arg2[%c58] : memref<72xf32, #tpu.memory_space<smem>>
    %253 = vector.broadcast %252 : f32 to vector<16x16xf32>
    %254 = arith.mulf %253, %247 : vector<16x16xf32>
    %255 = arith.addf %245, %254 : vector<16x16xf32>
    %c2_106 = arith.constant 2 : index
    %c1_107 = arith.constant 1 : index
    %c2_108 = arith.constant 2 : index
    %256 = vector.load %arg5[%c2_106, %c1_107, %c2_108] : memref<4x18x18xf32, #tpu.memory_space<vmem>>, vector<1x16x16xf32>
    %257 = vector.shape_cast %256 : vector<1x16x16xf32> to vector<16x16xf32>
    %c23 = arith.constant 23 : index
    %258 = memref.load %arg2[%c23] : memref<72xf32, #tpu.memory_space<smem>>
    %259 = vector.broadcast %258 : f32 to vector<16x16xf32>
    %260 = arith.mulf %259, %257 : vector<16x16xf32>
    %261 = arith.addf %251, %260 : vector<16x16xf32>
    %c59 = arith.constant 59 : index
    %262 = memref.load %arg2[%c59] : memref<72xf32, #tpu.memory_space<smem>>
    %263 = vector.broadcast %262 : f32 to vector<16x16xf32>
    %264 = arith.mulf %263, %257 : vector<16x16xf32>
    %265 = arith.addf %255, %264 : vector<16x16xf32>
    %c2_109 = arith.constant 2 : index
    %c2_110 = arith.constant 2 : index
    %c0_111 = arith.constant 0 : index
    %266 = vector.load %arg5[%c2_109, %c2_110, %c0_111] : memref<4x18x18xf32, #tpu.memory_space<vmem>>, vector<1x16x16xf32>
    %267 = vector.shape_cast %266 : vector<1x16x16xf32> to vector<16x16xf32>
    %c24 = arith.constant 24 : index
    %268 = memref.load %arg2[%c24] : memref<72xf32, #tpu.memory_space<smem>>
    %269 = vector.broadcast %268 : f32 to vector<16x16xf32>
    %270 = arith.mulf %269, %267 : vector<16x16xf32>
    %271 = arith.addf %261, %270 : vector<16x16xf32>
    %c60 = arith.constant 60 : index
    %272 = memref.load %arg2[%c60] : memref<72xf32, #tpu.memory_space<smem>>
    %273 = vector.broadcast %272 : f32 to vector<16x16xf32>
    %274 = arith.mulf %273, %267 : vector<16x16xf32>
    %275 = arith.addf %265, %274 : vector<16x16xf32>
    %c2_112 = arith.constant 2 : index
    %c2_113 = arith.constant 2 : index
    %c1_114 = arith.constant 1 : index
    %276 = vector.load %arg5[%c2_112, %c2_113, %c1_114] : memref<4x18x18xf32, #tpu.memory_space<vmem>>, vector<1x16x16xf32>
    %277 = vector.shape_cast %276 : vector<1x16x16xf32> to vector<16x16xf32>
    %c25 = arith.constant 25 : index
    %278 = memref.load %arg2[%c25] : memref<72xf32, #tpu.memory_space<smem>>
    %279 = vector.broadcast %278 : f32 to vector<16x16xf32>
    %280 = arith.mulf %279, %277 : vector<16x16xf32>
    %281 = arith.addf %271, %280 : vector<16x16xf32>
    %c61 = arith.constant 61 : index
    %282 = memref.load %arg2[%c61] : memref<72xf32, #tpu.memory_space<smem>>
    %283 = vector.broadcast %282 : f32 to vector<16x16xf32>
    %284 = arith.mulf %283, %277 : vector<16x16xf32>
    %285 = arith.addf %275, %284 : vector<16x16xf32>
    %c2_115 = arith.constant 2 : index
    %c2_116 = arith.constant 2 : index
    %c2_117 = arith.constant 2 : index
    %286 = vector.load %arg5[%c2_115, %c2_116, %c2_117] : memref<4x18x18xf32, #tpu.memory_space<vmem>>, vector<1x16x16xf32>
    %287 = vector.shape_cast %286 : vector<1x16x16xf32> to vector<16x16xf32>
    %c26 = arith.constant 26 : index
    %288 = memref.load %arg2[%c26] : memref<72xf32, #tpu.memory_space<smem>>
    %289 = vector.broadcast %288 : f32 to vector<16x16xf32>
    %290 = arith.mulf %289, %287 : vector<16x16xf32>
    %291 = arith.addf %281, %290 : vector<16x16xf32>
    %c62 = arith.constant 62 : index
    %292 = memref.load %arg2[%c62] : memref<72xf32, #tpu.memory_space<smem>>
    %293 = vector.broadcast %292 : f32 to vector<16x16xf32>
    %294 = arith.mulf %293, %287 : vector<16x16xf32>
    %295 = arith.addf %285, %294 : vector<16x16xf32>
    %c3_118 = arith.constant 3 : index
    %c0_119 = arith.constant 0 : index
    %c0_120 = arith.constant 0 : index
    %296 = vector.load %arg5[%c3_118, %c0_119, %c0_120] : memref<4x18x18xf32, #tpu.memory_space<vmem>>, vector<1x16x16xf32>
    %297 = vector.shape_cast %296 : vector<1x16x16xf32> to vector<16x16xf32>
    %c27 = arith.constant 27 : index
    %298 = memref.load %arg2[%c27] : memref<72xf32, #tpu.memory_space<smem>>
    %299 = vector.broadcast %298 : f32 to vector<16x16xf32>
    %300 = arith.mulf %299, %297 : vector<16x16xf32>
    %301 = arith.addf %291, %300 : vector<16x16xf32>
    %c63 = arith.constant 63 : index
    %302 = memref.load %arg2[%c63] : memref<72xf32, #tpu.memory_space<smem>>
    %303 = vector.broadcast %302 : f32 to vector<16x16xf32>
    %304 = arith.mulf %303, %297 : vector<16x16xf32>
    %305 = arith.addf %295, %304 : vector<16x16xf32>
    %c3_121 = arith.constant 3 : index
    %c0_122 = arith.constant 0 : index
    %c1_123 = arith.constant 1 : index
    %306 = vector.load %arg5[%c3_121, %c0_122, %c1_123] : memref<4x18x18xf32, #tpu.memory_space<vmem>>, vector<1x16x16xf32>
    %307 = vector.shape_cast %306 : vector<1x16x16xf32> to vector<16x16xf32>
    %c28 = arith.constant 28 : index
    %308 = memref.load %arg2[%c28] : memref<72xf32, #tpu.memory_space<smem>>
    %309 = vector.broadcast %308 : f32 to vector<16x16xf32>
    %310 = arith.mulf %309, %307 : vector<16x16xf32>
    %311 = arith.addf %301, %310 : vector<16x16xf32>
    %c64 = arith.constant 64 : index
    %312 = memref.load %arg2[%c64] : memref<72xf32, #tpu.memory_space<smem>>
    %313 = vector.broadcast %312 : f32 to vector<16x16xf32>
    %314 = arith.mulf %313, %307 : vector<16x16xf32>
    %315 = arith.addf %305, %314 : vector<16x16xf32>
    %c3_124 = arith.constant 3 : index
    %c0_125 = arith.constant 0 : index
    %c2_126 = arith.constant 2 : index
    %316 = vector.load %arg5[%c3_124, %c0_125, %c2_126] : memref<4x18x18xf32, #tpu.memory_space<vmem>>, vector<1x16x16xf32>
    %317 = vector.shape_cast %316 : vector<1x16x16xf32> to vector<16x16xf32>
    %c29 = arith.constant 29 : index
    %318 = memref.load %arg2[%c29] : memref<72xf32, #tpu.memory_space<smem>>
    %319 = vector.broadcast %318 : f32 to vector<16x16xf32>
    %320 = arith.mulf %319, %317 : vector<16x16xf32>
    %321 = arith.addf %311, %320 : vector<16x16xf32>
    %c65 = arith.constant 65 : index
    %322 = memref.load %arg2[%c65] : memref<72xf32, #tpu.memory_space<smem>>
    %323 = vector.broadcast %322 : f32 to vector<16x16xf32>
    %324 = arith.mulf %323, %317 : vector<16x16xf32>
    %325 = arith.addf %315, %324 : vector<16x16xf32>
    %c3_127 = arith.constant 3 : index
    %c1_128 = arith.constant 1 : index
    %c0_129 = arith.constant 0 : index
    %326 = vector.load %arg5[%c3_127, %c1_128, %c0_129] : memref<4x18x18xf32, #tpu.memory_space<vmem>>, vector<1x16x16xf32>
    %327 = vector.shape_cast %326 : vector<1x16x16xf32> to vector<16x16xf32>
    %c30 = arith.constant 30 : index
    %328 = memref.load %arg2[%c30] : memref<72xf32, #tpu.memory_space<smem>>
    %329 = vector.broadcast %328 : f32 to vector<16x16xf32>
    %330 = arith.mulf %329, %327 : vector<16x16xf32>
    %331 = arith.addf %321, %330 : vector<16x16xf32>
    %c66 = arith.constant 66 : index
    %332 = memref.load %arg2[%c66] : memref<72xf32, #tpu.memory_space<smem>>
    %333 = vector.broadcast %332 : f32 to vector<16x16xf32>
    %334 = arith.mulf %333, %327 : vector<16x16xf32>
    %335 = arith.addf %325, %334 : vector<16x16xf32>
    %c3_130 = arith.constant 3 : index
    %c1_131 = arith.constant 1 : index
    %c1_132 = arith.constant 1 : index
    %336 = vector.load %arg5[%c3_130, %c1_131, %c1_132] : memref<4x18x18xf32, #tpu.memory_space<vmem>>, vector<1x16x16xf32>
    %337 = vector.shape_cast %336 : vector<1x16x16xf32> to vector<16x16xf32>
    %c31 = arith.constant 31 : index
    %338 = memref.load %arg2[%c31] : memref<72xf32, #tpu.memory_space<smem>>
    %339 = vector.broadcast %338 : f32 to vector<16x16xf32>
    %340 = arith.mulf %339, %337 : vector<16x16xf32>
    %341 = arith.addf %331, %340 : vector<16x16xf32>
    %c67 = arith.constant 67 : index
    %342 = memref.load %arg2[%c67] : memref<72xf32, #tpu.memory_space<smem>>
    %343 = vector.broadcast %342 : f32 to vector<16x16xf32>
    %344 = arith.mulf %343, %337 : vector<16x16xf32>
    %345 = arith.addf %335, %344 : vector<16x16xf32>
    %c3_133 = arith.constant 3 : index
    %c1_134 = arith.constant 1 : index
    %c2_135 = arith.constant 2 : index
    %346 = vector.load %arg5[%c3_133, %c1_134, %c2_135] : memref<4x18x18xf32, #tpu.memory_space<vmem>>, vector<1x16x16xf32>
    %347 = vector.shape_cast %346 : vector<1x16x16xf32> to vector<16x16xf32>
    %c32 = arith.constant 32 : index
    %348 = memref.load %arg2[%c32] : memref<72xf32, #tpu.memory_space<smem>>
    %349 = vector.broadcast %348 : f32 to vector<16x16xf32>
    %350 = arith.mulf %349, %347 : vector<16x16xf32>
    %351 = arith.addf %341, %350 : vector<16x16xf32>
    %c68 = arith.constant 68 : index
    %352 = memref.load %arg2[%c68] : memref<72xf32, #tpu.memory_space<smem>>
    %353 = vector.broadcast %352 : f32 to vector<16x16xf32>
    %354 = arith.mulf %353, %347 : vector<16x16xf32>
    %355 = arith.addf %345, %354 : vector<16x16xf32>
    %c3_136 = arith.constant 3 : index
    %c2_137 = arith.constant 2 : index
    %c0_138 = arith.constant 0 : index
    %356 = vector.load %arg5[%c3_136, %c2_137, %c0_138] : memref<4x18x18xf32, #tpu.memory_space<vmem>>, vector<1x16x16xf32>
    %357 = vector.shape_cast %356 : vector<1x16x16xf32> to vector<16x16xf32>
    %c33 = arith.constant 33 : index
    %358 = memref.load %arg2[%c33] : memref<72xf32, #tpu.memory_space<smem>>
    %359 = vector.broadcast %358 : f32 to vector<16x16xf32>
    %360 = arith.mulf %359, %357 : vector<16x16xf32>
    %361 = arith.addf %351, %360 : vector<16x16xf32>
    %c69 = arith.constant 69 : index
    %362 = memref.load %arg2[%c69] : memref<72xf32, #tpu.memory_space<smem>>
    %363 = vector.broadcast %362 : f32 to vector<16x16xf32>
    %364 = arith.mulf %363, %357 : vector<16x16xf32>
    %365 = arith.addf %355, %364 : vector<16x16xf32>
    %c3_139 = arith.constant 3 : index
    %c2_140 = arith.constant 2 : index
    %c1_141 = arith.constant 1 : index
    %366 = vector.load %arg5[%c3_139, %c2_140, %c1_141] : memref<4x18x18xf32, #tpu.memory_space<vmem>>, vector<1x16x16xf32>
    %367 = vector.shape_cast %366 : vector<1x16x16xf32> to vector<16x16xf32>
    %c34 = arith.constant 34 : index
    %368 = memref.load %arg2[%c34] : memref<72xf32, #tpu.memory_space<smem>>
    %369 = vector.broadcast %368 : f32 to vector<16x16xf32>
    %370 = arith.mulf %369, %367 : vector<16x16xf32>
    %371 = arith.addf %361, %370 : vector<16x16xf32>
    %c70 = arith.constant 70 : index
    %372 = memref.load %arg2[%c70] : memref<72xf32, #tpu.memory_space<smem>>
    %373 = vector.broadcast %372 : f32 to vector<16x16xf32>
    %374 = arith.mulf %373, %367 : vector<16x16xf32>
    %375 = arith.addf %365, %374 : vector<16x16xf32>
    %c3_142 = arith.constant 3 : index
    %c2_143 = arith.constant 2 : index
    %c2_144 = arith.constant 2 : index
    %376 = vector.load %arg5[%c3_142, %c2_143, %c2_144] : memref<4x18x18xf32, #tpu.memory_space<vmem>>, vector<1x16x16xf32>
    %377 = vector.shape_cast %376 : vector<1x16x16xf32> to vector<16x16xf32>
    %c35 = arith.constant 35 : index
    %378 = memref.load %arg2[%c35] : memref<72xf32, #tpu.memory_space<smem>>
    %379 = vector.broadcast %378 : f32 to vector<16x16xf32>
    %380 = arith.mulf %379, %377 : vector<16x16xf32>
    %381 = arith.addf %371, %380 : vector<16x16xf32>
    %c71 = arith.constant 71 : index
    %382 = memref.load %arg2[%c71] : memref<72xf32, #tpu.memory_space<smem>>
    %383 = vector.broadcast %382 : f32 to vector<16x16xf32>
    %384 = arith.mulf %383, %377 : vector<16x16xf32>
    %385 = arith.addf %375, %384 : vector<16x16xf32>
    %cst_145 = arith.constant dense<0.000000e+00> : vector<16xf32>
    %386 = vector.multi_reduction <add>, %381, %cst_145 [1] : vector<16x16xf32> to vector<16xf32>
    %387 = vector.shape_cast %386 : vector<16xf32> to vector<16x1xf32>
    %cst_146 = arith.constant dense<0.000000e+00> : vector<1xf32>
    %388 = vector.multi_reduction <add>, %387, %cst_146 [0] : vector<16x1xf32> to vector<1xf32>
    %389 = vector.shape_cast %388 : vector<1xf32> to vector<1x1xf32>
    %cst_147 = arith.constant 3.906250e-03 : f32
    %390 = vector.broadcast %cst_147 : f32 to vector<1x1xf32>
    %391 = arith.mulf %389, %390 : vector<1x1xf32>
    %392 = vector.broadcast %391 : vector<1x1xf32> to vector<16x16xf32>
    %393 = arith.subf %381, %392 : vector<16x16xf32>
    %394 = arith.mulf %393, %393 : vector<16x16xf32>
    %cst_148 = arith.constant dense<0.000000e+00> : vector<16xf32>
    %395 = vector.multi_reduction <add>, %394, %cst_148 [1] : vector<16x16xf32> to vector<16xf32>
    %396 = vector.shape_cast %395 : vector<16xf32> to vector<16x1xf32>
    %cst_149 = arith.constant dense<0.000000e+00> : vector<1xf32>
    %397 = vector.multi_reduction <add>, %396, %cst_149 [0] : vector<16x1xf32> to vector<1xf32>
    %398 = vector.shape_cast %397 : vector<1xf32> to vector<1x1xf32>
    %cst_150 = arith.constant 3.906250e-03 : f32
    %399 = vector.broadcast %cst_150 : f32 to vector<1x1xf32>
    %400 = arith.mulf %398, %399 : vector<1x1xf32>
    %cst_151 = arith.constant 9.99999974E-6 : f32
    %401 = vector.broadcast %cst_151 : f32 to vector<1x1xf32>
    %402 = arith.addf %400, %401 : vector<1x1xf32>
    %403 = math.rsqrt %402 : vector<1x1xf32>
    %404 = vector.broadcast %403 : vector<1x1xf32> to vector<16x16xf32>
    %405 = arith.mulf %393, %404 : vector<16x16xf32>
    %cst_152 = arith.constant 2.000000e-01 : f32
    %406 = vector.broadcast %cst_152 : f32 to vector<16x16xf32>
    %407 = arith.mulf %406, %405 : vector<16x16xf32>
    %408 = arith.maximumf %405, %407 : vector<16x16xf32>
    %cst_153 = arith.constant dense<0.000000e+00> : vector<16xf32>
    %409 = vector.multi_reduction <add>, %385, %cst_153 [1] : vector<16x16xf32> to vector<16xf32>
    %410 = vector.shape_cast %409 : vector<16xf32> to vector<16x1xf32>
    %cst_154 = arith.constant dense<0.000000e+00> : vector<1xf32>
    %411 = vector.multi_reduction <add>, %410, %cst_154 [0] : vector<16x1xf32> to vector<1xf32>
    %412 = vector.shape_cast %411 : vector<1xf32> to vector<1x1xf32>
    %cst_155 = arith.constant 3.906250e-03 : f32
    %413 = vector.broadcast %cst_155 : f32 to vector<1x1xf32>
    %414 = arith.mulf %412, %413 : vector<1x1xf32>
    %415 = vector.broadcast %414 : vector<1x1xf32> to vector<16x16xf32>
    %416 = arith.subf %385, %415 : vector<16x16xf32>
    %417 = arith.mulf %416, %416 : vector<16x16xf32>
    %cst_156 = arith.constant dense<0.000000e+00> : vector<16xf32>
    %418 = vector.multi_reduction <add>, %417, %cst_156 [1] : vector<16x16xf32> to vector<16xf32>
    %419 = vector.shape_cast %418 : vector<16xf32> to vector<16x1xf32>
    %cst_157 = arith.constant dense<0.000000e+00> : vector<1xf32>
    %420 = vector.multi_reduction <add>, %419, %cst_157 [0] : vector<16x1xf32> to vector<1xf32>
    %421 = vector.shape_cast %420 : vector<1xf32> to vector<1x1xf32>
    %cst_158 = arith.constant 3.906250e-03 : f32
    %422 = vector.broadcast %cst_158 : f32 to vector<1x1xf32>
    %423 = arith.mulf %421, %422 : vector<1x1xf32>
    %cst_159 = arith.constant 9.99999974E-6 : f32
    %424 = vector.broadcast %cst_159 : f32 to vector<1x1xf32>
    %425 = arith.addf %423, %424 : vector<1x1xf32>
    %426 = math.rsqrt %425 : vector<1x1xf32>
    %427 = vector.broadcast %426 : vector<1x1xf32> to vector<16x16xf32>
    %428 = arith.mulf %416, %427 : vector<16x16xf32>
    %cst_160 = arith.constant 2.000000e-01 : f32
    %429 = vector.broadcast %cst_160 : f32 to vector<16x16xf32>
    %430 = arith.mulf %429, %428 : vector<16x16xf32>
    %431 = arith.maximumf %428, %430 : vector<16x16xf32>
    %c0_161 = arith.constant 0 : index
    %c1_162 = arith.constant 1 : index
    %c1_163 = arith.constant 1 : index
    %432 = vector.load %arg6[%c0_161, %c1_162, %c1_163] : memref<2x18x18xf32, #tpu.memory_space<vmem>>, vector<1x16x16xf32>
    %433 = vector.shape_cast %432 : vector<1x16x16xf32> to vector<16x16xf32>
    %434 = vector.shape_cast %408 : vector<16x16xf32> to vector<1x16x16xf32>
    tpu.vector_store %arg6[%c0_161, %c1_162, %c1_163], %434 {strides = array<i32>} : memref<2x18x18xf32, #tpu.memory_space<vmem>>, vector<1x16x16xf32>,
    %c1_164 = arith.constant 1 : index
    %c1_165 = arith.constant 1 : index
    %c1_166 = arith.constant 1 : index
    %435 = vector.load %arg6[%c1_164, %c1_165, %c1_166] : memref<2x18x18xf32, #tpu.memory_space<vmem>>, vector<1x16x16xf32>
    %436 = vector.shape_cast %435 : vector<1x16x16xf32> to vector<16x16xf32>
    %437 = vector.shape_cast %431 : vector<16x16xf32> to vector<1x16x16xf32>
    tpu.vector_store %arg6[%c1_164, %c1_165, %c1_166], %437 {strides = array<i32>} : memref<2x18x18xf32, #tpu.memory_space<vmem>>, vector<1x16x16xf32>,
    %cst_167 = arith.constant 0.000000e+00 : f32
    %438 = vector.broadcast %cst_167 : f32 to vector<16x16xf32>
    %cst_168 = arith.constant 0.000000e+00 : f32
    %439 = vector.broadcast %cst_168 : f32 to vector<16x16xf32>
    %cst_169 = arith.constant 0.000000e+00 : f32
    %440 = vector.broadcast %cst_169 : f32 to vector<16x16xf32>
    %cst_170 = arith.constant 0.000000e+00 : f32
    %441 = vector.broadcast %cst_170 : f32 to vector<16x16xf32>
    %cst_171 = arith.constant 0.000000e+00 : f32
    %442 = vector.broadcast %cst_171 : f32 to vector<16x16xf32>
    %cst_172 = arith.constant 0.000000e+00 : f32
    %443 = vector.broadcast %cst_172 : f32 to vector<16x16xf32>
    %cst_173 = arith.constant 0.000000e+00 : f32
    %444 = vector.broadcast %cst_173 : f32 to vector<16x16xf32>
    %cst_174 = arith.constant 0.000000e+00 : f32
    %445 = vector.broadcast %cst_174 : f32 to vector<16x16xf32>
    %c0_175 = arith.constant 0 : index
    %c0_176 = arith.constant 0 : index
    %c0_177 = arith.constant 0 : index
    %446 = vector.load %arg6[%c0_175, %c0_176, %c0_177] : memref<2x18x18xf32, #tpu.memory_space<vmem>>, vector<1x16x16xf32>
    %447 = vector.shape_cast %446 : vector<1x16x16xf32> to vector<16x16xf32>
    %c0_178 = arith.constant 0 : index
    %448 = memref.load %arg3[%c0_178] : memref<144xf32, #tpu.memory_space<smem>>
    %449 = vector.broadcast %448 : f32 to vector<16x16xf32>
    %450 = arith.mulf %449, %447 : vector<16x16xf32>
    %451 = arith.addf %438, %450 : vector<16x16xf32>
    %c18_179 = arith.constant 18 : index
    %452 = memref.load %arg3[%c18_179] : memref<144xf32, #tpu.memory_space<smem>>
    %453 = vector.broadcast %452 : f32 to vector<16x16xf32>
    %454 = arith.mulf %453, %447 : vector<16x16xf32>
    %455 = arith.addf %439, %454 : vector<16x16xf32>
    %c36_180 = arith.constant 36 : index
    %456 = memref.load %arg3[%c36_180] : memref<144xf32, #tpu.memory_space<smem>>
    %457 = vector.broadcast %456 : f32 to vector<16x16xf32>
    %458 = arith.mulf %457, %447 : vector<16x16xf32>
    %459 = arith.addf %440, %458 : vector<16x16xf32>
    %c54_181 = arith.constant 54 : index
    %460 = memref.load %arg3[%c54_181] : memref<144xf32, #tpu.memory_space<smem>>
    %461 = vector.broadcast %460 : f32 to vector<16x16xf32>
    %462 = arith.mulf %461, %447 : vector<16x16xf32>
    %463 = arith.addf %441, %462 : vector<16x16xf32>
    %c72 = arith.constant 72 : index
    %464 = memref.load %arg3[%c72] : memref<144xf32, #tpu.memory_space<smem>>
    %465 = vector.broadcast %464 : f32 to vector<16x16xf32>
    %466 = arith.mulf %465, %447 : vector<16x16xf32>
    %467 = arith.addf %442, %466 : vector<16x16xf32>
    %c90 = arith.constant 90 : index
    %468 = memref.load %arg3[%c90] : memref<144xf32, #tpu.memory_space<smem>>
    %469 = vector.broadcast %468 : f32 to vector<16x16xf32>
    %470 = arith.mulf %469, %447 : vector<16x16xf32>
    %471 = arith.addf %443, %470 : vector<16x16xf32>
    %c108 = arith.constant 108 : index
    %472 = memref.load %arg3[%c108] : memref<144xf32, #tpu.memory_space<smem>>
    %473 = vector.broadcast %472 : f32 to vector<16x16xf32>
    %474 = arith.mulf %473, %447 : vector<16x16xf32>
    %475 = arith.addf %444, %474 : vector<16x16xf32>
    %c126 = arith.constant 126 : index
    %476 = memref.load %arg3[%c126] : memref<144xf32, #tpu.memory_space<smem>>
    %477 = vector.broadcast %476 : f32 to vector<16x16xf32>
    %478 = arith.mulf %477, %447 : vector<16x16xf32>
    %479 = arith.addf %445, %478 : vector<16x16xf32>
    %c0_182 = arith.constant 0 : index
    %c0_183 = arith.constant 0 : index
    %c1_184 = arith.constant 1 : index
    %480 = vector.load %arg6[%c0_182, %c0_183, %c1_184] : memref<2x18x18xf32, #tpu.memory_space<vmem>>, vector<1x16x16xf32>
    %481 = vector.shape_cast %480 : vector<1x16x16xf32> to vector<16x16xf32>
    %c1_185 = arith.constant 1 : index
    %482 = memref.load %arg3[%c1_185] : memref<144xf32, #tpu.memory_space<smem>>
    %483 = vector.broadcast %482 : f32 to vector<16x16xf32>
    %484 = arith.mulf %483, %481 : vector<16x16xf32>
    %485 = arith.addf %451, %484 : vector<16x16xf32>
    %c19_186 = arith.constant 19 : index
    %486 = memref.load %arg3[%c19_186] : memref<144xf32, #tpu.memory_space<smem>>
    %487 = vector.broadcast %486 : f32 to vector<16x16xf32>
    %488 = arith.mulf %487, %481 : vector<16x16xf32>
    %489 = arith.addf %455, %488 : vector<16x16xf32>
    %c37_187 = arith.constant 37 : index
    %490 = memref.load %arg3[%c37_187] : memref<144xf32, #tpu.memory_space<smem>>
    %491 = vector.broadcast %490 : f32 to vector<16x16xf32>
    %492 = arith.mulf %491, %481 : vector<16x16xf32>
    %493 = arith.addf %459, %492 : vector<16x16xf32>
    %c55_188 = arith.constant 55 : index
    %494 = memref.load %arg3[%c55_188] : memref<144xf32, #tpu.memory_space<smem>>
    %495 = vector.broadcast %494 : f32 to vector<16x16xf32>
    %496 = arith.mulf %495, %481 : vector<16x16xf32>
    %497 = arith.addf %463, %496 : vector<16x16xf32>
    %c73 = arith.constant 73 : index
    %498 = memref.load %arg3[%c73] : memref<144xf32, #tpu.memory_space<smem>>
    %499 = vector.broadcast %498 : f32 to vector<16x16xf32>
    %500 = arith.mulf %499, %481 : vector<16x16xf32>
    %501 = arith.addf %467, %500 : vector<16x16xf32>
    %c91 = arith.constant 91 : index
    %502 = memref.load %arg3[%c91] : memref<144xf32, #tpu.memory_space<smem>>
    %503 = vector.broadcast %502 : f32 to vector<16x16xf32>
    %504 = arith.mulf %503, %481 : vector<16x16xf32>
    %505 = arith.addf %471, %504 : vector<16x16xf32>
    %c109 = arith.constant 109 : index
    %506 = memref.load %arg3[%c109] : memref<144xf32, #tpu.memory_space<smem>>
    %507 = vector.broadcast %506 : f32 to vector<16x16xf32>
    %508 = arith.mulf %507, %481 : vector<16x16xf32>
    %509 = arith.addf %475, %508 : vector<16x16xf32>
    %c127 = arith.constant 127 : index
    %510 = memref.load %arg3[%c127] : memref<144xf32, #tpu.memory_space<smem>>
    %511 = vector.broadcast %510 : f32 to vector<16x16xf32>
    %512 = arith.mulf %511, %481 : vector<16x16xf32>
    %513 = arith.addf %479, %512 : vector<16x16xf32>
    %c0_189 = arith.constant 0 : index
    %c0_190 = arith.constant 0 : index
    %c2_191 = arith.constant 2 : index
    %514 = vector.load %arg6[%c0_189, %c0_190, %c2_191] : memref<2x18x18xf32, #tpu.memory_space<vmem>>, vector<1x16x16xf32>
    %515 = vector.shape_cast %514 : vector<1x16x16xf32> to vector<16x16xf32>
    %c2_192 = arith.constant 2 : index
    %516 = memref.load %arg3[%c2_192] : memref<144xf32, #tpu.memory_space<smem>>
    %517 = vector.broadcast %516 : f32 to vector<16x16xf32>
    %518 = arith.mulf %517, %515 : vector<16x16xf32>
    %519 = arith.addf %485, %518 : vector<16x16xf32>
    %c20_193 = arith.constant 20 : index
    %520 = memref.load %arg3[%c20_193] : memref<144xf32, #tpu.memory_space<smem>>
    %521 = vector.broadcast %520 : f32 to vector<16x16xf32>
    %522 = arith.mulf %521, %515 : vector<16x16xf32>
    %523 = arith.addf %489, %522 : vector<16x16xf32>
    %c38_194 = arith.constant 38 : index
    %524 = memref.load %arg3[%c38_194] : memref<144xf32, #tpu.memory_space<smem>>
    %525 = vector.broadcast %524 : f32 to vector<16x16xf32>
    %526 = arith.mulf %525, %515 : vector<16x16xf32>
    %527 = arith.addf %493, %526 : vector<16x16xf32>
    %c56_195 = arith.constant 56 : index
    %528 = memref.load %arg3[%c56_195] : memref<144xf32, #tpu.memory_space<smem>>
    %529 = vector.broadcast %528 : f32 to vector<16x16xf32>
    %530 = arith.mulf %529, %515 : vector<16x16xf32>
    %531 = arith.addf %497, %530 : vector<16x16xf32>
    %c74 = arith.constant 74 : index
    %532 = memref.load %arg3[%c74] : memref<144xf32, #tpu.memory_space<smem>>
    %533 = vector.broadcast %532 : f32 to vector<16x16xf32>
    %534 = arith.mulf %533, %515 : vector<16x16xf32>
    %535 = arith.addf %501, %534 : vector<16x16xf32>
    %c92 = arith.constant 92 : index
    %536 = memref.load %arg3[%c92] : memref<144xf32, #tpu.memory_space<smem>>
    %537 = vector.broadcast %536 : f32 to vector<16x16xf32>
    %538 = arith.mulf %537, %515 : vector<16x16xf32>
    %539 = arith.addf %505, %538 : vector<16x16xf32>
    %c110 = arith.constant 110 : index
    %540 = memref.load %arg3[%c110] : memref<144xf32, #tpu.memory_space<smem>>
    %541 = vector.broadcast %540 : f32 to vector<16x16xf32>
    %542 = arith.mulf %541, %515 : vector<16x16xf32>
    %543 = arith.addf %509, %542 : vector<16x16xf32>
    %c128 = arith.constant 128 : index
    %544 = memref.load %arg3[%c128] : memref<144xf32, #tpu.memory_space<smem>>
    %545 = vector.broadcast %544 : f32 to vector<16x16xf32>
    %546 = arith.mulf %545, %515 : vector<16x16xf32>
    %547 = arith.addf %513, %546 : vector<16x16xf32>
    %c0_196 = arith.constant 0 : index
    %c1_197 = arith.constant 1 : index
    %c0_198 = arith.constant 0 : index
    %548 = vector.load %arg6[%c0_196, %c1_197, %c0_198] : memref<2x18x18xf32, #tpu.memory_space<vmem>>, vector<1x16x16xf32>
    %549 = vector.shape_cast %548 : vector<1x16x16xf32> to vector<16x16xf32>
    %c3_199 = arith.constant 3 : index
    %550 = memref.load %arg3[%c3_199] : memref<144xf32, #tpu.memory_space<smem>>
    %551 = vector.broadcast %550 : f32 to vector<16x16xf32>
    %552 = arith.mulf %551, %549 : vector<16x16xf32>
    %553 = arith.addf %519, %552 : vector<16x16xf32>
    %c21_200 = arith.constant 21 : index
    %554 = memref.load %arg3[%c21_200] : memref<144xf32, #tpu.memory_space<smem>>
    %555 = vector.broadcast %554 : f32 to vector<16x16xf32>
    %556 = arith.mulf %555, %549 : vector<16x16xf32>
    %557 = arith.addf %523, %556 : vector<16x16xf32>
    %c39_201 = arith.constant 39 : index
    %558 = memref.load %arg3[%c39_201] : memref<144xf32, #tpu.memory_space<smem>>
    %559 = vector.broadcast %558 : f32 to vector<16x16xf32>
    %560 = arith.mulf %559, %549 : vector<16x16xf32>
    %561 = arith.addf %527, %560 : vector<16x16xf32>
    %c57_202 = arith.constant 57 : index
    %562 = memref.load %arg3[%c57_202] : memref<144xf32, #tpu.memory_space<smem>>
    %563 = vector.broadcast %562 : f32 to vector<16x16xf32>
    %564 = arith.mulf %563, %549 : vector<16x16xf32>
    %565 = arith.addf %531, %564 : vector<16x16xf32>
    %c75 = arith.constant 75 : index
    %566 = memref.load %arg3[%c75] : memref<144xf32, #tpu.memory_space<smem>>
    %567 = vector.broadcast %566 : f32 to vector<16x16xf32>
    %568 = arith.mulf %567, %549 : vector<16x16xf32>
    %569 = arith.addf %535, %568 : vector<16x16xf32>
    %c93 = arith.constant 93 : index
    %570 = memref.load %arg3[%c93] : memref<144xf32, #tpu.memory_space<smem>>
    %571 = vector.broadcast %570 : f32 to vector<16x16xf32>
    %572 = arith.mulf %571, %549 : vector<16x16xf32>
    %573 = arith.addf %539, %572 : vector<16x16xf32>
    %c111 = arith.constant 111 : index
    %574 = memref.load %arg3[%c111] : memref<144xf32, #tpu.memory_space<smem>>
    %575 = vector.broadcast %574 : f32 to vector<16x16xf32>
    %576 = arith.mulf %575, %549 : vector<16x16xf32>
    %577 = arith.addf %543, %576 : vector<16x16xf32>
    %c129 = arith.constant 129 : index
    %578 = memref.load %arg3[%c129] : memref<144xf32, #tpu.memory_space<smem>>
    %579 = vector.broadcast %578 : f32 to vector<16x16xf32>
    %580 = arith.mulf %579, %549 : vector<16x16xf32>
    %581 = arith.addf %547, %580 : vector<16x16xf32>
    %c0_203 = arith.constant 0 : index
    %c1_204 = arith.constant 1 : index
    %c1_205 = arith.constant 1 : index
    %582 = vector.load %arg6[%c0_203, %c1_204, %c1_205] : memref<2x18x18xf32, #tpu.memory_space<vmem>>, vector<1x16x16xf32>
    %583 = vector.shape_cast %582 : vector<1x16x16xf32> to vector<16x16xf32>
    %c4_206 = arith.constant 4 : index
    %584 = memref.load %arg3[%c4_206] : memref<144xf32, #tpu.memory_space<smem>>
    %585 = vector.broadcast %584 : f32 to vector<16x16xf32>
    %586 = arith.mulf %585, %583 : vector<16x16xf32>
    %587 = arith.addf %553, %586 : vector<16x16xf32>
    %c22_207 = arith.constant 22 : index
    %588 = memref.load %arg3[%c22_207] : memref<144xf32, #tpu.memory_space<smem>>
    %589 = vector.broadcast %588 : f32 to vector<16x16xf32>
    %590 = arith.mulf %589, %583 : vector<16x16xf32>
    %591 = arith.addf %557, %590 : vector<16x16xf32>
    %c40_208 = arith.constant 40 : index
    %592 = memref.load %arg3[%c40_208] : memref<144xf32, #tpu.memory_space<smem>>
    %593 = vector.broadcast %592 : f32 to vector<16x16xf32>
    %594 = arith.mulf %593, %583 : vector<16x16xf32>
    %595 = arith.addf %561, %594 : vector<16x16xf32>
    %c58_209 = arith.constant 58 : index
    %596 = memref.load %arg3[%c58_209] : memref<144xf32, #tpu.memory_space<smem>>
    %597 = vector.broadcast %596 : f32 to vector<16x16xf32>
    %598 = arith.mulf %597, %583 : vector<16x16xf32>
    %599 = arith.addf %565, %598 : vector<16x16xf32>
    %c76 = arith.constant 76 : index
    %600 = memref.load %arg3[%c76] : memref<144xf32, #tpu.memory_space<smem>>
    %601 = vector.broadcast %600 : f32 to vector<16x16xf32>
    %602 = arith.mulf %601, %583 : vector<16x16xf32>
    %603 = arith.addf %569, %602 : vector<16x16xf32>
    %c94 = arith.constant 94 : index
    %604 = memref.load %arg3[%c94] : memref<144xf32, #tpu.memory_space<smem>>
    %605 = vector.broadcast %604 : f32 to vector<16x16xf32>
    %606 = arith.mulf %605, %583 : vector<16x16xf32>
    %607 = arith.addf %573, %606 : vector<16x16xf32>
    %c112 = arith.constant 112 : index
    %608 = memref.load %arg3[%c112] : memref<144xf32, #tpu.memory_space<smem>>
    %609 = vector.broadcast %608 : f32 to vector<16x16xf32>
    %610 = arith.mulf %609, %583 : vector<16x16xf32>
    %611 = arith.addf %577, %610 : vector<16x16xf32>
    %c130 = arith.constant 130 : index
    %612 = memref.load %arg3[%c130] : memref<144xf32, #tpu.memory_space<smem>>
    %613 = vector.broadcast %612 : f32 to vector<16x16xf32>
    %614 = arith.mulf %613, %583 : vector<16x16xf32>
    %615 = arith.addf %581, %614 : vector<16x16xf32>
    %c0_210 = arith.constant 0 : index
    %c1_211 = arith.constant 1 : index
    %c2_212 = arith.constant 2 : index
    %616 = vector.load %arg6[%c0_210, %c1_211, %c2_212] : memref<2x18x18xf32, #tpu.memory_space<vmem>>, vector<1x16x16xf32>
    %617 = vector.shape_cast %616 : vector<1x16x16xf32> to vector<16x16xf32>
    %c5_213 = arith.constant 5 : index
    %618 = memref.load %arg3[%c5_213] : memref<144xf32, #tpu.memory_space<smem>>
    %619 = vector.broadcast %618 : f32 to vector<16x16xf32>
    %620 = arith.mulf %619, %617 : vector<16x16xf32>
    %621 = arith.addf %587, %620 : vector<16x16xf32>
    %c23_214 = arith.constant 23 : index
    %622 = memref.load %arg3[%c23_214] : memref<144xf32, #tpu.memory_space<smem>>
    %623 = vector.broadcast %622 : f32 to vector<16x16xf32>
    %624 = arith.mulf %623, %617 : vector<16x16xf32>
    %625 = arith.addf %591, %624 : vector<16x16xf32>
    %c41_215 = arith.constant 41 : index
    %626 = memref.load %arg3[%c41_215] : memref<144xf32, #tpu.memory_space<smem>>
    %627 = vector.broadcast %626 : f32 to vector<16x16xf32>
    %628 = arith.mulf %627, %617 : vector<16x16xf32>
    %629 = arith.addf %595, %628 : vector<16x16xf32>
    %c59_216 = arith.constant 59 : index
    %630 = memref.load %arg3[%c59_216] : memref<144xf32, #tpu.memory_space<smem>>
    %631 = vector.broadcast %630 : f32 to vector<16x16xf32>
    %632 = arith.mulf %631, %617 : vector<16x16xf32>
    %633 = arith.addf %599, %632 : vector<16x16xf32>
    %c77 = arith.constant 77 : index
    %634 = memref.load %arg3[%c77] : memref<144xf32, #tpu.memory_space<smem>>
    %635 = vector.broadcast %634 : f32 to vector<16x16xf32>
    %636 = arith.mulf %635, %617 : vector<16x16xf32>
    %637 = arith.addf %603, %636 : vector<16x16xf32>
    %c95 = arith.constant 95 : index
    %638 = memref.load %arg3[%c95] : memref<144xf32, #tpu.memory_space<smem>>
    %639 = vector.broadcast %638 : f32 to vector<16x16xf32>
    %640 = arith.mulf %639, %617 : vector<16x16xf32>
    %641 = arith.addf %607, %640 : vector<16x16xf32>
    %c113 = arith.constant 113 : index
    %642 = memref.load %arg3[%c113] : memref<144xf32, #tpu.memory_space<smem>>
    %643 = vector.broadcast %642 : f32 to vector<16x16xf32>
    %644 = arith.mulf %643, %617 : vector<16x16xf32>
    %645 = arith.addf %611, %644 : vector<16x16xf32>
    %c131 = arith.constant 131 : index
    %646 = memref.load %arg3[%c131] : memref<144xf32, #tpu.memory_space<smem>>
    %647 = vector.broadcast %646 : f32 to vector<16x16xf32>
    %648 = arith.mulf %647, %617 : vector<16x16xf32>
    %649 = arith.addf %615, %648 : vector<16x16xf32>
    %c0_217 = arith.constant 0 : index
    %c2_218 = arith.constant 2 : index
    %c0_219 = arith.constant 0 : index
    %650 = vector.load %arg6[%c0_217, %c2_218, %c0_219] : memref<2x18x18xf32, #tpu.memory_space<vmem>>, vector<1x16x16xf32>
    %651 = vector.shape_cast %650 : vector<1x16x16xf32> to vector<16x16xf32>
    %c6_220 = arith.constant 6 : index
    %652 = memref.load %arg3[%c6_220] : memref<144xf32, #tpu.memory_space<smem>>
    %653 = vector.broadcast %652 : f32 to vector<16x16xf32>
    %654 = arith.mulf %653, %651 : vector<16x16xf32>
    %655 = arith.addf %621, %654 : vector<16x16xf32>
    %c24_221 = arith.constant 24 : index
    %656 = memref.load %arg3[%c24_221] : memref<144xf32, #tpu.memory_space<smem>>
    %657 = vector.broadcast %656 : f32 to vector<16x16xf32>
    %658 = arith.mulf %657, %651 : vector<16x16xf32>
    %659 = arith.addf %625, %658 : vector<16x16xf32>
    %c42_222 = arith.constant 42 : index
    %660 = memref.load %arg3[%c42_222] : memref<144xf32, #tpu.memory_space<smem>>
    %661 = vector.broadcast %660 : f32 to vector<16x16xf32>
    %662 = arith.mulf %661, %651 : vector<16x16xf32>
    %663 = arith.addf %629, %662 : vector<16x16xf32>
    %c60_223 = arith.constant 60 : index
    %664 = memref.load %arg3[%c60_223] : memref<144xf32, #tpu.memory_space<smem>>
    %665 = vector.broadcast %664 : f32 to vector<16x16xf32>
    %666 = arith.mulf %665, %651 : vector<16x16xf32>
    %667 = arith.addf %633, %666 : vector<16x16xf32>
    %c78 = arith.constant 78 : index
    %668 = memref.load %arg3[%c78] : memref<144xf32, #tpu.memory_space<smem>>
    %669 = vector.broadcast %668 : f32 to vector<16x16xf32>
    %670 = arith.mulf %669, %651 : vector<16x16xf32>
    %671 = arith.addf %637, %670 : vector<16x16xf32>
    %c96 = arith.constant 96 : index
    %672 = memref.load %arg3[%c96] : memref<144xf32, #tpu.memory_space<smem>>
    %673 = vector.broadcast %672 : f32 to vector<16x16xf32>
    %674 = arith.mulf %673, %651 : vector<16x16xf32>
    %675 = arith.addf %641, %674 : vector<16x16xf32>
    %c114 = arith.constant 114 : index
    %676 = memref.load %arg3[%c114] : memref<144xf32, #tpu.memory_space<smem>>
    %677 = vector.broadcast %676 : f32 to vector<16x16xf32>
    %678 = arith.mulf %677, %651 : vector<16x16xf32>
    %679 = arith.addf %645, %678 : vector<16x16xf32>
    %c132 = arith.constant 132 : index
    %680 = memref.load %arg3[%c132] : memref<144xf32, #tpu.memory_space<smem>>
    %681 = vector.broadcast %680 : f32 to vector<16x16xf32>
    %682 = arith.mulf %681, %651 : vector<16x16xf32>
    %683 = arith.addf %649, %682 : vector<16x16xf32>
    %c0_224 = arith.constant 0 : index
    %c2_225 = arith.constant 2 : index
    %c1_226 = arith.constant 1 : index
    %684 = vector.load %arg6[%c0_224, %c2_225, %c1_226] : memref<2x18x18xf32, #tpu.memory_space<vmem>>, vector<1x16x16xf32>
    %685 = vector.shape_cast %684 : vector<1x16x16xf32> to vector<16x16xf32>
    %c7_227 = arith.constant 7 : index
    %686 = memref.load %arg3[%c7_227] : memref<144xf32, #tpu.memory_space<smem>>
    %687 = vector.broadcast %686 : f32 to vector<16x16xf32>
    %688 = arith.mulf %687, %685 : vector<16x16xf32>
    %689 = arith.addf %655, %688 : vector<16x16xf32>
    %c25_228 = arith.constant 25 : index
    %690 = memref.load %arg3[%c25_228] : memref<144xf32, #tpu.memory_space<smem>>
    %691 = vector.broadcast %690 : f32 to vector<16x16xf32>
    %692 = arith.mulf %691, %685 : vector<16x16xf32>
    %693 = arith.addf %659, %692 : vector<16x16xf32>
    %c43_229 = arith.constant 43 : index
    %694 = memref.load %arg3[%c43_229] : memref<144xf32, #tpu.memory_space<smem>>
    %695 = vector.broadcast %694 : f32 to vector<16x16xf32>
    %696 = arith.mulf %695, %685 : vector<16x16xf32>
    %697 = arith.addf %663, %696 : vector<16x16xf32>
    %c61_230 = arith.constant 61 : index
    %698 = memref.load %arg3[%c61_230] : memref<144xf32, #tpu.memory_space<smem>>
    %699 = vector.broadcast %698 : f32 to vector<16x16xf32>
    %700 = arith.mulf %699, %685 : vector<16x16xf32>
    %701 = arith.addf %667, %700 : vector<16x16xf32>
    %c79 = arith.constant 79 : index
    %702 = memref.load %arg3[%c79] : memref<144xf32, #tpu.memory_space<smem>>
    %703 = vector.broadcast %702 : f32 to vector<16x16xf32>
    %704 = arith.mulf %703, %685 : vector<16x16xf32>
    %705 = arith.addf %671, %704 : vector<16x16xf32>
    %c97 = arith.constant 97 : index
    %706 = memref.load %arg3[%c97] : memref<144xf32, #tpu.memory_space<smem>>
    %707 = vector.broadcast %706 : f32 to vector<16x16xf32>
    %708 = arith.mulf %707, %685 : vector<16x16xf32>
    %709 = arith.addf %675, %708 : vector<16x16xf32>
    %c115 = arith.constant 115 : index
    %710 = memref.load %arg3[%c115] : memref<144xf32, #tpu.memory_space<smem>>
    %711 = vector.broadcast %710 : f32 to vector<16x16xf32>
    %712 = arith.mulf %711, %685 : vector<16x16xf32>
    %713 = arith.addf %679, %712 : vector<16x16xf32>
    %c133 = arith.constant 133 : index
    %714 = memref.load %arg3[%c133] : memref<144xf32, #tpu.memory_space<smem>>
    %715 = vector.broadcast %714 : f32 to vector<16x16xf32>
    %716 = arith.mulf %715, %685 : vector<16x16xf32>
    %717 = arith.addf %683, %716 : vector<16x16xf32>
    %c0_231 = arith.constant 0 : index
    %c2_232 = arith.constant 2 : index
    %c2_233 = arith.constant 2 : index
    %718 = vector.load %arg6[%c0_231, %c2_232, %c2_233] : memref<2x18x18xf32, #tpu.memory_space<vmem>>, vector<1x16x16xf32>
    %719 = vector.shape_cast %718 : vector<1x16x16xf32> to vector<16x16xf32>
    %c8_234 = arith.constant 8 : index
    %720 = memref.load %arg3[%c8_234] : memref<144xf32, #tpu.memory_space<smem>>
    %721 = vector.broadcast %720 : f32 to vector<16x16xf32>
    %722 = arith.mulf %721, %719 : vector<16x16xf32>
    %723 = arith.addf %689, %722 : vector<16x16xf32>
    %c26_235 = arith.constant 26 : index
    %724 = memref.load %arg3[%c26_235] : memref<144xf32, #tpu.memory_space<smem>>
    %725 = vector.broadcast %724 : f32 to vector<16x16xf32>
    %726 = arith.mulf %725, %719 : vector<16x16xf32>
    %727 = arith.addf %693, %726 : vector<16x16xf32>
    %c44_236 = arith.constant 44 : index
    %728 = memref.load %arg3[%c44_236] : memref<144xf32, #tpu.memory_space<smem>>
    %729 = vector.broadcast %728 : f32 to vector<16x16xf32>
    %730 = arith.mulf %729, %719 : vector<16x16xf32>
    %731 = arith.addf %697, %730 : vector<16x16xf32>
    %c62_237 = arith.constant 62 : index
    %732 = memref.load %arg3[%c62_237] : memref<144xf32, #tpu.memory_space<smem>>
    %733 = vector.broadcast %732 : f32 to vector<16x16xf32>
    %734 = arith.mulf %733, %719 : vector<16x16xf32>
    %735 = arith.addf %701, %734 : vector<16x16xf32>
    %c80 = arith.constant 80 : index
    %736 = memref.load %arg3[%c80] : memref<144xf32, #tpu.memory_space<smem>>
    %737 = vector.broadcast %736 : f32 to vector<16x16xf32>
    %738 = arith.mulf %737, %719 : vector<16x16xf32>
    %739 = arith.addf %705, %738 : vector<16x16xf32>
    %c98 = arith.constant 98 : index
    %740 = memref.load %arg3[%c98] : memref<144xf32, #tpu.memory_space<smem>>
    %741 = vector.broadcast %740 : f32 to vector<16x16xf32>
    %742 = arith.mulf %741, %719 : vector<16x16xf32>
    %743 = arith.addf %709, %742 : vector<16x16xf32>
    %c116 = arith.constant 116 : index
    %744 = memref.load %arg3[%c116] : memref<144xf32, #tpu.memory_space<smem>>
    %745 = vector.broadcast %744 : f32 to vector<16x16xf32>
    %746 = arith.mulf %745, %719 : vector<16x16xf32>
    %747 = arith.addf %713, %746 : vector<16x16xf32>
    %c134 = arith.constant 134 : index
    %748 = memref.load %arg3[%c134] : memref<144xf32, #tpu.memory_space<smem>>
    %749 = vector.broadcast %748 : f32 to vector<16x16xf32>
    %750 = arith.mulf %749, %719 : vector<16x16xf32>
    %751 = arith.addf %717, %750 : vector<16x16xf32>
    %c1_238 = arith.constant 1 : index
    %c0_239 = arith.constant 0 : index
    %c0_240 = arith.constant 0 : index
    %752 = vector.load %arg6[%c1_238, %c0_239, %c0_240] : memref<2x18x18xf32, #tpu.memory_space<vmem>>, vector<1x16x16xf32>
    %753 = vector.shape_cast %752 : vector<1x16x16xf32> to vector<16x16xf32>
    %c9_241 = arith.constant 9 : index
    %754 = memref.load %arg3[%c9_241] : memref<144xf32, #tpu.memory_space<smem>>
    %755 = vector.broadcast %754 : f32 to vector<16x16xf32>
    %756 = arith.mulf %755, %753 : vector<16x16xf32>
    %757 = arith.addf %723, %756 : vector<16x16xf32>
    %c27_242 = arith.constant 27 : index
    %758 = memref.load %arg3[%c27_242] : memref<144xf32, #tpu.memory_space<smem>>
    %759 = vector.broadcast %758 : f32 to vector<16x16xf32>
    %760 = arith.mulf %759, %753 : vector<16x16xf32>
    %761 = arith.addf %727, %760 : vector<16x16xf32>
    %c45_243 = arith.constant 45 : index
    %762 = memref.load %arg3[%c45_243] : memref<144xf32, #tpu.memory_space<smem>>
    %763 = vector.broadcast %762 : f32 to vector<16x16xf32>
    %764 = arith.mulf %763, %753 : vector<16x16xf32>
    %765 = arith.addf %731, %764 : vector<16x16xf32>
    %c63_244 = arith.constant 63 : index
    %766 = memref.load %arg3[%c63_244] : memref<144xf32, #tpu.memory_space<smem>>
    %767 = vector.broadcast %766 : f32 to vector<16x16xf32>
    %768 = arith.mulf %767, %753 : vector<16x16xf32>
    %769 = arith.addf %735, %768 : vector<16x16xf32>
    %c81 = arith.constant 81 : index
    %770 = memref.load %arg3[%c81] : memref<144xf32, #tpu.memory_space<smem>>
    %771 = vector.broadcast %770 : f32 to vector<16x16xf32>
    %772 = arith.mulf %771, %753 : vector<16x16xf32>
    %773 = arith.addf %739, %772 : vector<16x16xf32>
    %c99 = arith.constant 99 : index
    %774 = memref.load %arg3[%c99] : memref<144xf32, #tpu.memory_space<smem>>
    %775 = vector.broadcast %774 : f32 to vector<16x16xf32>
    %776 = arith.mulf %775, %753 : vector<16x16xf32>
    %777 = arith.addf %743, %776 : vector<16x16xf32>
    %c117 = arith.constant 117 : index
    %778 = memref.load %arg3[%c117] : memref<144xf32, #tpu.memory_space<smem>>
    %779 = vector.broadcast %778 : f32 to vector<16x16xf32>
    %780 = arith.mulf %779, %753 : vector<16x16xf32>
    %781 = arith.addf %747, %780 : vector<16x16xf32>
    %c135 = arith.constant 135 : index
    %782 = memref.load %arg3[%c135] : memref<144xf32, #tpu.memory_space<smem>>
    %783 = vector.broadcast %782 : f32 to vector<16x16xf32>
    %784 = arith.mulf %783, %753 : vector<16x16xf32>
    %785 = arith.addf %751, %784 : vector<16x16xf32>
    %c1_245 = arith.constant 1 : index
    %c0_246 = arith.constant 0 : index
    %c1_247 = arith.constant 1 : index
    %786 = vector.load %arg6[%c1_245, %c0_246, %c1_247] : memref<2x18x18xf32, #tpu.memory_space<vmem>>, vector<1x16x16xf32>
    %787 = vector.shape_cast %786 : vector<1x16x16xf32> to vector<16x16xf32>
    %c10_248 = arith.constant 10 : index
    %788 = memref.load %arg3[%c10_248] : memref<144xf32, #tpu.memory_space<smem>>
    %789 = vector.broadcast %788 : f32 to vector<16x16xf32>
    %790 = arith.mulf %789, %787 : vector<16x16xf32>
    %791 = arith.addf %757, %790 : vector<16x16xf32>
    %c28_249 = arith.constant 28 : index
    %792 = memref.load %arg3[%c28_249] : memref<144xf32, #tpu.memory_space<smem>>
    %793 = vector.broadcast %792 : f32 to vector<16x16xf32>
    %794 = arith.mulf %793, %787 : vector<16x16xf32>
    %795 = arith.addf %761, %794 : vector<16x16xf32>
    %c46_250 = arith.constant 46 : index
    %796 = memref.load %arg3[%c46_250] : memref<144xf32, #tpu.memory_space<smem>>
    %797 = vector.broadcast %796 : f32 to vector<16x16xf32>
    %798 = arith.mulf %797, %787 : vector<16x16xf32>
    %799 = arith.addf %765, %798 : vector<16x16xf32>
    %c64_251 = arith.constant 64 : index
    %800 = memref.load %arg3[%c64_251] : memref<144xf32, #tpu.memory_space<smem>>
    %801 = vector.broadcast %800 : f32 to vector<16x16xf32>
    %802 = arith.mulf %801, %787 : vector<16x16xf32>
    %803 = arith.addf %769, %802 : vector<16x16xf32>
    %c82 = arith.constant 82 : index
    %804 = memref.load %arg3[%c82] : memref<144xf32, #tpu.memory_space<smem>>
    %805 = vector.broadcast %804 : f32 to vector<16x16xf32>
    %806 = arith.mulf %805, %787 : vector<16x16xf32>
    %807 = arith.addf %773, %806 : vector<16x16xf32>
    %c100 = arith.constant 100 : index
    %808 = memref.load %arg3[%c100] : memref<144xf32, #tpu.memory_space<smem>>
    %809 = vector.broadcast %808 : f32 to vector<16x16xf32>
    %810 = arith.mulf %809, %787 : vector<16x16xf32>
    %811 = arith.addf %777, %810 : vector<16x16xf32>
    %c118 = arith.constant 118 : index
    %812 = memref.load %arg3[%c118] : memref<144xf32, #tpu.memory_space<smem>>
    %813 = vector.broadcast %812 : f32 to vector<16x16xf32>
    %814 = arith.mulf %813, %787 : vector<16x16xf32>
    %815 = arith.addf %781, %814 : vector<16x16xf32>
    %c136 = arith.constant 136 : index
    %816 = memref.load %arg3[%c136] : memref<144xf32, #tpu.memory_space<smem>>
    %817 = vector.broadcast %816 : f32 to vector<16x16xf32>
    %818 = arith.mulf %817, %787 : vector<16x16xf32>
    %819 = arith.addf %785, %818 : vector<16x16xf32>
    %c1_252 = arith.constant 1 : index
    %c0_253 = arith.constant 0 : index
    %c2_254 = arith.constant 2 : index
    %820 = vector.load %arg6[%c1_252, %c0_253, %c2_254] : memref<2x18x18xf32, #tpu.memory_space<vmem>>, vector<1x16x16xf32>
    %821 = vector.shape_cast %820 : vector<1x16x16xf32> to vector<16x16xf32>
    %c11_255 = arith.constant 11 : index
    %822 = memref.load %arg3[%c11_255] : memref<144xf32, #tpu.memory_space<smem>>
    %823 = vector.broadcast %822 : f32 to vector<16x16xf32>
    %824 = arith.mulf %823, %821 : vector<16x16xf32>
    %825 = arith.addf %791, %824 : vector<16x16xf32>
    %c29_256 = arith.constant 29 : index
    %826 = memref.load %arg3[%c29_256] : memref<144xf32, #tpu.memory_space<smem>>
    %827 = vector.broadcast %826 : f32 to vector<16x16xf32>
    %828 = arith.mulf %827, %821 : vector<16x16xf32>
    %829 = arith.addf %795, %828 : vector<16x16xf32>
    %c47_257 = arith.constant 47 : index
    %830 = memref.load %arg3[%c47_257] : memref<144xf32, #tpu.memory_space<smem>>
    %831 = vector.broadcast %830 : f32 to vector<16x16xf32>
    %832 = arith.mulf %831, %821 : vector<16x16xf32>
    %833 = arith.addf %799, %832 : vector<16x16xf32>
    %c65_258 = arith.constant 65 : index
    %834 = memref.load %arg3[%c65_258] : memref<144xf32, #tpu.memory_space<smem>>
    %835 = vector.broadcast %834 : f32 to vector<16x16xf32>
    %836 = arith.mulf %835, %821 : vector<16x16xf32>
    %837 = arith.addf %803, %836 : vector<16x16xf32>
    %c83 = arith.constant 83 : index
    %838 = memref.load %arg3[%c83] : memref<144xf32, #tpu.memory_space<smem>>
    %839 = vector.broadcast %838 : f32 to vector<16x16xf32>
    %840 = arith.mulf %839, %821 : vector<16x16xf32>
    %841 = arith.addf %807, %840 : vector<16x16xf32>
    %c101 = arith.constant 101 : index
    %842 = memref.load %arg3[%c101] : memref<144xf32, #tpu.memory_space<smem>>
    %843 = vector.broadcast %842 : f32 to vector<16x16xf32>
    %844 = arith.mulf %843, %821 : vector<16x16xf32>
    %845 = arith.addf %811, %844 : vector<16x16xf32>
    %c119 = arith.constant 119 : index
    %846 = memref.load %arg3[%c119] : memref<144xf32, #tpu.memory_space<smem>>
    %847 = vector.broadcast %846 : f32 to vector<16x16xf32>
    %848 = arith.mulf %847, %821 : vector<16x16xf32>
    %849 = arith.addf %815, %848 : vector<16x16xf32>
    %c137 = arith.constant 137 : index
    %850 = memref.load %arg3[%c137] : memref<144xf32, #tpu.memory_space<smem>>
    %851 = vector.broadcast %850 : f32 to vector<16x16xf32>
    %852 = arith.mulf %851, %821 : vector<16x16xf32>
    %853 = arith.addf %819, %852 : vector<16x16xf32>
    %c1_259 = arith.constant 1 : index
    %c1_260 = arith.constant 1 : index
    %c0_261 = arith.constant 0 : index
    %854 = vector.load %arg6[%c1_259, %c1_260, %c0_261] : memref<2x18x18xf32, #tpu.memory_space<vmem>>, vector<1x16x16xf32>
    %855 = vector.shape_cast %854 : vector<1x16x16xf32> to vector<16x16xf32>
    %c12_262 = arith.constant 12 : index
    %856 = memref.load %arg3[%c12_262] : memref<144xf32, #tpu.memory_space<smem>>
    %857 = vector.broadcast %856 : f32 to vector<16x16xf32>
    %858 = arith.mulf %857, %855 : vector<16x16xf32>
    %859 = arith.addf %825, %858 : vector<16x16xf32>
    %c30_263 = arith.constant 30 : index
    %860 = memref.load %arg3[%c30_263] : memref<144xf32, #tpu.memory_space<smem>>
    %861 = vector.broadcast %860 : f32 to vector<16x16xf32>
    %862 = arith.mulf %861, %855 : vector<16x16xf32>
    %863 = arith.addf %829, %862 : vector<16x16xf32>
    %c48_264 = arith.constant 48 : index
    %864 = memref.load %arg3[%c48_264] : memref<144xf32, #tpu.memory_space<smem>>
    %865 = vector.broadcast %864 : f32 to vector<16x16xf32>
    %866 = arith.mulf %865, %855 : vector<16x16xf32>
    %867 = arith.addf %833, %866 : vector<16x16xf32>
    %c66_265 = arith.constant 66 : index
    %868 = memref.load %arg3[%c66_265] : memref<144xf32, #tpu.memory_space<smem>>
    %869 = vector.broadcast %868 : f32 to vector<16x16xf32>
    %870 = arith.mulf %869, %855 : vector<16x16xf32>
    %871 = arith.addf %837, %870 : vector<16x16xf32>
    %c84 = arith.constant 84 : index
    %872 = memref.load %arg3[%c84] : memref<144xf32, #tpu.memory_space<smem>>
    %873 = vector.broadcast %872 : f32 to vector<16x16xf32>
    %874 = arith.mulf %873, %855 : vector<16x16xf32>
    %875 = arith.addf %841, %874 : vector<16x16xf32>
    %c102 = arith.constant 102 : index
    %876 = memref.load %arg3[%c102] : memref<144xf32, #tpu.memory_space<smem>>
    %877 = vector.broadcast %876 : f32 to vector<16x16xf32>
    %878 = arith.mulf %877, %855 : vector<16x16xf32>
    %879 = arith.addf %845, %878 : vector<16x16xf32>
    %c120 = arith.constant 120 : index
    %880 = memref.load %arg3[%c120] : memref<144xf32, #tpu.memory_space<smem>>
    %881 = vector.broadcast %880 : f32 to vector<16x16xf32>
    %882 = arith.mulf %881, %855 : vector<16x16xf32>
    %883 = arith.addf %849, %882 : vector<16x16xf32>
    %c138 = arith.constant 138 : index
    %884 = memref.load %arg3[%c138] : memref<144xf32, #tpu.memory_space<smem>>
    %885 = vector.broadcast %884 : f32 to vector<16x16xf32>
    %886 = arith.mulf %885, %855 : vector<16x16xf32>
    %887 = arith.addf %853, %886 : vector<16x16xf32>
    %c1_266 = arith.constant 1 : index
    %c1_267 = arith.constant 1 : index
    %c1_268 = arith.constant 1 : index
    %888 = vector.load %arg6[%c1_266, %c1_267, %c1_268] : memref<2x18x18xf32, #tpu.memory_space<vmem>>, vector<1x16x16xf32>
    %889 = vector.shape_cast %888 : vector<1x16x16xf32> to vector<16x16xf32>
    %c13_269 = arith.constant 13 : index
    %890 = memref.load %arg3[%c13_269] : memref<144xf32, #tpu.memory_space<smem>>
    %891 = vector.broadcast %890 : f32 to vector<16x16xf32>
    %892 = arith.mulf %891, %889 : vector<16x16xf32>
    %893 = arith.addf %859, %892 : vector<16x16xf32>
    %c31_270 = arith.constant 31 : index
    %894 = memref.load %arg3[%c31_270] : memref<144xf32, #tpu.memory_space<smem>>
    %895 = vector.broadcast %894 : f32 to vector<16x16xf32>
    %896 = arith.mulf %895, %889 : vector<16x16xf32>
    %897 = arith.addf %863, %896 : vector<16x16xf32>
    %c49_271 = arith.constant 49 : index
    %898 = memref.load %arg3[%c49_271] : memref<144xf32, #tpu.memory_space<smem>>
    %899 = vector.broadcast %898 : f32 to vector<16x16xf32>
    %900 = arith.mulf %899, %889 : vector<16x16xf32>
    %901 = arith.addf %867, %900 : vector<16x16xf32>
    %c67_272 = arith.constant 67 : index
    %902 = memref.load %arg3[%c67_272] : memref<144xf32, #tpu.memory_space<smem>>
    %903 = vector.broadcast %902 : f32 to vector<16x16xf32>
    %904 = arith.mulf %903, %889 : vector<16x16xf32>
    %905 = arith.addf %871, %904 : vector<16x16xf32>
    %c85 = arith.constant 85 : index
    %906 = memref.load %arg3[%c85] : memref<144xf32, #tpu.memory_space<smem>>
    %907 = vector.broadcast %906 : f32 to vector<16x16xf32>
    %908 = arith.mulf %907, %889 : vector<16x16xf32>
    %909 = arith.addf %875, %908 : vector<16x16xf32>
    %c103 = arith.constant 103 : index
    %910 = memref.load %arg3[%c103] : memref<144xf32, #tpu.memory_space<smem>>
    %911 = vector.broadcast %910 : f32 to vector<16x16xf32>
    %912 = arith.mulf %911, %889 : vector<16x16xf32>
    %913 = arith.addf %879, %912 : vector<16x16xf32>
    %c121 = arith.constant 121 : index
    %914 = memref.load %arg3[%c121] : memref<144xf32, #tpu.memory_space<smem>>
    %915 = vector.broadcast %914 : f32 to vector<16x16xf32>
    %916 = arith.mulf %915, %889 : vector<16x16xf32>
    %917 = arith.addf %883, %916 : vector<16x16xf32>
    %c139 = arith.constant 139 : index
    %918 = memref.load %arg3[%c139] : memref<144xf32, #tpu.memory_space<smem>>
    %919 = vector.broadcast %918 : f32 to vector<16x16xf32>
    %920 = arith.mulf %919, %889 : vector<16x16xf32>
    %921 = arith.addf %887, %920 : vector<16x16xf32>
    %c1_273 = arith.constant 1 : index
    %c1_274 = arith.constant 1 : index
    %c2_275 = arith.constant 2 : index
    %922 = vector.load %arg6[%c1_273, %c1_274, %c2_275] : memref<2x18x18xf32, #tpu.memory_space<vmem>>, vector<1x16x16xf32>
    %923 = vector.shape_cast %922 : vector<1x16x16xf32> to vector<16x16xf32>
    %c14_276 = arith.constant 14 : index
    %924 = memref.load %arg3[%c14_276] : memref<144xf32, #tpu.memory_space<smem>>
    %925 = vector.broadcast %924 : f32 to vector<16x16xf32>
    %926 = arith.mulf %925, %923 : vector<16x16xf32>
    %927 = arith.addf %893, %926 : vector<16x16xf32>
    %c32_277 = arith.constant 32 : index
    %928 = memref.load %arg3[%c32_277] : memref<144xf32, #tpu.memory_space<smem>>
    %929 = vector.broadcast %928 : f32 to vector<16x16xf32>
    %930 = arith.mulf %929, %923 : vector<16x16xf32>
    %931 = arith.addf %897, %930 : vector<16x16xf32>
    %c50_278 = arith.constant 50 : index
    %932 = memref.load %arg3[%c50_278] : memref<144xf32, #tpu.memory_space<smem>>
    %933 = vector.broadcast %932 : f32 to vector<16x16xf32>
    %934 = arith.mulf %933, %923 : vector<16x16xf32>
    %935 = arith.addf %901, %934 : vector<16x16xf32>
    %c68_279 = arith.constant 68 : index
    %936 = memref.load %arg3[%c68_279] : memref<144xf32, #tpu.memory_space<smem>>
    %937 = vector.broadcast %936 : f32 to vector<16x16xf32>
    %938 = arith.mulf %937, %923 : vector<16x16xf32>
    %939 = arith.addf %905, %938 : vector<16x16xf32>
    %c86 = arith.constant 86 : index
    %940 = memref.load %arg3[%c86] : memref<144xf32, #tpu.memory_space<smem>>
    %941 = vector.broadcast %940 : f32 to vector<16x16xf32>
    %942 = arith.mulf %941, %923 : vector<16x16xf32>
    %943 = arith.addf %909, %942 : vector<16x16xf32>
    %c104 = arith.constant 104 : index
    %944 = memref.load %arg3[%c104] : memref<144xf32, #tpu.memory_space<smem>>
    %945 = vector.broadcast %944 : f32 to vector<16x16xf32>
    %946 = arith.mulf %945, %923 : vector<16x16xf32>
    %947 = arith.addf %913, %946 : vector<16x16xf32>
    %c122 = arith.constant 122 : index
    %948 = memref.load %arg3[%c122] : memref<144xf32, #tpu.memory_space<smem>>
    %949 = vector.broadcast %948 : f32 to vector<16x16xf32>
    %950 = arith.mulf %949, %923 : vector<16x16xf32>
    %951 = arith.addf %917, %950 : vector<16x16xf32>
    %c140 = arith.constant 140 : index
    %952 = memref.load %arg3[%c140] : memref<144xf32, #tpu.memory_space<smem>>
    %953 = vector.broadcast %952 : f32 to vector<16x16xf32>
    %954 = arith.mulf %953, %923 : vector<16x16xf32>
    %955 = arith.addf %921, %954 : vector<16x16xf32>
    %c1_280 = arith.constant 1 : index
    %c2_281 = arith.constant 2 : index
    %c0_282 = arith.constant 0 : index
    %956 = vector.load %arg6[%c1_280, %c2_281, %c0_282] : memref<2x18x18xf32, #tpu.memory_space<vmem>>, vector<1x16x16xf32>
    %957 = vector.shape_cast %956 : vector<1x16x16xf32> to vector<16x16xf32>
    %c15_283 = arith.constant 15 : index
    %958 = memref.load %arg3[%c15_283] : memref<144xf32, #tpu.memory_space<smem>>
    %959 = vector.broadcast %958 : f32 to vector<16x16xf32>
    %960 = arith.mulf %959, %957 : vector<16x16xf32>
    %961 = arith.addf %927, %960 : vector<16x16xf32>
    %c33_284 = arith.constant 33 : index
    %962 = memref.load %arg3[%c33_284] : memref<144xf32, #tpu.memory_space<smem>>
    %963 = vector.broadcast %962 : f32 to vector<16x16xf32>
    %964 = arith.mulf %963, %957 : vector<16x16xf32>
    %965 = arith.addf %931, %964 : vector<16x16xf32>
    %c51_285 = arith.constant 51 : index
    %966 = memref.load %arg3[%c51_285] : memref<144xf32, #tpu.memory_space<smem>>
    %967 = vector.broadcast %966 : f32 to vector<16x16xf32>
    %968 = arith.mulf %967, %957 : vector<16x16xf32>
    %969 = arith.addf %935, %968 : vector<16x16xf32>
    %c69_286 = arith.constant 69 : index
    %970 = memref.load %arg3[%c69_286] : memref<144xf32, #tpu.memory_space<smem>>
    %971 = vector.broadcast %970 : f32 to vector<16x16xf32>
    %972 = arith.mulf %971, %957 : vector<16x16xf32>
    %973 = arith.addf %939, %972 : vector<16x16xf32>
    %c87 = arith.constant 87 : index
    %974 = memref.load %arg3[%c87] : memref<144xf32, #tpu.memory_space<smem>>
    %975 = vector.broadcast %974 : f32 to vector<16x16xf32>
    %976 = arith.mulf %975, %957 : vector<16x16xf32>
    %977 = arith.addf %943, %976 : vector<16x16xf32>
    %c105 = arith.constant 105 : index
    %978 = memref.load %arg3[%c105] : memref<144xf32, #tpu.memory_space<smem>>
    %979 = vector.broadcast %978 : f32 to vector<16x16xf32>
    %980 = arith.mulf %979, %957 : vector<16x16xf32>
    %981 = arith.addf %947, %980 : vector<16x16xf32>
    %c123 = arith.constant 123 : index
    %982 = memref.load %arg3[%c123] : memref<144xf32, #tpu.memory_space<smem>>
    %983 = vector.broadcast %982 : f32 to vector<16x16xf32>
    %984 = arith.mulf %983, %957 : vector<16x16xf32>
    %985 = arith.addf %951, %984 : vector<16x16xf32>
    %c141 = arith.constant 141 : index
    %986 = memref.load %arg3[%c141] : memref<144xf32, #tpu.memory_space<smem>>
    %987 = vector.broadcast %986 : f32 to vector<16x16xf32>
    %988 = arith.mulf %987, %957 : vector<16x16xf32>
    %989 = arith.addf %955, %988 : vector<16x16xf32>
    %c1_287 = arith.constant 1 : index
    %c2_288 = arith.constant 2 : index
    %c1_289 = arith.constant 1 : index
    %990 = vector.load %arg6[%c1_287, %c2_288, %c1_289] : memref<2x18x18xf32, #tpu.memory_space<vmem>>, vector<1x16x16xf32>
    %991 = vector.shape_cast %990 : vector<1x16x16xf32> to vector<16x16xf32>
    %c16_290 = arith.constant 16 : index
    %992 = memref.load %arg3[%c16_290] : memref<144xf32, #tpu.memory_space<smem>>
    %993 = vector.broadcast %992 : f32 to vector<16x16xf32>
    %994 = arith.mulf %993, %991 : vector<16x16xf32>
    %995 = arith.addf %961, %994 : vector<16x16xf32>
    %c34_291 = arith.constant 34 : index
    %996 = memref.load %arg3[%c34_291] : memref<144xf32, #tpu.memory_space<smem>>
    %997 = vector.broadcast %996 : f32 to vector<16x16xf32>
    %998 = arith.mulf %997, %991 : vector<16x16xf32>
    %999 = arith.addf %965, %998 : vector<16x16xf32>
    %c52_292 = arith.constant 52 : index
    %1000 = memref.load %arg3[%c52_292] : memref<144xf32, #tpu.memory_space<smem>>
    %1001 = vector.broadcast %1000 : f32 to vector<16x16xf32>
    %1002 = arith.mulf %1001, %991 : vector<16x16xf32>
    %1003 = arith.addf %969, %1002 : vector<16x16xf32>
    %c70_293 = arith.constant 70 : index
    %1004 = memref.load %arg3[%c70_293] : memref<144xf32, #tpu.memory_space<smem>>
    %1005 = vector.broadcast %1004 : f32 to vector<16x16xf32>
    %1006 = arith.mulf %1005, %991 : vector<16x16xf32>
    %1007 = arith.addf %973, %1006 : vector<16x16xf32>
    %c88 = arith.constant 88 : index
    %1008 = memref.load %arg3[%c88] : memref<144xf32, #tpu.memory_space<smem>>
    %1009 = vector.broadcast %1008 : f32 to vector<16x16xf32>
    %1010 = arith.mulf %1009, %991 : vector<16x16xf32>
    %1011 = arith.addf %977, %1010 : vector<16x16xf32>
    %c106 = arith.constant 106 : index
    %1012 = memref.load %arg3[%c106] : memref<144xf32, #tpu.memory_space<smem>>
    %1013 = vector.broadcast %1012 : f32 to vector<16x16xf32>
    %1014 = arith.mulf %1013, %991 : vector<16x16xf32>
    %1015 = arith.addf %981, %1014 : vector<16x16xf32>
    %c124 = arith.constant 124 : index
    %1016 = memref.load %arg3[%c124] : memref<144xf32, #tpu.memory_space<smem>>
    %1017 = vector.broadcast %1016 : f32 to vector<16x16xf32>
    %1018 = arith.mulf %1017, %991 : vector<16x16xf32>
    %1019 = arith.addf %985, %1018 : vector<16x16xf32>
    %c142 = arith.constant 142 : index
    %1020 = memref.load %arg3[%c142] : memref<144xf32, #tpu.memory_space<smem>>
    %1021 = vector.broadcast %1020 : f32 to vector<16x16xf32>
    %1022 = arith.mulf %1021, %991 : vector<16x16xf32>
    %1023 = arith.addf %989, %1022 : vector<16x16xf32>
    %c1_294 = arith.constant 1 : index
    %c2_295 = arith.constant 2 : index
    %c2_296 = arith.constant 2 : index
    %1024 = vector.load %arg6[%c1_294, %c2_295, %c2_296] : memref<2x18x18xf32, #tpu.memory_space<vmem>>, vector<1x16x16xf32>
    %1025 = vector.shape_cast %1024 : vector<1x16x16xf32> to vector<16x16xf32>
    %c17_297 = arith.constant 17 : index
    %1026 = memref.load %arg3[%c17_297] : memref<144xf32, #tpu.memory_space<smem>>
    %1027 = vector.broadcast %1026 : f32 to vector<16x16xf32>
    %1028 = arith.mulf %1027, %1025 : vector<16x16xf32>
    %1029 = arith.addf %995, %1028 : vector<16x16xf32>
    %c35_298 = arith.constant 35 : index
    %1030 = memref.load %arg3[%c35_298] : memref<144xf32, #tpu.memory_space<smem>>
    %1031 = vector.broadcast %1030 : f32 to vector<16x16xf32>
    %1032 = arith.mulf %1031, %1025 : vector<16x16xf32>
    %1033 = arith.addf %999, %1032 : vector<16x16xf32>
    %c53_299 = arith.constant 53 : index
    %1034 = memref.load %arg3[%c53_299] : memref<144xf32, #tpu.memory_space<smem>>
    %1035 = vector.broadcast %1034 : f32 to vector<16x16xf32>
    %1036 = arith.mulf %1035, %1025 : vector<16x16xf32>
    %1037 = arith.addf %1003, %1036 : vector<16x16xf32>
    %c71_300 = arith.constant 71 : index
    %1038 = memref.load %arg3[%c71_300] : memref<144xf32, #tpu.memory_space<smem>>
    %1039 = vector.broadcast %1038 : f32 to vector<16x16xf32>
    %1040 = arith.mulf %1039, %1025 : vector<16x16xf32>
    %1041 = arith.addf %1007, %1040 : vector<16x16xf32>
    %c89 = arith.constant 89 : index
    %1042 = memref.load %arg3[%c89] : memref<144xf32, #tpu.memory_space<smem>>
    %1043 = vector.broadcast %1042 : f32 to vector<16x16xf32>
    %1044 = arith.mulf %1043, %1025 : vector<16x16xf32>
    %1045 = arith.addf %1011, %1044 : vector<16x16xf32>
    %c107 = arith.constant 107 : index
    %1046 = memref.load %arg3[%c107] : memref<144xf32, #tpu.memory_space<smem>>
    %1047 = vector.broadcast %1046 : f32 to vector<16x16xf32>
    %1048 = arith.mulf %1047, %1025 : vector<16x16xf32>
    %1049 = arith.addf %1015, %1048 : vector<16x16xf32>
    %c125 = arith.constant 125 : index
    %1050 = memref.load %arg3[%c125] : memref<144xf32, #tpu.memory_space<smem>>
    %1051 = vector.broadcast %1050 : f32 to vector<16x16xf32>
    %1052 = arith.mulf %1051, %1025 : vector<16x16xf32>
    %1053 = arith.addf %1019, %1052 : vector<16x16xf32>
    %c143 = arith.constant 143 : index
    %1054 = memref.load %arg3[%c143] : memref<144xf32, #tpu.memory_space<smem>>
    %1055 = vector.broadcast %1054 : f32 to vector<16x16xf32>
    %1056 = arith.mulf %1055, %1025 : vector<16x16xf32>
    %1057 = arith.addf %1023, %1056 : vector<16x16xf32>
    %cst_301 = arith.constant dense<0.000000e+00> : vector<16xf32>
    %1058 = vector.multi_reduction <add>, %1029, %cst_301 [1] : vector<16x16xf32> to vector<16xf32>
    %1059 = vector.shape_cast %1058 : vector<16xf32> to vector<16x1xf32>
    %cst_302 = arith.constant dense<0.000000e+00> : vector<1xf32>
    %1060 = vector.multi_reduction <add>, %1059, %cst_302 [0] : vector<16x1xf32> to vector<1xf32>
    %1061 = vector.shape_cast %1060 : vector<1xf32> to vector<1x1xf32>
    %cst_303 = arith.constant 3.906250e-03 : f32
    %1062 = vector.broadcast %cst_303 : f32 to vector<1x1xf32>
    %1063 = arith.mulf %1061, %1062 : vector<1x1xf32>
    %1064 = vector.broadcast %1063 : vector<1x1xf32> to vector<16x16xf32>
    %1065 = arith.subf %1029, %1064 : vector<16x16xf32>
    %1066 = arith.mulf %1065, %1065 : vector<16x16xf32>
    %cst_304 = arith.constant dense<0.000000e+00> : vector<16xf32>
    %1067 = vector.multi_reduction <add>, %1066, %cst_304 [1] : vector<16x16xf32> to vector<16xf32>
    %1068 = vector.shape_cast %1067 : vector<16xf32> to vector<16x1xf32>
    %cst_305 = arith.constant dense<0.000000e+00> : vector<1xf32>
    %1069 = vector.multi_reduction <add>, %1068, %cst_305 [0] : vector<16x1xf32> to vector<1xf32>
    %1070 = vector.shape_cast %1069 : vector<1xf32> to vector<1x1xf32>
    %cst_306 = arith.constant 3.906250e-03 : f32
    %1071 = vector.broadcast %cst_306 : f32 to vector<1x1xf32>
    %1072 = arith.mulf %1070, %1071 : vector<1x1xf32>
    %cst_307 = arith.constant 9.99999974E-6 : f32
    %1073 = vector.broadcast %cst_307 : f32 to vector<1x1xf32>
    %1074 = arith.addf %1072, %1073 : vector<1x1xf32>
    %1075 = math.rsqrt %1074 : vector<1x1xf32>
    %1076 = vector.broadcast %1075 : vector<1x1xf32> to vector<16x16xf32>
    %1077 = arith.mulf %1065, %1076 : vector<16x16xf32>
    %cst_308 = arith.constant 2.000000e-01 : f32
    %1078 = vector.broadcast %cst_308 : f32 to vector<16x16xf32>
    %1079 = arith.mulf %1078, %1077 : vector<16x16xf32>
    %1080 = arith.maximumf %1077, %1079 : vector<16x16xf32>
    %cst_309 = arith.constant dense<0.000000e+00> : vector<16xf32>
    %1081 = vector.multi_reduction <add>, %1033, %cst_309 [1] : vector<16x16xf32> to vector<16xf32>
    %1082 = vector.shape_cast %1081 : vector<16xf32> to vector<16x1xf32>
    %cst_310 = arith.constant dense<0.000000e+00> : vector<1xf32>
    %1083 = vector.multi_reduction <add>, %1082, %cst_310 [0] : vector<16x1xf32> to vector<1xf32>
    %1084 = vector.shape_cast %1083 : vector<1xf32> to vector<1x1xf32>
    %cst_311 = arith.constant 3.906250e-03 : f32
    %1085 = vector.broadcast %cst_311 : f32 to vector<1x1xf32>
    %1086 = arith.mulf %1084, %1085 : vector<1x1xf32>
    %1087 = vector.broadcast %1086 : vector<1x1xf32> to vector<16x16xf32>
    %1088 = arith.subf %1033, %1087 : vector<16x16xf32>
    %1089 = arith.mulf %1088, %1088 : vector<16x16xf32>
    %cst_312 = arith.constant dense<0.000000e+00> : vector<16xf32>
    %1090 = vector.multi_reduction <add>, %1089, %cst_312 [1] : vector<16x16xf32> to vector<16xf32>
    %1091 = vector.shape_cast %1090 : vector<16xf32> to vector<16x1xf32>
    %cst_313 = arith.constant dense<0.000000e+00> : vector<1xf32>
    %1092 = vector.multi_reduction <add>, %1091, %cst_313 [0] : vector<16x1xf32> to vector<1xf32>
    %1093 = vector.shape_cast %1092 : vector<1xf32> to vector<1x1xf32>
    %cst_314 = arith.constant 3.906250e-03 : f32
    %1094 = vector.broadcast %cst_314 : f32 to vector<1x1xf32>
    %1095 = arith.mulf %1093, %1094 : vector<1x1xf32>
    %cst_315 = arith.constant 9.99999974E-6 : f32
    %1096 = vector.broadcast %cst_315 : f32 to vector<1x1xf32>
    %1097 = arith.addf %1095, %1096 : vector<1x1xf32>
    %1098 = math.rsqrt %1097 : vector<1x1xf32>
    %1099 = vector.broadcast %1098 : vector<1x1xf32> to vector<16x16xf32>
    %1100 = arith.mulf %1088, %1099 : vector<16x16xf32>
    %cst_316 = arith.constant 2.000000e-01 : f32
    %1101 = vector.broadcast %cst_316 : f32 to vector<16x16xf32>
    %1102 = arith.mulf %1101, %1100 : vector<16x16xf32>
    %1103 = arith.maximumf %1100, %1102 : vector<16x16xf32>
    %cst_317 = arith.constant dense<0.000000e+00> : vector<16xf32>
    %1104 = vector.multi_reduction <add>, %1037, %cst_317 [1] : vector<16x16xf32> to vector<16xf32>
    %1105 = vector.shape_cast %1104 : vector<16xf32> to vector<16x1xf32>
    %cst_318 = arith.constant dense<0.000000e+00> : vector<1xf32>
    %1106 = vector.multi_reduction <add>, %1105, %cst_318 [0] : vector<16x1xf32> to vector<1xf32>
    %1107 = vector.shape_cast %1106 : vector<1xf32> to vector<1x1xf32>
    %cst_319 = arith.constant 3.906250e-03 : f32
    %1108 = vector.broadcast %cst_319 : f32 to vector<1x1xf32>
    %1109 = arith.mulf %1107, %1108 : vector<1x1xf32>
    %1110 = vector.broadcast %1109 : vector<1x1xf32> to vector<16x16xf32>
    %1111 = arith.subf %1037, %1110 : vector<16x16xf32>
    %1112 = arith.mulf %1111, %1111 : vector<16x16xf32>
    %cst_320 = arith.constant dense<0.000000e+00> : vector<16xf32>
    %1113 = vector.multi_reduction <add>, %1112, %cst_320 [1] : vector<16x16xf32> to vector<16xf32>
    %1114 = vector.shape_cast %1113 : vector<16xf32> to vector<16x1xf32>
    %cst_321 = arith.constant dense<0.000000e+00> : vector<1xf32>
    %1115 = vector.multi_reduction <add>, %1114, %cst_321 [0] : vector<16x1xf32> to vector<1xf32>
    %1116 = vector.shape_cast %1115 : vector<1xf32> to vector<1x1xf32>
    %cst_322 = arith.constant 3.906250e-03 : f32
    %1117 = vector.broadcast %cst_322 : f32 to vector<1x1xf32>
    %1118 = arith.mulf %1116, %1117 : vector<1x1xf32>
    %cst_323 = arith.constant 9.99999974E-6 : f32
    %1119 = vector.broadcast %cst_323 : f32 to vector<1x1xf32>
    %1120 = arith.addf %1118, %1119 : vector<1x1xf32>
    %1121 = math.rsqrt %1120 : vector<1x1xf32>
    %1122 = vector.broadcast %1121 : vector<1x1xf32> to vector<16x16xf32>
    %1123 = arith.mulf %1111, %1122 : vector<16x16xf32>
    %cst_324 = arith.constant 2.000000e-01 : f32
    %1124 = vector.broadcast %cst_324 : f32 to vector<16x16xf32>
    %1125 = arith.mulf %1124, %1123 : vector<16x16xf32>
    %1126 = arith.maximumf %1123, %1125 : vector<16x16xf32>
    %cst_325 = arith.constant dense<0.000000e+00> : vector<16xf32>
    %1127 = vector.multi_reduction <add>, %1041, %cst_325 [1] : vector<16x16xf32> to vector<16xf32>
    %1128 = vector.shape_cast %1127 : vector<16xf32> to vector<16x1xf32>
    %cst_326 = arith.constant dense<0.000000e+00> : vector<1xf32>
    %1129 = vector.multi_reduction <add>, %1128, %cst_326 [0] : vector<16x1xf32> to vector<1xf32>
    %1130 = vector.shape_cast %1129 : vector<1xf32> to vector<1x1xf32>
    %cst_327 = arith.constant 3.906250e-03 : f32
    %1131 = vector.broadcast %cst_327 : f32 to vector<1x1xf32>
    %1132 = arith.mulf %1130, %1131 : vector<1x1xf32>
    %1133 = vector.broadcast %1132 : vector<1x1xf32> to vector<16x16xf32>
    %1134 = arith.subf %1041, %1133 : vector<16x16xf32>
    %1135 = arith.mulf %1134, %1134 : vector<16x16xf32>
    %cst_328 = arith.constant dense<0.000000e+00> : vector<16xf32>
    %1136 = vector.multi_reduction <add>, %1135, %cst_328 [1] : vector<16x16xf32> to vector<16xf32>
    %1137 = vector.shape_cast %1136 : vector<16xf32> to vector<16x1xf32>
    %cst_329 = arith.constant dense<0.000000e+00> : vector<1xf32>
    %1138 = vector.multi_reduction <add>, %1137, %cst_329 [0] : vector<16x1xf32> to vector<1xf32>
    %1139 = vector.shape_cast %1138 : vector<1xf32> to vector<1x1xf32>
    %cst_330 = arith.constant 3.906250e-03 : f32
    %1140 = vector.broadcast %cst_330 : f32 to vector<1x1xf32>
    %1141 = arith.mulf %1139, %1140 : vector<1x1xf32>
    %cst_331 = arith.constant 9.99999974E-6 : f32
    %1142 = vector.broadcast %cst_331 : f32 to vector<1x1xf32>
    %1143 = arith.addf %1141, %1142 : vector<1x1xf32>
    %1144 = math.rsqrt %1143 : vector<1x1xf32>
    %1145 = vector.broadcast %1144 : vector<1x1xf32> to vector<16x16xf32>
    %1146 = arith.mulf %1134, %1145 : vector<16x16xf32>
    %cst_332 = arith.constant 2.000000e-01 : f32
    %1147 = vector.broadcast %cst_332 : f32 to vector<16x16xf32>
    %1148 = arith.mulf %1147, %1146 : vector<16x16xf32>
    %1149 = arith.maximumf %1146, %1148 : vector<16x16xf32>
    %cst_333 = arith.constant dense<0.000000e+00> : vector<16xf32>
    %1150 = vector.multi_reduction <add>, %1045, %cst_333 [1] : vector<16x16xf32> to vector<16xf32>
    %1151 = vector.shape_cast %1150 : vector<16xf32> to vector<16x1xf32>
    %cst_334 = arith.constant dense<0.000000e+00> : vector<1xf32>
    %1152 = vector.multi_reduction <add>, %1151, %cst_334 [0] : vector<16x1xf32> to vector<1xf32>
    %1153 = vector.shape_cast %1152 : vector<1xf32> to vector<1x1xf32>
    %cst_335 = arith.constant 3.906250e-03 : f32
    %1154 = vector.broadcast %cst_335 : f32 to vector<1x1xf32>
    %1155 = arith.mulf %1153, %1154 : vector<1x1xf32>
    %1156 = vector.broadcast %1155 : vector<1x1xf32> to vector<16x16xf32>
    %1157 = arith.subf %1045, %1156 : vector<16x16xf32>
    %1158 = arith.mulf %1157, %1157 : vector<16x16xf32>
    %cst_336 = arith.constant dense<0.000000e+00> : vector<16xf32>
    %1159 = vector.multi_reduction <add>, %1158, %cst_336 [1] : vector<16x16xf32> to vector<16xf32>
    %1160 = vector.shape_cast %1159 : vector<16xf32> to vector<16x1xf32>
    %cst_337 = arith.constant dense<0.000000e+00> : vector<1xf32>
    %1161 = vector.multi_reduction <add>, %1160, %cst_337 [0] : vector<16x1xf32> to vector<1xf32>
    %1162 = vector.shape_cast %1161 : vector<1xf32> to vector<1x1xf32>
    %cst_338 = arith.constant 3.906250e-03 : f32
    %1163 = vector.broadcast %cst_338 : f32 to vector<1x1xf32>
    %1164 = arith.mulf %1162, %1163 : vector<1x1xf32>
    %cst_339 = arith.constant 9.99999974E-6 : f32
    %1165 = vector.broadcast %cst_339 : f32 to vector<1x1xf32>
    %1166 = arith.addf %1164, %1165 : vector<1x1xf32>
    %1167 = math.rsqrt %1166 : vector<1x1xf32>
    %1168 = vector.broadcast %1167 : vector<1x1xf32> to vector<16x16xf32>
    %1169 = arith.mulf %1157, %1168 : vector<16x16xf32>
    %cst_340 = arith.constant 2.000000e-01 : f32
    %1170 = vector.broadcast %cst_340 : f32 to vector<16x16xf32>
    %1171 = arith.mulf %1170, %1169 : vector<16x16xf32>
    %1172 = arith.maximumf %1169, %1171 : vector<16x16xf32>
    %cst_341 = arith.constant dense<0.000000e+00> : vector<16xf32>
    %1173 = vector.multi_reduction <add>, %1049, %cst_341 [1] : vector<16x16xf32> to vector<16xf32>
    %1174 = vector.shape_cast %1173 : vector<16xf32> to vector<16x1xf32>
    %cst_342 = arith.constant dense<0.000000e+00> : vector<1xf32>
    %1175 = vector.multi_reduction <add>, %1174, %cst_342 [0] : vector<16x1xf32> to vector<1xf32>
    %1176 = vector.shape_cast %1175 : vector<1xf32> to vector<1x1xf32>
    %cst_343 = arith.constant 3.906250e-03 : f32
    %1177 = vector.broadcast %cst_343 : f32 to vector<1x1xf32>
    %1178 = arith.mulf %1176, %1177 : vector<1x1xf32>
    %1179 = vector.broadcast %1178 : vector<1x1xf32> to vector<16x16xf32>
    %1180 = arith.subf %1049, %1179 : vector<16x16xf32>
    %1181 = arith.mulf %1180, %1180 : vector<16x16xf32>
    %cst_344 = arith.constant dense<0.000000e+00> : vector<16xf32>
    %1182 = vector.multi_reduction <add>, %1181, %cst_344 [1] : vector<16x16xf32> to vector<16xf32>
    %1183 = vector.shape_cast %1182 : vector<16xf32> to vector<16x1xf32>
    %cst_345 = arith.constant dense<0.000000e+00> : vector<1xf32>
    %1184 = vector.multi_reduction <add>, %1183, %cst_345 [0] : vector<16x1xf32> to vector<1xf32>
    %1185 = vector.shape_cast %1184 : vector<1xf32> to vector<1x1xf32>
    %cst_346 = arith.constant 3.906250e-03 : f32
    %1186 = vector.broadcast %cst_346 : f32 to vector<1x1xf32>
    %1187 = arith.mulf %1185, %1186 : vector<1x1xf32>
    %cst_347 = arith.constant 9.99999974E-6 : f32
    %1188 = vector.broadcast %cst_347 : f32 to vector<1x1xf32>
    %1189 = arith.addf %1187, %1188 : vector<1x1xf32>
    %1190 = math.rsqrt %1189 : vector<1x1xf32>
    %1191 = vector.broadcast %1190 : vector<1x1xf32> to vector<16x16xf32>
    %1192 = arith.mulf %1180, %1191 : vector<16x16xf32>
    %cst_348 = arith.constant 2.000000e-01 : f32
    %1193 = vector.broadcast %cst_348 : f32 to vector<16x16xf32>
    %1194 = arith.mulf %1193, %1192 : vector<16x16xf32>
    %1195 = arith.maximumf %1192, %1194 : vector<16x16xf32>
    %cst_349 = arith.constant dense<0.000000e+00> : vector<16xf32>
    %1196 = vector.multi_reduction <add>, %1053, %cst_349 [1] : vector<16x16xf32> to vector<16xf32>
    %1197 = vector.shape_cast %1196 : vector<16xf32> to vector<16x1xf32>
    %cst_350 = arith.constant dense<0.000000e+00> : vector<1xf32>
    %1198 = vector.multi_reduction <add>, %1197, %cst_350 [0] : vector<16x1xf32> to vector<1xf32>
    %1199 = vector.shape_cast %1198 : vector<1xf32> to vector<1x1xf32>
    %cst_351 = arith.constant 3.906250e-03 : f32
    %1200 = vector.broadcast %cst_351 : f32 to vector<1x1xf32>
    %1201 = arith.mulf %1199, %1200 : vector<1x1xf32>
    %1202 = vector.broadcast %1201 : vector<1x1xf32> to vector<16x16xf32>
    %1203 = arith.subf %1053, %1202 : vector<16x16xf32>
    %1204 = arith.mulf %1203, %1203 : vector<16x16xf32>
    %cst_352 = arith.constant dense<0.000000e+00> : vector<16xf32>
    %1205 = vector.multi_reduction <add>, %1204, %cst_352 [1] : vector<16x16xf32> to vector<16xf32>
    %1206 = vector.shape_cast %1205 : vector<16xf32> to vector<16x1xf32>
    %cst_353 = arith.constant dense<0.000000e+00> : vector<1xf32>
    %1207 = vector.multi_reduction <add>, %1206, %cst_353 [0] : vector<16x1xf32> to vector<1xf32>
    %1208 = vector.shape_cast %1207 : vector<1xf32> to vector<1x1xf32>
    %cst_354 = arith.constant 3.906250e-03 : f32
    %1209 = vector.broadcast %cst_354 : f32 to vector<1x1xf32>
    %1210 = arith.mulf %1208, %1209 : vector<1x1xf32>
    %cst_355 = arith.constant 9.99999974E-6 : f32
    %1211 = vector.broadcast %cst_355 : f32 to vector<1x1xf32>
    %1212 = arith.addf %1210, %1211 : vector<1x1xf32>
    %1213 = math.rsqrt %1212 : vector<1x1xf32>
    %1214 = vector.broadcast %1213 : vector<1x1xf32> to vector<16x16xf32>
    %1215 = arith.mulf %1203, %1214 : vector<16x16xf32>
    %cst_356 = arith.constant 2.000000e-01 : f32
    %1216 = vector.broadcast %cst_356 : f32 to vector<16x16xf32>
    %1217 = arith.mulf %1216, %1215 : vector<16x16xf32>
    %1218 = arith.maximumf %1215, %1217 : vector<16x16xf32>
    %cst_357 = arith.constant dense<0.000000e+00> : vector<16xf32>
    %1219 = vector.multi_reduction <add>, %1057, %cst_357 [1] : vector<16x16xf32> to vector<16xf32>
    %1220 = vector.shape_cast %1219 : vector<16xf32> to vector<16x1xf32>
    %cst_358 = arith.constant dense<0.000000e+00> : vector<1xf32>
    %1221 = vector.multi_reduction <add>, %1220, %cst_358 [0] : vector<16x1xf32> to vector<1xf32>
    %1222 = vector.shape_cast %1221 : vector<1xf32> to vector<1x1xf32>
    %cst_359 = arith.constant 3.906250e-03 : f32
    %1223 = vector.broadcast %cst_359 : f32 to vector<1x1xf32>
    %1224 = arith.mulf %1222, %1223 : vector<1x1xf32>
    %1225 = vector.broadcast %1224 : vector<1x1xf32> to vector<16x16xf32>
    %1226 = arith.subf %1057, %1225 : vector<16x16xf32>
    %1227 = arith.mulf %1226, %1226 : vector<16x16xf32>
    %cst_360 = arith.constant dense<0.000000e+00> : vector<16xf32>
    %1228 = vector.multi_reduction <add>, %1227, %cst_360 [1] : vector<16x16xf32> to vector<16xf32>
    %1229 = vector.shape_cast %1228 : vector<16xf32> to vector<16x1xf32>
    %cst_361 = arith.constant dense<0.000000e+00> : vector<1xf32>
    %1230 = vector.multi_reduction <add>, %1229, %cst_361 [0] : vector<16x1xf32> to vector<1xf32>
    %1231 = vector.shape_cast %1230 : vector<1xf32> to vector<1x1xf32>
    %cst_362 = arith.constant 3.906250e-03 : f32
    %1232 = vector.broadcast %cst_362 : f32 to vector<1x1xf32>
    %1233 = arith.mulf %1231, %1232 : vector<1x1xf32>
    %cst_363 = arith.constant 9.99999974E-6 : f32
    %1234 = vector.broadcast %cst_363 : f32 to vector<1x1xf32>
    %1235 = arith.addf %1233, %1234 : vector<1x1xf32>
    %1236 = math.rsqrt %1235 : vector<1x1xf32>
    %1237 = vector.broadcast %1236 : vector<1x1xf32> to vector<16x16xf32>
    %1238 = arith.mulf %1226, %1237 : vector<16x16xf32>
    %cst_364 = arith.constant 2.000000e-01 : f32
    %1239 = vector.broadcast %cst_364 : f32 to vector<16x16xf32>
    %1240 = arith.mulf %1239, %1238 : vector<16x16xf32>
    %1241 = arith.maximumf %1238, %1240 : vector<16x16xf32>
    %c0_365 = arith.constant 0 : index
    %c0_366 = arith.constant 0 : index
    %c0_367 = arith.constant 0 : index
    %c0_368 = arith.constant 0 : index
    %1242 = vector.load %arg4[%c0_365, %c0_366, %c0_367, %c0_368] : memref<1x8x16x16xf32, #tpu.memory_space<vmem>>, vector<1x1x16x16xf32>
    %1243 = vector.shape_cast %1242 : vector<1x1x16x16xf32> to vector<16x16xf32>
    %1244 = vector.shape_cast %1080 : vector<16x16xf32> to vector<1x1x16x16xf32>
    tpu.vector_store %arg4[%c0_365, %c0_366, %c0_367, %c0_368], %1244 {strides = array<i32>} : memref<1x8x16x16xf32, #tpu.memory_space<vmem>>, vector<1x1x16x16xf32>,
    %c0_369 = arith.constant 0 : index
    %c1_370 = arith.constant 1 : index
    %c0_371 = arith.constant 0 : index
    %c0_372 = arith.constant 0 : index
    %1245 = vector.load %arg4[%c0_369, %c1_370, %c0_371, %c0_372] : memref<1x8x16x16xf32, #tpu.memory_space<vmem>>, vector<1x1x16x16xf32>
    %1246 = vector.shape_cast %1245 : vector<1x1x16x16xf32> to vector<16x16xf32>
    %1247 = vector.shape_cast %1103 : vector<16x16xf32> to vector<1x1x16x16xf32>
    tpu.vector_store %arg4[%c0_369, %c1_370, %c0_371, %c0_372], %1247 {strides = array<i32>} : memref<1x8x16x16xf32, #tpu.memory_space<vmem>>, vector<1x1x16x16xf32>,
    %c0_373 = arith.constant 0 : index
    %c2_374 = arith.constant 2 : index
    %c0_375 = arith.constant 0 : index
    %c0_376 = arith.constant 0 : index
    %1248 = vector.load %arg4[%c0_373, %c2_374, %c0_375, %c0_376] : memref<1x8x16x16xf32, #tpu.memory_space<vmem>>, vector<1x1x16x16xf32>
    %1249 = vector.shape_cast %1248 : vector<1x1x16x16xf32> to vector<16x16xf32>
    %1250 = vector.shape_cast %1126 : vector<16x16xf32> to vector<1x1x16x16xf32>
    tpu.vector_store %arg4[%c0_373, %c2_374, %c0_375, %c0_376], %1250 {strides = array<i32>} : memref<1x8x16x16xf32, #tpu.memory_space<vmem>>, vector<1x1x16x16xf32>,
    %c0_377 = arith.constant 0 : index
    %c3_378 = arith.constant 3 : index
    %c0_379 = arith.constant 0 : index
    %c0_380 = arith.constant 0 : index
    %1251 = vector.load %arg4[%c0_377, %c3_378, %c0_379, %c0_380] : memref<1x8x16x16xf32, #tpu.memory_space<vmem>>, vector<1x1x16x16xf32>
    %1252 = vector.shape_cast %1251 : vector<1x1x16x16xf32> to vector<16x16xf32>
    %1253 = vector.shape_cast %1149 : vector<16x16xf32> to vector<1x1x16x16xf32>
    tpu.vector_store %arg4[%c0_377, %c3_378, %c0_379, %c0_380], %1253 {strides = array<i32>} : memref<1x8x16x16xf32, #tpu.memory_space<vmem>>, vector<1x1x16x16xf32>,
    %c0_381 = arith.constant 0 : index
    %c4_382 = arith.constant 4 : index
    %c0_383 = arith.constant 0 : index
    %c0_384 = arith.constant 0 : index
    %1254 = vector.load %arg4[%c0_381, %c4_382, %c0_383, %c0_384] : memref<1x8x16x16xf32, #tpu.memory_space<vmem>>, vector<1x1x16x16xf32>
    %1255 = vector.shape_cast %1254 : vector<1x1x16x16xf32> to vector<16x16xf32>
    %1256 = vector.shape_cast %1172 : vector<16x16xf32> to vector<1x1x16x16xf32>
    tpu.vector_store %arg4[%c0_381, %c4_382, %c0_383, %c0_384], %1256 {strides = array<i32>} : memref<1x8x16x16xf32, #tpu.memory_space<vmem>>, vector<1x1x16x16xf32>,
    %c0_385 = arith.constant 0 : index
    %c5_386 = arith.constant 5 : index
    %c0_387 = arith.constant 0 : index
    %c0_388 = arith.constant 0 : index
    %1257 = vector.load %arg4[%c0_385, %c5_386, %c0_387, %c0_388] : memref<1x8x16x16xf32, #tpu.memory_space<vmem>>, vector<1x1x16x16xf32>
    %1258 = vector.shape_cast %1257 : vector<1x1x16x16xf32> to vector<16x16xf32>
    %1259 = vector.shape_cast %1195 : vector<16x16xf32> to vector<1x1x16x16xf32>
    tpu.vector_store %arg4[%c0_385, %c5_386, %c0_387, %c0_388], %1259 {strides = array<i32>} : memref<1x8x16x16xf32, #tpu.memory_space<vmem>>, vector<1x1x16x16xf32>,
    %c0_389 = arith.constant 0 : index
    %c6_390 = arith.constant 6 : index
    %c0_391 = arith.constant 0 : index
    %c0_392 = arith.constant 0 : index
    %1260 = vector.load %arg4[%c0_389, %c6_390, %c0_391, %c0_392] : memref<1x8x16x16xf32, #tpu.memory_space<vmem>>, vector<1x1x16x16xf32>
    %1261 = vector.shape_cast %1260 : vector<1x1x16x16xf32> to vector<16x16xf32>
    %1262 = vector.shape_cast %1218 : vector<16x16xf32> to vector<1x1x16x16xf32>
    tpu.vector_store %arg4[%c0_389, %c6_390, %c0_391, %c0_392], %1262 {strides = array<i32>} : memref<1x8x16x16xf32, #tpu.memory_space<vmem>>, vector<1x1x16x16xf32>,
    %c0_393 = arith.constant 0 : index
    %c7_394 = arith.constant 7 : index
    %c0_395 = arith.constant 0 : index
    %c0_396 = arith.constant 0 : index
    %1263 = vector.load %arg4[%c0_393, %c7_394, %c0_395, %c0_396] : memref<1x8x16x16xf32, #tpu.memory_space<vmem>>, vector<1x1x16x16xf32>
    %1264 = vector.shape_cast %1263 : vector<1x1x16x16xf32> to vector<16x16xf32>
    %1265 = vector.shape_cast %1241 : vector<16x16xf32> to vector<1x1x16x16xf32>
    tpu.vector_store %arg4[%c0_393, %c7_394, %c0_395, %c0_396], %1265 {strides = array<i32>} : memref<1x8x16x16xf32, #tpu.memory_space<vmem>>, vector<1x1x16x16xf32>,
    return
  }
  func.func @transform_0(%arg0: i32) -> (i32, i32, i32, i32) {
    %c0_i32 = arith.constant 0 : i32
    %c0_i32_0 = arith.constant 0 : i32
    %c0_i32_1 = arith.constant 0 : i32
    %c0_i32_2 = arith.constant 0 : i32
    return %arg0, %c0_i32, %c0_i32_0, %c0_i32_1 : i32, i32, i32, i32
  }
  func.func @transform_1(%arg0: i32) -> i32 {
    %c0_i32 = arith.constant 0 : i32
    %c0_i32_0 = arith.constant 0 : i32
    return %c0_i32 : i32
  }
  func.func @transform_2(%arg0: i32) -> i32 {
    %c0_i32 = arith.constant 0 : i32
    %c0_i32_0 = arith.constant 0 : i32
    return %c0_i32 : i32
  }
  func.func @transform_3(%arg0: i32) -> (i32, i32, i32, i32) {
    %c0_i32 = arith.constant 0 : i32
    %c0_i32_0 = arith.constant 0 : i32
    %c0_i32_1 = arith.constant 0 : i32
    %c0_i32_2 = arith.constant 0 : i32
    return %arg0, %c0_i32, %c0_i32_0, %c0_i32_1 : i32, i32, i32, i32
  }
}

</mosaic_0001>

<llo_original>
// kernel: conv_block_bbd.1
$region0: #{conv_block_bbd.1}
  #allocation0 [shape = 'u32[]', space=smem, size = 0x4, offset = 0x4, fixed_abs, tag = 'smem constant byte address 0x4 - core index']
  #allocation1 [shape = 'u32[72,128]{1,0:T(1,128)}', space=vmem, size = 0x9000, scoped, tag = 'internal scratch']
  #allocation2 [shape = 'f32[4,18,18]{2,1,0:T(8,128)}', space=vmem, size = 0xc000, scoped, tag = 'scratch operand']
  #allocation3 [shape = 'f32[2,18,18]{2,1,0:T(8,128)}', space=vmem, size = 0x6000, scoped, tag = 'scratch operand']
  %s0 = inlined_call_operand.vmem [shape: f32[2,4,16,16], index: 0, kind: input, shape index: {}]
  %s1 = inlined_call_operand.vmem [shape: f32[72], index: 1, kind: input, shape index: {}]
  %s2 = inlined_call_operand.vmem [shape: f32[144], index: 2, kind: input, shape index: {}]
  %s3 = inlined_call_operand.hbm [shape: f32[2,8,16,16], index: 3, kind: output, shape index: {}]
  %s4 = sld [smem:[#allocation0]]
  $region53: #{conv_block_bbd.1} parent=0
    _
  %s6 = ssub.s32 1, %s4
  %s7 = scalar_select 0, %s6, %s4
  $region1: #{conv_block_bbd.1} parent=0
    #allocation4 [shape = 'u8[512]{0}', space=smem, size = 0x200, scoped, tag = 'input window, operand 1, single buffered']
    #allocation5 [shape = 's32[2]{0}', space=sflag, size = 0x8, scoped, tag = 'scoped memory for conv_block_bbd.1']
    #allocation6 [shape = 's32[2]{0}', space=sflag, size = 0x8, scoped, tag = 'scoped memory for conv_block_bbd.1']
    #allocation7 [shape = 'u8[1024]{0}', space=smem, size = 0x400, scoped, tag = 'input window, operand 2, single buffered']
    #allocation8 [shape = 's32[1]{0}', space=sflag, size = 0x4, scoped, tag = 'scoped memory for conv_block_bbd.1']
    #allocation9 [shape = 'u8[131072]{0}', space=vmem, size = 0x20000, scoped, tag = 'output window, operand 0']
    %8 = vsyncpa [#allocation6], 0
    %9 = vsyncpa [#allocation8], 0
    %10 = vsyncpa [#allocation5], 0
    %s11 = scalar_lea.sflag [#allocation5], 1
    %12 = vsyncpa %s11, 0
    loop: start=0, step=1, limit=4
    $region2: #{conv_block_bbd.1} parent=1 // loop_pre_header
      _
    $region3: #{conv_block_bbd.1} parent=1 // loop_header
      %s14 = sphi 0, %s18
      %p15 = scmp.ge.s32.totalorder %s14, 4
      %s24 = sphi 0, %s26
      %s27 = sphi 0, %s24
      %s28 = sphi 0, %s27
      %s44 = sphi 0, %s28
      %s48 = sphi 0, %s48
      %s50 = sphi 0, %s48
      %s51 = sphi 0, %s50
      %s65 = sphi 0, %s51
      %s69 = sphi 0, %s69
      %s71 = sphi 0, %s69
      %s72 = sphi 0, %s71
      %s86 = sphi 0, %s72
      %s92 = sphi 0, %s94
      %s95 = sphi 0, %s92
      %s96 = sphi 0, %s95
      %s112 = sphi 0, %s96
    $region4: #{conv_block_bbd.1} parent=1 // loop_header_branch
      %17 = sbr.rel (%p15) target = $region8
    $region5: #{conv_block_bbd.1} parent=1 // loop_body
      %s19 = ssub.s32 %s14, 1
      %s20 = ssub.s32 %s14, 2
      %s21 = sadd.s32 %s14, 1
      %s22 = ssub.s32 %s14, %s21
      %p23 = scmp.eq.s32.totalorder %s22, 0
      %s25 = sadd.s32 %s24, 1
      %s26 = scalar_select %p23, %s24, %s25
      %p29 = pneg %p23
      %p30 = scmp.eq.s32.totalorder %s14, 1
      %p31 = por %p29, %p30
      %p32 = scmp.ne.s32.totalorder %s24, %s27
      %p33 = scmp.eq.s32.totalorder %s14, 0
      %p34 = por %p32, %p33
      %p35 = scmp.ne.s32.totalorder %s24, %s27
      %p36 = scmp.eq.s32.totalorder %s19, 1
      %p37 = por %p35, %p36
      %p38 = scmp.ne.s32.totalorder %s27, %s28
      %p39 = scmp.eq.s32.totalorder %s19, 0
      %p40 = por %p38, %p39
      %p41 = scmp.ne.s32.totalorder %s27, %s28
      %p42 = scmp.eq.s32.totalorder %s20, 1
      %p43 = por %p41, %p42
      %p45 = scmp.ne.s32.totalorder %s28, %s44
      %p46 = scmp.eq.s32.totalorder %s20, 0
      %p47 = por %p45, %p46
      %s49 = sadd.s32 %s48, 1
      %p52 = scmp.eq.s32.totalorder %s14, 1
      %p53 = scmp.ne.s32.totalorder %s48, %s50
      %p54 = scmp.eq.s32.totalorder %s14, 0
      %p55 = por %p53, %p54
      %p56 = scmp.ne.s32.totalorder %s48, %s50
      %p57 = scmp.eq.s32.totalorder %s19, 1
      %p58 = por %p56, %p57
      %p59 = scmp.ne.s32.totalorder %s50, %s51
      %p60 = scmp.eq.s32.totalorder %s19, 0
      %p61 = por %p59, %p60
      %p62 = scmp.ne.s32.totalorder %s50, %s51
      %p63 = scmp.eq.s32.totalorder %s20, 1
      %p64 = por %p62, %p63
      %p66 = scmp.ne.s32.totalorder %s51, %s65
      %p67 = scmp.eq.s32.totalorder %s20, 0
      %p68 = por %p66, %p67
      %s70 = sadd.s32 %s69, 1
      %p73 = scmp.eq.s32.totalorder %s14, 1
      %p74 = scmp.ne.s32.totalorder %s69, %s71
      %p75 = scmp.eq.s32.totalorder %s14, 0
      %p76 = por %p74, %p75
      %p77 = scmp.ne.s32.totalorder %s69, %s71
      %p78 = scmp.eq.s32.totalorder %s19, 1
      %p79 = por %p77, %p78
      %p80 = scmp.ne.s32.totalorder %s71, %s72
      %p81 = scmp.eq.s32.totalorder %s19, 0
      %p82 = por %p80, %p81
      %p83 = scmp.ne.s32.totalorder %s71, %s72
      %p84 = scmp.eq.s32.totalorder %s20, 1
      %p85 = por %p83, %p84
      %p87 = scmp.ne.s32.totalorder %s72, %s86
      %p88 = scmp.eq.s32.totalorder %s20, 0
      %p89 = por %p87, %p88
      %s90 = ssub.s32 %s14, %s21
      %p91 = scmp.eq.s32.totalorder %s90, 0
      %s93 = sadd.s32 %s92, 1
      %s94 = scalar_select %p91, %s92, %s93
      %p97 = pneg %p91
      %p98 = scmp.eq.s32.totalorder %s14, 1
      %p99 = por %p97, %p98
      %p100 = scmp.ne.s32.totalorder %s92, %s95
      %p101 = scmp.eq.s32.totalorder %s14, 0
      %p102 = por %p100, %p101
      %p103 = scmp.ne.s32.totalorder %s92, %s95
      %p104 = scmp.eq.s32.totalorder %s19, 1
      %p105 = por %p103, %p104
      %p106 = scmp.ne.s32.totalorder %s95, %s96
      %p107 = scmp.eq.s32.totalorder %s19, 0
      %p108 = por %p106, %p107
      %p109 = scmp.ne.s32.totalorder %s95, %s96
      %p110 = scmp.eq.s32.totalorder %s20, 1
      %p111 = por %p109, %p110
      %p113 = scmp.ne.s32.totalorder %s96, %s112
      %p114 = scmp.eq.s32.totalorder %s20, 0
      %p115 = por %p113, %p114
      %p116 = scmp.le.s32.totalorder 1, %s14
      %p117 = scmp.lt.s32.totalorder %s14, 3
      %p118 = pnand %p116, %p117
      %p119 = pneg %p118
      // Predicated region
      $region9: #{conv_block_bbd.1} parent=5 // pred_check
        _
      $region10: #{conv_block_bbd.1} parent=5 // pred_check_branch
        %121 = sbr.rel (%p118) target = $region12
      $region11: #{conv_block_bbd.1} parent=5 // pred_region
        %s122 = ssub.s32 %s14, 1
        // Predicated region
        $region13: #{conv_block_bbd.1} parent=11 // pred_check
          %p123 = pneg %p61
        $region14: #{conv_block_bbd.1} parent=11 // pred_check_branch
          %125 = sbr.rel (%p123) target = $region16
        $region15: #{conv_block_bbd.1} parent=11 // pred_region
          %127 = vsyncadd [#allocation6], 0
          %s129 = sshll.u32 %s1, 4
          %s130 = int_to_ptr.vmem [resolvable:$true] %s129
          %132 = dma.vmem_to_smem %s130, 16, [#allocation4], [#allocation6]
        $region16: #{conv_block_bbd.1} parent=11 // pred_fallthru
          _
        // Predicated region
        $region17: #{conv_block_bbd.1} parent=11 // pred_check
          %p133 = pneg %p82
        $region18: #{conv_block_bbd.1} parent=11 // pred_check_branch
          %135 = sbr.rel (%p133) target = $region20
        $region19: #{conv_block_bbd.1} parent=11 // pred_region
          %137 = vsyncadd [#allocation8], 0
          %s139 = sshll.u32 %s2, 4
          %s140 = int_to_ptr.vmem [resolvable:$true] %s139
          %142 = dma.vmem_to_smem %s140, 32, [#allocation7], [#allocation8]
        $region20: #{conv_block_bbd.1} parent=11 // pred_fallthru
          _
      $region12: #{conv_block_bbd.1} parent=5 // pred_fallthru
        _
      %p143 = scmp.lt.s32.totalorder %s14, 2
      // Predicated region
      $region21: #{conv_block_bbd.1} parent=5 // pred_check
        %p144 = pneg %p143
      $region22: #{conv_block_bbd.1} parent=5 // pred_check_branch
        %146 = sbr.rel (%p144) target = $region24
      $region23: #{conv_block_bbd.1} parent=5 // pred_region
        // Predicated region
        $region25: #{conv_block_bbd.1} parent=23 // pred_check
          %p147 = pneg %p34
        $region26: #{conv_block_bbd.1} parent=23 // pred_check_branch
          %149 = sbr.rel (%p147) target = $region28
        $region27: #{conv_block_bbd.1} parent=23 // pred_region
          %p150 = scmp.lt.s32.totalorder %s14, 1
          %s151 = scalar_select %p150, %s14, 1
          %s152 = smul.addr %s151, 8
          %s153 = smul.addr %s152, 8
          %s154 = scalar_lea.vmem %s0, %s153
        $region28: #{conv_block_bbd.1} parent=23 // pred_fallthru
          _
      $region24: #{conv_block_bbd.1} parent=5 // pred_fallthru
        _
      %p155 = scmp.le.s32.totalorder 1, %s14
      %p156 = scmp.lt.s32.totalorder %s14, 3
      %p157 = pnand %p155, %p156
      %p158 = pneg %p157
      // Predicated region
      $region29: #{conv_block_bbd.1} parent=5 // pred_check
        _
      $region30: #{conv_block_bbd.1} parent=5 // pred_check_branch
        %160 = sbr.rel (%p157) target = $region32
      $region31: #{conv_block_bbd.1} parent=5 // pred_region
        %s161 = ssub.s32 %s14, 1
        // Predicated region
        $region33: #{conv_block_bbd.1} parent=31 // pred_check
          %p162 = pneg %p61
        $region34: #{conv_block_bbd.1} parent=31 // pred_check_branch
          %164 = sbr.rel (%p162) target = $region36
        $region35: #{conv_block_bbd.1} parent=31 // pred_region
          %166 = dma.done [#allocation6], 16
        $region36: #{conv_block_bbd.1} parent=31 // pred_fallthru
          _
        // Predicated region
        $region37: #{conv_block_bbd.1} parent=31 // pred_check
          %p167 = pneg %p82
        $region38: #{conv_block_bbd.1} parent=31 // pred_check_branch
          %169 = sbr.rel (%p167) target = $region40
        $region39: #{conv_block_bbd.1} parent=31 // pred_region
          %171 = dma.done [#allocation8], 32
        $region40: #{conv_block_bbd.1} parent=31 // pred_fallthru
          _
        %172 = sfence
        %p173 = scmp.lt.s32.totalorder %s19, 1
        %s174 = scalar_select %p173, %s19, 1
        %s175 = smul.addr %s174, 8
        %s176 = smul.addr %s175, 8
        %s177 = scalar_lea.vmem %s0, %s176
        %p178 = pneg %p40
        %p179 = pneg %p37
        %p180 = pneg %p61
        %p181 = pneg %p58
        %p182 = pneg %p82
        %p183 = pneg %p79
        %p184 = pneg %p108
        %p185 = pneg %p105
        %s186 = sand.u32 %s95, 1
        %s187 = scalar_lea.sflag [#allocation5], %s186
        %s188 = sand.u32 %s95, 1
        %s189 = smul.addr %s188, 128
        %s190 = scalar_lea.vmem [#allocation9], %s189
        %p191 = scmp.lt.s32.totalorder %s19, 1
        %s192 = scalar_select %p191, %s19, 1
        %s193 = smul.addr %s192, 8
        %s194 = smul.addr %s193, 8
        %s195 = scalar_lea.vmem %s0, %s194
        %vm196 = vcmask 146432
        %197 = vst.msk [vmem:[#allocation2] sm:$0xff] %vm196, 0.0
        %198 = vst.msk [vmem:[#allocation2 + $0x8] sm:$0xff] %vm196, 0.0
        %vm199 = vcmask 140288
        %200 = vst.msk [vmem:[#allocation2 + $0x10] sm:$0x3] %vm199, 0.0
        %201 = vst.msk [vmem:[#allocation2 + $0x18] sm:$0xff] %vm196, 0.0
        %202 = vst.msk [vmem:[#allocation2 + $0x20] sm:$0xff] %vm196, 0.0
        %203 = vst.msk [vmem:[#allocation2 + $0x28] sm:$0x3] %vm199, 0.0
        %204 = vst.msk [vmem:[#allocation2 + $0x30] sm:$0xff] %vm196, 0.0
        %205 = vst.msk [vmem:[#allocation2 + $0x38] sm:$0xff] %vm196, 0.0
        %206 = vst.msk [vmem:[#allocation2 + $0x40] sm:$0x3] %vm199, 0.0
        %207 = vst.msk [vmem:[#allocation2 + $0x48] sm:$0xff] %vm196, 0.0
        %208 = vst.msk [vmem:[#allocation2 + $0x50] sm:$0xff] %vm196, 0.0
        %209 = vst.msk [vmem:[#allocation2 + $0x58] sm:$0x3] %vm199, 0.0
        %210 = vst.msk [vmem:[#allocation3] sm:$0xff] %vm196, 0.0
        %211 = vst.msk [vmem:[#allocation3 + $0x8] sm:$0xff] %vm196, 0.0
        %212 = vst.msk [vmem:[#allocation3 + $0x10] sm:$0x3] %vm199, 0.0
        %213 = vst.msk [vmem:[#allocation3 + $0x18] sm:$0xff] %vm196, 0.0
        %214 = vst.msk [vmem:[#allocation3 + $0x20] sm:$0xff] %vm196, 0.0
        %215 = vst.msk [vmem:[#allocation3 + $0x28] sm:$0x3] %vm199, 0.0
        %v216 = vld [vmem:[%s195] sm:$0xff]
        %v217 = vld [vmem:[%s195 + $0x8] sm:$0xff]
        %220 = vrot.lane.b32.xlu0 %v216, 1
        %v221 = vpop.permute.xlu0 %220
        %222 = vrot.lane.b32.xlu0 %v217, 1
        %v223 = vpop.permute.xlu0 %222
        %vm226 = vcmask 138248
        %227 = vst.msk [vmem:[#allocation2 + $0x1] sm:$0xff] %vm226, %v221
        %228 = vst.msk [vmem:[#allocation2 + $0x9] sm:$0xff] %vm226, %v223
        %s229 = scalar_lea.vmem %s195, 16
        %v230 = vld [vmem:[%s229] sm:$0xff]
        %v231 = vld [vmem:[%s229 + $0x8] sm:$0xff]
        %234 = vrot.lane.b32.xlu0 %v230, 1
        %v235 = vpop.permute.xlu0 %234
        %236 = vrot.lane.b32.xlu0 %v231, 1
        %v237 = vpop.permute.xlu0 %236
        %s240 = scalar_lea.vmem [#allocation2], 24
        %241 = vst.msk [vmem:[%s240 + $0x1] sm:$0xff] %vm226, %v235
        %242 = vst.msk [vmem:[%s240 + $0x9] sm:$0xff] %vm226, %v237
        %s243 = scalar_lea.vmem %s195, 32
        %v244 = vld [vmem:[%s243] sm:$0xff]
        %v245 = vld [vmem:[%s243 + $0x8] sm:$0xff]
        %248 = vrot.lane.b32.xlu0 %v244, 1
        %v249 = vpop.permute.xlu0 %248
        %250 = vrot.lane.b32.xlu0 %v245, 1
        %v251 = vpop.permute.xlu0 %250
        %s254 = scalar_lea.vmem [#allocation2], 48
        %255 = vst.msk [vmem:[%s254 + $0x1] sm:$0xff] %vm226, %v249
        %256 = vst.msk [vmem:[%s254 + $0x9] sm:$0xff] %vm226, %v251
        %s257 = scalar_lea.vmem %s195, 48
        %v258 = vld [vmem:[%s257] sm:$0xff]
        %v259 = vld [vmem:[%s257 + $0x8] sm:$0xff]
        %262 = vrot.lane.b32.xlu0 %v258, 1
        %v263 = vpop.permute.xlu0 %262
        %264 = vrot.lane.b32.xlu0 %v259, 1
        %v265 = vpop.permute.xlu0 %264
        %s268 = scalar_lea.vmem [#allocation2], 72
        %269 = vst.msk [vmem:[%s268 + $0x1] sm:$0xff] %vm226, %v263
        %270 = vst.msk [vmem:[%s268 + $0x9] sm:$0xff] %vm226, %v265
        %v271 = vld [vmem:[#allocation2] sm:$0xff]
        %v272 = vld [vmem:[#allocation2 + $0x8] sm:$0xff]
        %s273 = sld [smem:[#allocation4]]
        %v274 = vstv %s273
        %v275 = vmul.f32 %v274, %v271
        %v276 = vmul.f32 %v274, %v272
        %v277 = vadd.f32 %v275, 0.0
        %v278 = vadd.f32 %v276, 0.0
        %s279 = sld [smem:[#allocation4 + $0x24]]
        %v280 = vstv %s279
        %v281 = vmul.f32 %v280, %v271
        %v282 = vmul.f32 %v280, %v272
        %v283 = vadd.f32 %v281, 0.0
        %v284 = vadd.f32 %v282, 0.0
        %s285 = sld [smem:[#allocation4 + $0x1]]
        %v286 = vstv %s285
        %v287 = vmul.f32 %v286, %v271
        %v288 = vmul.f32 %v286, %v272
        %291 = vrot.lane.b32.xlu0 %v287, 127
        %v292 = vpop.permute.xlu0 %291
        %293 = vrot.lane.b32.xlu0 %v288, 127
        %v294 = vpop.permute.xlu0 %293
        %v297 = vadd.f32 %v277, %v292
        %v298 = vadd.f32 %v278, %v294
        %s299 = sld [smem:[#allocation4 + $0x25]]
        %v300 = vstv %s299
        %v301 = vmul.f32 %v300, %v271
        %v302 = vmul.f32 %v300, %v272
        %305 = vrot.lane.b32.xlu0 %v301, 127
        %v306 = vpop.permute.xlu0 %305
        %307 = vrot.lane.b32.xlu0 %v302, 127
        %v308 = vpop.permute.xlu0 %307
        %v311 = vadd.f32 %v283, %v306
        %v312 = vadd.f32 %v284, %v308
        %s313 = sld [smem:[#allocation4 + $0x2]]
        %v314 = vstv %s313
        %v315 = vmul.f32 %v314, %v271
        %v316 = vmul.f32 %v314, %v272
        %319 = vrot.lane.b32.xlu0 %v315, 126
        %v320 = vpop.permute.xlu0 %319
        %321 = vrot.lane.b32.xlu0 %v316, 126
        %v322 = vpop.permute.xlu0 %321
        %v325 = vadd.f32 %v297, %v320
        %v326 = vadd.f32 %v298, %v322
        %s327 = sld [smem:[#allocation4 + $0x26]]
        %v328 = vstv %s327
        %v329 = vmul.f32 %v328, %v271
        %v330 = vmul.f32 %v328, %v272
        %333 = vrot.lane.b32.xlu0 %v329, 126
        %v334 = vpop.permute.xlu0 %333
        %335 = vrot.lane.b32.xlu0 %v330, 126
        %v336 = vpop.permute.xlu0 %335
        %v339 = vadd.f32 %v311, %v334
        %v340 = vadd.f32 %v312, %v336
        %v341 = vld [vmem:[#allocation2 + $0x1] sm:$0xff]
        %v342 = vld [vmem:[#allocation2 + $0x9] sm:$0xff]
        %s343 = sld [smem:[#allocation4 + $0x3]]
        %v344 = vstv %s343
        %v345 = vmul.f32 %v344, %v341
        %v346 = vmul.f32 %v344, %v342
        %v347 = vadd.f32 %v325, %v345
        %v348 = vadd.f32 %v326, %v346
        %s349 = sld [smem:[#allocation4 + $0x27]]
        %v350 = vstv %s349
        %v351 = vmul.f32 %v350, %v341
        %v352 = vmul.f32 %v350, %v342
        %v353 = vadd.f32 %v339, %v351
        %v354 = vadd.f32 %v340, %v352
        %s355 = sld [smem:[#allocation4 + $0x4]]
        %v356 = vstv %s355
        %v357 = vmul.f32 %v356, %v341
        %v358 = vmul.f32 %v356, %v342
        %361 = vrot.lane.b32.xlu0 %v357, 127
        %v362 = vpop.permute.xlu0 %361
        %363 = vrot.lane.b32.xlu0 %v358, 127
        %v364 = vpop.permute.xlu0 %363
        %v367 = vadd.f32 %v347, %v362
        %v368 = vadd.f32 %v348, %v364
        %s369 = sld [smem:[#allocation4 + $0x28]]
        %v370 = vstv %s369
        %v371 = vmul.f32 %v370, %v341
        %v372 = vmul.f32 %v370, %v342
        %375 = vrot.lane.b32.xlu0 %v371, 127
        %v376 = vpop.permute.xlu0 %375
        %377 = vrot.lane.b32.xlu0 %v372, 127
        %v378 = vpop.permute.xlu0 %377
        %v381 = vadd.f32 %v353, %v376
        %v382 = vadd.f32 %v354, %v378
        %s383 = sld [smem:[#allocation4 + $0x5]]
        %v384 = vstv %s383
        %v385 = vmul.f32 %v384, %v341
        %v386 = vmul.f32 %v384, %v342
        %389 = vrot.lane.b32.xlu0 %v385, 126
        %v390 = vpop.permute.xlu0 %389
        %391 = vrot.lane.b32.xlu0 %v386, 126
        %v392 = vpop.permute.xlu0 %391
        %v395 = vadd.f32 %v367, %v390
        %v396 = vadd.f32 %v368, %v392
        %s397 = sld [smem:[#allocation4 + $0x29]]
        %v398 = vstv %s397
        %v399 = vmul.f32 %v398, %v341
        %v400 = vmul.f32 %v398, %v342
        %403 = vrot.lane.b32.xlu0 %v399, 126
        %v404 = vpop.permute.xlu0 %403
        %405 = vrot.lane.b32.xlu0 %v400, 126
        %v406 = vpop.permute.xlu0 %405
        %v409 = vadd.f32 %v381, %v404
        %v410 = vadd.f32 %v382, %v406
        %v411 = vld [vmem:[#allocation2 + $0x2] sm:$0xff]
        %v412 = vld [vmem:[#allocation2 + $0xa] sm:$0xff]
        %s413 = sld [smem:[#allocation4 + $0x6]]
        %v414 = vstv %s413
        %v415 = vmul.f32 %v414, %v411
        %v416 = vmul.f32 %v414, %v412
        %v417 = vadd.f32 %v395, %v415
        %v418 = vadd.f32 %v396, %v416
        %s419 = sld [smem:[#allocation4 + $0x2a]]
        %v420 = vstv %s419
        %v421 = vmul.f32 %v420, %v411
        %v422 = vmul.f32 %v420, %v412
        %v423 = vadd.f32 %v409, %v421
        %v424 = vadd.f32 %v410, %v422
        %s425 = sld [smem:[#allocation4 + $0x7]]
        %v426 = vstv %s425
        %v427 = vmul.f32 %v426, %v411
        %v428 = vmul.f32 %v426, %v412
        %431 = vrot.lane.b32.xlu0 %v427, 127
        %v432 = vpop.permute.xlu0 %431
        %433 = vrot.lane.b32.xlu0 %v428, 127
        %v434 = vpop.permute.xlu0 %433
        %v437 = vadd.f32 %v417, %v432
        %v438 = vadd.f32 %v418, %v434
        %s439 = sld [smem:[#allocation4 + $0x2b]]
        %v440 = vstv %s439
        %v441 = vmul.f32 %v440, %v411
        %v442 = vmul.f32 %v440, %v412
        %445 = vrot.lane.b32.xlu0 %v441, 127
        %v446 = vpop.permute.xlu0 %445
        %447 = vrot.lane.b32.xlu0 %v442, 127
        %v448 = vpop.permute.xlu0 %447
        %v451 = vadd.f32 %v423, %v446
        %v452 = vadd.f32 %v424, %v448
        %s453 = sld [smem:[#allocation4 + $0x8]]
        %v454 = vstv %s453
        %v455 = vmul.f32 %v454, %v411
        %v456 = vmul.f32 %v454, %v412
        %459 = vrot.lane.b32.xlu0 %v455, 126
        %v460 = vpop.permute.xlu0 %459
        %461 = vrot.lane.b32.xlu0 %v456, 126
        %v462 = vpop.permute.xlu0 %461
        %v465 = vadd.f32 %v437, %v460
        %v466 = vadd.f32 %v438, %v462
        %s467 = sld [smem:[#allocation4 + $0x2c]]
        %v468 = vstv %s467
        %v469 = vmul.f32 %v468, %v411
        %v470 = vmul.f32 %v468, %v412
        %473 = vrot.lane.b32.xlu0 %v469, 126
        %v474 = vpop.permute.xlu0 %473
        %475 = vrot.lane.b32.xlu0 %v470, 126
        %v476 = vpop.permute.xlu0 %475
        %v479 = vadd.f32 %v451, %v474
        %v480 = vadd.f32 %v452, %v476
        %v481 = vld [vmem:[%s240] sm:$0xff]
        %v482 = vld [vmem:[%s240 + $0x8] sm:$0xff]
        %s483 = sld [smem:[#allocation4 + $0x9]]
        %v484 = vstv %s483
        %v485 = vmul.f32 %v484, %v481
        %v486 = vmul.f32 %v484, %v482
        %v487 = vadd.f32 %v465, %v485
        %v488 = vadd.f32 %v466, %v486
        %s489 = sld [smem:[#allocation4 + $0x2d]]
        %v490 = vstv %s489
        %v491 = vmul.f32 %v490, %v481
        %v492 = vmul.f32 %v490, %v482
        %v493 = vadd.f32 %v479, %v491
        %v494 = vadd.f32 %v480, %v492
        %s495 = sld [smem:[#allocation4 + $0xa]]
        %v496 = vstv %s495
        %v497 = vmul.f32 %v496, %v481
        %v498 = vmul.f32 %v496, %v482
        %501 = vrot.lane.b32.xlu0 %v497, 127
        %v502 = vpop.permute.xlu0 %501
        %503 = vrot.lane.b32.xlu0 %v498, 127
        %v504 = vpop.permute.xlu0 %503
        %v507 = vadd.f32 %v487, %v502
        %v508 = vadd.f32 %v488, %v504
        %s509 = sld [smem:[#allocation4 + $0x2e]]
        %v510 = vstv %s509
        %v511 = vmul.f32 %v510, %v481
        %v512 = vmul.f32 %v510, %v482
        %515 = vrot.lane.b32.xlu0 %v511, 127
        %v516 = vpop.permute.xlu0 %515
        %517 = vrot.lane.b32.xlu0 %v512, 127
        %v518 = vpop.permute.xlu0 %517
        %v521 = vadd.f32 %v493, %v516
        %v522 = vadd.f32 %v494, %v518
        %s523 = sld [smem:[#allocation4 + $0xb]]
        %v524 = vstv %s523
        %v525 = vmul.f32 %v524, %v481
        %v526 = vmul.f32 %v524, %v482
        %529 = vrot.lane.b32.xlu0 %v525, 126
        %v530 = vpop.permute.xlu0 %529
        %531 = vrot.lane.b32.xlu0 %v526, 126
        %v532 = vpop.permute.xlu0 %531
        %v535 = vadd.f32 %v507, %v530
        %v536 = vadd.f32 %v508, %v532
        %s537 = sld [smem:[#allocation4 + $0x2f]]
        %v538 = vstv %s537
        %v539 = vmul.f32 %v538, %v481
        %v540 = vmul.f32 %v538, %v482
        %543 = vrot.lane.b32.xlu0 %v539, 126
        %v544 = vpop.permute.xlu0 %543
        %545 = vrot.lane.b32.xlu0 %v540, 126
        %v546 = vpop.permute.xlu0 %545
        %v549 = vadd.f32 %v521, %v544
        %v550 = vadd.f32 %v522, %v546
        %v551 = vld [vmem:[%s240 + $0x1] sm:$0xff]
        %v552 = vld [vmem:[%s240 + $0x9] sm:$0xff]
        %s553 = sld [smem:[#allocation4 + $0xc]]
        %v554 = vstv %s553
        %v555 = vmul.f32 %v554, %v551
        %v556 = vmul.f32 %v554, %v552
        %v557 = vadd.f32 %v535, %v555
        %v558 = vadd.f32 %v536, %v556
        %s559 = sld [smem:[#allocation4 + $0x30]]
        %v560 = vstv %s559
        %v561 = vmul.f32 %v560, %v551
        %v562 = vmul.f32 %v560, %v552
        %v563 = vadd.f32 %v549, %v561
        %v564 = vadd.f32 %v550, %v562
        %s565 = sld [smem:[#allocation4 + $0xd]]
        %v566 = vstv %s565
        %v567 = vmul.f32 %v566, %v551
        %v568 = vmul.f32 %v566, %v552
        %571 = vrot.lane.b32.xlu0 %v567, 127
        %v572 = vpop.permute.xlu0 %571
        %573 = vrot.lane.b32.xlu0 %v568, 127
        %v574 = vpop.permute.xlu0 %573
        %v577 = vadd.f32 %v557, %v572
        %v578 = vadd.f32 %v558, %v574
        %s579 = sld [smem:[#allocation4 + $0x31]]
        %v580 = vstv %s579
        %v581 = vmul.f32 %v580, %v551
        %v582 = vmul.f32 %v580, %v552
        %585 = vrot.lane.b32.xlu0 %v581, 127
        %v586 = vpop.permute.xlu0 %585
        %587 = vrot.lane.b32.xlu0 %v582, 127
        %v588 = vpop.permute.xlu0 %587
        %v591 = vadd.f32 %v563, %v586
        %v592 = vadd.f32 %v564, %v588
        %s593 = sld [smem:[#allocation4 + $0xe]]
        %v594 = vstv %s593
        %v595 = vmul.f32 %v594, %v551
        %v596 = vmul.f32 %v594, %v552
        %599 = vrot.lane.b32.xlu0 %v595, 126
        %v600 = vpop.permute.xlu0 %599
        %601 = vrot.lane.b32.xlu0 %v596, 126
        %v602 = vpop.permute.xlu0 %601
        %v605 = vadd.f32 %v577, %v600
        %v606 = vadd.f32 %v578, %v602
        %s607 = sld [smem:[#allocation4 + $0x32]]
        %v608 = vstv %s607
        %v609 = vmul.f32 %v608, %v551
        %v610 = vmul.f32 %v608, %v552
        %613 = vrot.lane.b32.xlu0 %v609, 126
        %v614 = vpop.permute.xlu0 %613
        %615 = vrot.lane.b32.xlu0 %v610, 126
        %v616 = vpop.permute.xlu0 %615
        %v619 = vadd.f32 %v591, %v614
        %v620 = vadd.f32 %v592, %v616
        %v621 = vld [vmem:[%s240 + $0x2] sm:$0xff]
        %v622 = vld [vmem:[%s240 + $0xa] sm:$0xff]
        %s623 = sld [smem:[#allocation4 + $0xf]]
        %v624 = vstv %s623
        %v625 = vmul.f32 %v624, %v621
        %v626 = vmul.f32 %v624, %v622
        %v627 = vadd.f32 %v605, %v625
        %v628 = vadd.f32 %v606, %v626
        %s629 = sld [smem:[#allocation4 + $0x33]]
        %v630 = vstv %s629
        %v631 = vmul.f32 %v630, %v621
        %v632 = vmul.f32 %v630, %v622
        %v633 = vadd.f32 %v619, %v631
        %v634 = vadd.f32 %v620, %v632
        %s635 = sld [smem:[#allocation4 + $0x10]]
        %v636 = vstv %s635
        %v637 = vmul.f32 %v636, %v621
        %v638 = vmul.f32 %v636, %v622
        %641 = vrot.lane.b32.xlu0 %v637, 127
        %v642 = vpop.permute.xlu0 %641
        %643 = vrot.lane.b32.xlu0 %v638, 127
        %v644 = vpop.permute.xlu0 %643
        %v647 = vadd.f32 %v627, %v642
        %v648 = vadd.f32 %v628, %v644
        %s649 = sld [smem:[#allocation4 + $0x34]]
        %v650 = vstv %s649
        %v651 = vmul.f32 %v650, %v621
        %v652 = vmul.f32 %v650, %v622
        %655 = vrot.lane.b32.xlu0 %v651, 127
        %v656 = vpop.permute.xlu0 %655
        %657 = vrot.lane.b32.xlu0 %v652, 127
        %v658 = vpop.permute.xlu0 %657
        %v661 = vadd.f32 %v633, %v656
        %v662 = vadd.f32 %v634, %v658
        %s663 = sld [smem:[#allocation4 + $0x11]]
        %v664 = vstv %s663
        %v665 = vmul.f32 %v664, %v621
        %v666 = vmul.f32 %v664, %v622
        %669 = vrot.lane.b32.xlu0 %v665, 126
        %v670 = vpop.permute.xlu0 %669
        %671 = vrot.lane.b32.xlu0 %v666, 126
        %v672 = vpop.permute.xlu0 %671
        %v675 = vadd.f32 %v647, %v670
        %v676 = vadd.f32 %v648, %v672
        %s677 = sld [smem:[#allocation4 + $0x35]]
        %v678 = vstv %s677
        %v679 = vmul.f32 %v678, %v621
        %v680 = vmul.f32 %v678, %v622
        %683 = vrot.lane.b32.xlu0 %v679, 126
        %v684 = vpop.permute.xlu0 %683
        %685 = vrot.lane.b32.xlu0 %v680, 126
        %v686 = vpop.permute.xlu0 %685
        %v689 = vadd.f32 %v661, %v684
        %v690 = vadd.f32 %v662, %v686
        %v691 = vld [vmem:[%s254] sm:$0xff]
        %v692 = vld [vmem:[%s254 + $0x8] sm:$0xff]
        %s693 = sld [smem:[#allocation4 + $0x12]]
        %v694 = vstv %s693
        %v695 = vmul.f32 %v694, %v691
        %v696 = vmul.f32 %v694, %v692
        %v697 = vadd.f32 %v675, %v695
        %v698 = vadd.f32 %v676, %v696
        %s699 = sld [smem:[#allocation4 + $0x36]]
        %v700 = vstv %s699
        %v701 = vmul.f32 %v700, %v691
        %v702 = vmul.f32 %v700, %v692
        %v703 = vadd.f32 %v689, %v701
        %v704 = vadd.f32 %v690, %v702
        %s705 = sld [smem:[#allocation4 + $0x13]]
        %v706 = vstv %s705
        %v707 = vmul.f32 %v706, %v691
        %v708 = vmul.f32 %v706, %v692
        %711 = vrot.lane.b32.xlu0 %v707, 127
        %v712 = vpop.permute.xlu0 %711
        %713 = vrot.lane.b32.xlu0 %v708, 127
        %v714 = vpop.permute.xlu0 %713
        %v717 = vadd.f32 %v697, %v712
        %v718 = vadd.f32 %v698, %v714
        %s719 = sld [smem:[#allocation4 + $0x37]]
        %v720 = vstv %s719
        %v721 = vmul.f32 %v720, %v691
        %v722 = vmul.f32 %v720, %v692
        %725 = vrot.lane.b32.xlu0 %v721, 127
        %v726 = vpop.permute.xlu0 %725
        %727 = vrot.lane.b32.xlu0 %v722, 127
        %v728 = vpop.permute.xlu0 %727
        %v731 = vadd.f32 %v703, %v726
        %v732 = vadd.f32 %v704, %v728
        %s733 = sld [smem:[#allocation4 + $0x14]]
        %v734 = vstv %s733
        %v735 = vmul.f32 %v734, %v691
        %v736 = vmul.f32 %v734, %v692
        %739 = vrot.lane.b32.xlu0 %v735, 126
        %v740 = vpop.permute.xlu0 %739
        %741 = vrot.lane.b32.xlu0 %v736, 126
        %v742 = vpop.permute.xlu0 %741
        %v745 = vadd.f32 %v717, %v740
        %v746 = vadd.f32 %v718, %v742
        %s747 = sld [smem:[#allocation4 + $0x38]]
        %v748 = vstv %s747
        %v749 = vmul.f32 %v748, %v691
        %v750 = vmul.f32 %v748, %v692
        %753 = vrot.lane.b32.xlu0 %v749, 126
        %v754 = vpop.permute.xlu0 %753
        %755 = vrot.lane.b32.xlu0 %v750, 126
        %v756 = vpop.permute.xlu0 %755
        %v759 = vadd.f32 %v731, %v754
        %v760 = vadd.f32 %v732, %v756
        %v761 = vld [vmem:[%s254 + $0x1] sm:$0xff]
        %v762 = vld [vmem:[%s254 + $0x9] sm:$0xff]
        %s763 = sld [smem:[#allocation4 + $0x15]]
        %v764 = vstv %s763
        %v765 = vmul.f32 %v764, %v761
        %v766 = vmul.f32 %v764, %v762
        %v767 = vadd.f32 %v745, %v765
        %v768 = vadd.f32 %v746, %v766
        %s769 = sld [smem:[#allocation4 + $0x39]]
        %v770 = vstv %s769
        %v771 = vmul.f32 %v770, %v761
        %v772 = vmul.f32 %v770, %v762
        %v773 = vadd.f32 %v759, %v771
        %v774 = vadd.f32 %v760, %v772
        %s775 = sld [smem:[#allocation4 + $0x16]]
        %v776 = vstv %s775
        %v777 = vmul.f32 %v776, %v761
        %v778 = vmul.f32 %v776, %v762
        %781 = vrot.lane.b32.xlu0 %v777, 127
        %v782 = vpop.permute.xlu0 %781
        %783 = vrot.lane.b32.xlu0 %v778, 127
        %v784 = vpop.permute.xlu0 %783
        %v787 = vadd.f32 %v767, %v782
        %v788 = vadd.f32 %v768, %v784
        %s789 = sld [smem:[#allocation4 + $0x3a]]
        %v790 = vstv %s789
        %v791 = vmul.f32 %v790, %v761
        %v792 = vmul.f32 %v790, %v762
        %795 = vrot.lane.b32.xlu0 %v791, 127
        %v796 = vpop.permute.xlu0 %795
        %797 = vrot.lane.b32.xlu0 %v792, 127
        %v798 = vpop.permute.xlu0 %797
        %v801 = vadd.f32 %v773, %v796
        %v802 = vadd.f32 %v774, %v798
        %s803 = sld [smem:[#allocation4 + $0x17]]
        %v804 = vstv %s803
        %v805 = vmul.f32 %v804, %v761
        %v806 = vmul.f32 %v804, %v762
        %809 = vrot.lane.b32.xlu0 %v805, 126
        %v810 = vpop.permute.xlu0 %809
        %811 = vrot.lane.b32.xlu0 %v806, 126
        %v812 = vpop.permute.xlu0 %811
        %v815 = vadd.f32 %v787, %v810
        %v816 = vadd.f32 %v788, %v812
        %s817 = sld [smem:[#allocation4 + $0x3b]]
        %v818 = vstv %s817
        %v819 = vmul.f32 %v818, %v761
        %v820 = vmul.f32 %v818, %v762
        %823 = vrot.lane.b32.xlu0 %v819, 126
        %v824 = vpop.permute.xlu0 %823
        %825 = vrot.lane.b32.xlu0 %v820, 126
        %v826 = vpop.permute.xlu0 %825
        %v829 = vadd.f32 %v801, %v824
        %v830 = vadd.f32 %v802, %v826
        %v831 = vld [vmem:[%s254 + $0x2] sm:$0xff]
        %v832 = vld [vmem:[%s254 + $0xa] sm:$0xff]
        %s833 = sld [smem:[#allocation4 + $0x18]]
        %v834 = vstv %s833
        %v835 = vmul.f32 %v834, %v831
        %v836 = vmul.f32 %v834, %v832
        %v837 = vadd.f32 %v815, %v835
        %v838 = vadd.f32 %v816, %v836
        %s839 = sld [smem:[#allocation4 + $0x3c]]
        %v840 = vstv %s839
        %v841 = vmul.f32 %v840, %v831
        %v842 = vmul.f32 %v840, %v832
        %v843 = vadd.f32 %v829, %v841
        %v844 = vadd.f32 %v830, %v842
        %s845 = sld [smem:[#allocation4 + $0x19]]
        %v846 = vstv %s845
        %v847 = vmul.f32 %v846, %v831
        %v848 = vmul.f32 %v846, %v832
        %851 = vrot.lane.b32.xlu0 %v847, 127
        %v852 = vpop.permute.xlu0 %851
        %853 = vrot.lane.b32.xlu0 %v848, 127
        %v854 = vpop.permute.xlu0 %853
        %v857 = vadd.f32 %v837, %v852
        %v858 = vadd.f32 %v838, %v854
        %s859 = sld [smem:[#allocation4 + $0x3d]]
        %v860 = vstv %s859
        %v861 = vmul.f32 %v860, %v831
        %v862 = vmul.f32 %v860, %v832
        %865 = vrot.lane.b32.xlu0 %v861, 127
        %v866 = vpop.permute.xlu0 %865
        %867 = vrot.lane.b32.xlu0 %v862, 127
        %v868 = vpop.permute.xlu0 %867
        %v871 = vadd.f32 %v843, %v866
        %v872 = vadd.f32 %v844, %v868
        %s873 = sld [smem:[#allocation4 + $0x1a]]
        %v874 = vstv %s873
        %v875 = vmul.f32 %v874, %v831
        %v876 = vmul.f32 %v874, %v832
        %879 = vrot.lane.b32.xlu0 %v875, 126
        %v880 = vpop.permute.xlu0 %879
        %881 = vrot.lane.b32.xlu0 %v876, 126
        %v882 = vpop.permute.xlu0 %881
        %v885 = vadd.f32 %v857, %v880
        %v886 = vadd.f32 %v858, %v882
        %s887 = sld [smem:[#allocation4 + $0x3e]]
        %v888 = vstv %s887
        %v889 = vmul.f32 %v888, %v831
        %v890 = vmul.f32 %v888, %v832
        %893 = vrot.lane.b32.xlu0 %v889, 126
        %v894 = vpop.permute.xlu0 %893
        %895 = vrot.lane.b32.xlu0 %v890, 126
        %v896 = vpop.permute.xlu0 %895
        %v899 = vadd.f32 %v871, %v894
        %v900 = vadd.f32 %v872, %v896
        %v901 = vld [vmem:[%s268] sm:$0xff]
        %v902 = vld [vmem:[%s268 + $0x8] sm:$0xff]
        %s903 = sld [smem:[#allocation4 + $0x1b]]
        %v904 = vstv %s903
        %v905 = vmul.f32 %v904, %v901
        %v906 = vmul.f32 %v904, %v902
        %v907 = vadd.f32 %v885, %v905
        %v908 = vadd.f32 %v886, %v906
        %s909 = sld [smem:[#allocation4 + $0x3f]]
        %v910 = vstv %s909
        %v911 = vmul.f32 %v910, %v901
        %v912 = vmul.f32 %v910, %v902
        %v913 = vadd.f32 %v899, %v911
        %v914 = vadd.f32 %v900, %v912
        %s915 = sld [smem:[#allocation4 + $0x1c]]
        %v916 = vstv %s915
        %v917 = vmul.f32 %v916, %v901
        %v918 = vmul.f32 %v916, %v902
        %921 = vrot.lane.b32.xlu0 %v917, 127
        %v922 = vpop.permute.xlu0 %921
        %923 = vrot.lane.b32.xlu0 %v918, 127
        %v924 = vpop.permute.xlu0 %923
        %v927 = vadd.f32 %v907, %v922
        %v928 = vadd.f32 %v908, %v924
        %s929 = sld [smem:[#allocation4 + $0x40]]
        %v930 = vstv %s929
        %v931 = vmul.f32 %v930, %v901
        %v932 = vmul.f32 %v930, %v902
        %935 = vrot.lane.b32.xlu0 %v931, 127
        %v936 = vpop.permute.xlu0 %935
        %937 = vrot.lane.b32.xlu0 %v932, 127
        %v938 = vpop.permute.xlu0 %937
        %v941 = vadd.f32 %v913, %v936
        %v942 = vadd.f32 %v914, %v938
        %s943 = sld [smem:[#allocation4 + $0x1d]]
        %v944 = vstv %s943
        %v945 = vmul.f32 %v944, %v901
        %v946 = vmul.f32 %v944, %v902
        %949 = vrot.lane.b32.xlu0 %v945, 126
        %v950 = vpop.permute.xlu0 %949
        %951 = vrot.lane.b32.xlu0 %v946, 126
        %v952 = vpop.permute.xlu0 %951
        %v955 = vadd.f32 %v927, %v950
        %v956 = vadd.f32 %v928, %v952
        %s957 = sld [smem:[#allocation4 + $0x41]]
        %v958 = vstv %s957
        %v959 = vmul.f32 %v958, %v901
        %v960 = vmul.f32 %v958, %v902
        %963 = vrot.lane.b32.xlu0 %v959, 126
        %v964 = vpop.permute.xlu0 %963
        %965 = vrot.lane.b32.xlu0 %v960, 126
        %v966 = vpop.permute.xlu0 %965
        %v969 = vadd.f32 %v941, %v964
        %v970 = vadd.f32 %v942, %v966
        %v971 = vld [vmem:[%s268 + $0x1] sm:$0xff]
        %v972 = vld [vmem:[%s268 + $0x9] sm:$0xff]
        %s973 = sld [smem:[#allocation4 + $0x1e]]
        %v974 = vstv %s973
        %v975 = vmul.f32 %v974, %v971
        %v976 = vmul.f32 %v974, %v972
        %v977 = vadd.f32 %v955, %v975
        %v978 = vadd.f32 %v956, %v976
        %s979 = sld [smem:[#allocation4 + $0x42]]
        %v980 = vstv %s979
        %v981 = vmul.f32 %v980, %v971
        %v982 = vmul.f32 %v980, %v972
        %v983 = vadd.f32 %v969, %v981
        %v984 = vadd.f32 %v970, %v982
        %s985 = sld [smem:[#allocation4 + $0x1f]]
        %v986 = vstv %s985
        %v987 = vmul.f32 %v986, %v971
        %v988 = vmul.f32 %v986, %v972
        %991 = vrot.lane.b32.xlu0 %v987, 127
        %v992 = vpop.permute.xlu0 %991
        %993 = vrot.lane.b32.xlu0 %v988, 127
        %v994 = vpop.permute.xlu0 %993
        %v997 = vadd.f32 %v977, %v992
        %v998 = vadd.f32 %v978, %v994
        %s999 = sld [smem:[#allocation4 + $0x43]]
        %v1000 = vstv %s999
        %v1001 = vmul.f32 %v1000, %v971
        %v1002 = vmul.f32 %v1000, %v972
        %1005 = vrot.lane.b32.xlu0 %v1001, 127
        %v1006 = vpop.permute.xlu0 %1005
        %1007 = vrot.lane.b32.xlu0 %v1002, 127
        %v1008 = vpop.permute.xlu0 %1007
        %v1011 = vadd.f32 %v983, %v1006
        %v1012 = vadd.f32 %v984, %v1008
        %s1013 = sld [smem:[#allocation4 + $0x20]]
        %v1014 = vstv %s1013
        %v1015 = vmul.f32 %v1014, %v971
        %v1016 = vmul.f32 %v1014, %v972
        %1019 = vrot.lane.b32.xlu0 %v1015, 126
        %v1020 = vpop.permute.xlu0 %1019
        %1021 = vrot.lane.b32.xlu0 %v1016, 126
        %v1022 = vpop.permute.xlu0 %1021
        %v1025 = vadd.f32 %v997, %v1020
        %v1026 = vadd.f32 %v998, %v1022
        %s1027 = sld [smem:[#allocation4 + $0x44]]
        %v1028 = vstv %s1027
        %v1029 = vmul.f32 %v1028, %v971
        %v1030 = vmul.f32 %v1028, %v972
        %1033 = vrot.lane.b32.xlu0 %v1029, 126
        %v1034 = vpop.permute.xlu0 %1033
        %1035 = vrot.lane.b32.xlu0 %v1030, 126
        %v1036 = vpop.permute.xlu0 %1035
        %v1039 = vadd.f32 %v1011, %v1034
        %v1040 = vadd.f32 %v1012, %v1036
        %v1041 = vld [vmem:[%s268 + $0x2] sm:$0xff]
        %v1042 = vld [vmem:[%s268 + $0xa] sm:$0xff]
        %s1043 = sld [smem:[#allocation4 + $0x21]]
        %v1044 = vstv %s1043
        %v1045 = vmul.f32 %v1044, %v1041
        %v1046 = vmul.f32 %v1044, %v1042
        %v1047 = vadd.f32 %v1025, %v1045
        %v1048 = vadd.f32 %v1026, %v1046
        %s1049 = sld [smem:[#allocation4 + $0x45]]
        %v1050 = vstv %s1049
        %v1051 = vmul.f32 %v1050, %v1041
        %v1052 = vmul.f32 %v1050, %v1042
        %v1053 = vadd.f32 %v1039, %v1051
        %v1054 = vadd.f32 %v1040, %v1052
        %s1055 = sld [smem:[#allocation4 + $0x22]]
        %v1056 = vstv %s1055
        %v1057 = vmul.f32 %v1056, %v1041
        %v1058 = vmul.f32 %v1056, %v1042
        %1061 = vrot.lane.b32.xlu0 %v1057, 127
        %v1062 = vpop.permute.xlu0 %1061
        %1063 = vrot.lane.b32.xlu0 %v1058, 127
        %v1064 = vpop.permute.xlu0 %1063
        %v1067 = vadd.f32 %v1047, %v1062
        %v1068 = vadd.f32 %v1048, %v1064
        %s1069 = sld [smem:[#allocation4 + $0x46]]
        %v1070 = vstv %s1069
        %v1071 = vmul.f32 %v1070, %v1041
        %v1072 = vmul.f32 %v1070, %v1042
        %1075 = vrot.lane.b32.xlu0 %v1071, 127
        %v1076 = vpop.permute.xlu0 %1075
        %1077 = vrot.lane.b32.xlu0 %v1072, 127
        %v1078 = vpop.permute.xlu0 %1077
        %v1081 = vadd.f32 %v1053, %v1076
        %v1082 = vadd.f32 %v1054, %v1078
        %s1083 = sld [smem:[#allocation4 + $0x23]]
        %v1084 = vstv %s1083
        %v1085 = vmul.f32 %v1084, %v1041
        %v1086 = vmul.f32 %v1084, %v1042
        %1089 = vrot.lane.b32.xlu0 %v1085, 126
        %v1090 = vpop.permute.xlu0 %1089
        %1091 = vrot.lane.b32.xlu0 %v1086, 126
        %v1092 = vpop.permute.xlu0 %1091
        %v1095 = vadd.f32 %v1067, %v1090
        %v1096 = vadd.f32 %v1068, %v1092
        %s1097 = sld [smem:[#allocation4 + $0x47]]
        %v1098 = vstv %s1097
        %v1099 = vmul.f32 %v1098, %v1041
        %v1100 = vmul.f32 %v1098, %v1042
        %1103 = vrot.lane.b32.xlu0 %v1099, 126
        %v1104 = vpop.permute.xlu0 %1103
        %1105 = vrot.lane.b32.xlu0 %v1100, 126
        %v1106 = vpop.permute.xlu0 %1105
        %v1109 = vadd.f32 %v1081, %v1104
        %v1110 = vadd.f32 %v1082, %v1106
        %vm1111 = vcmask 130048
        %v1112 = vsel %vm1111, %v1095, 0.0
        %1113 = vadd.xlane.f32.xlu0 %v1112
        %v1114 = vpop.xlane.xlu0 %1113
        %v1115 = vsel %vm1111, %v1096, 0.0
        %1116 = vadd.xlane.f32.xlu0 %v1115
        %v1117 = vpop.xlane.xlu0 %1116
        %v1118 = vadd.f32 %v1114, %v1117
        %v1119 = vrot.slane %v1118, 4
        %v1120 = vadd.f32 %v1118, %v1119
        %v1121 = vrot.slane %v1120, 2
        %v1122 = vadd.f32 %v1120, %v1121
        %v1123 = vrot.slane %v1122, 1
        %v1124 = vadd.f32 %v1122, %v1123
        %v1125 = vmul.f32 %v1124, 0.00390625
        %v1126 = vsub.f32 %v1095, %v1125
        %v1127 = vsub.f32 %v1096, %v1125
        %v1128 = vmul.f32 %v1126, %v1126
        %v1129 = vmul.f32 %v1127, %v1127
        %v1130 = vsel %vm1111, %v1128, 0.0
        %1131 = vadd.xlane.f32.xlu0 %v1130
        %v1132 = vpop.xlane.xlu0 %1131
        %v1133 = vsel %vm1111, %v1129, 0.0
        %1134 = vadd.xlane.f32.xlu0 %v1133
        %v1135 = vpop.xlane.xlu0 %1134
        %v1136 = vadd.f32 %v1132, %v1135
        %v1137 = vrot.slane %v1136, 4
        %v1138 = vadd.f32 %v1136, %v1137
        %v1139 = vrot.slane %v1138, 2
        %v1140 = vadd.f32 %v1138, %v1139
        %v1141 = vrot.slane %v1140, 1
        %v1142 = vadd.f32 %v1140, %v1141
        %v1143 = vmul.f32 %v1142, 0.00390625
        %v1144 = vadd.f32 %v1143, 1e-05
        %v1145 = vrsqrt.pop %v1144
        %v1146 = vmul.f32 %v1145, %v1144
        %v1147 = vmul.f32 %v1146, %v1145
        %v1148 = vmul.f32 0.5, %v1147
        %v1149 = vsub.f32 1.5, %v1148
        %v1150 = vmul.f32 %v1145, %v1149
        %vm1151 = vweird.f32 %v1144
        %vm1152 = vweird.f32 %v1145
        %vm1153 = vmor %vm1151, %vm1152
        %v1154 = vsel %vm1153, %v1145, %v1150
        %v1155 = vmul.f32 %v1126, %v1154
        %v1156 = vmul.f32 %v1127, %v1154
        %v1157 = vmul.f32 %v1155, 0.2
        %v1158 = vmul.f32 %v1156, 0.2
        %v1159 = vmax.f32 %v1155, %v1157
        %v1160 = vmax.f32 %v1156, %v1158
        %v1161 = vsel %vm1111, %v1109, 0.0
        %1162 = vadd.xlane.f32.xlu0 %v1161
        %v1163 = vpop.xlane.xlu0 %1162
        %v1164 = vsel %vm1111, %v1110, 0.0
        %1165 = vadd.xlane.f32.xlu0 %v1164
        %v1166 = vpop.xlane.xlu0 %1165
        %v1167 = vadd.f32 %v1163, %v1166
        %v1168 = vrot.slane %v1167, 4
        %v1169 = vadd.f32 %v1167, %v1168
        %v1170 = vrot.slane %v1169, 2
        %v1171 = vadd.f32 %v1169, %v1170
        %v1172 = vrot.slane %v1171, 1
        %v1173 = vadd.f32 %v1171, %v1172
        %v1174 = vmul.f32 %v1173, 0.00390625
        %v1175 = vsub.f32 %v1109, %v1174
        %v1176 = vsub.f32 %v1110, %v1174
        %v1177 = vmul.f32 %v1175, %v1175
        %v1178 = vmul.f32 %v1176, %v1176
        %v1179 = vsel %vm1111, %v1177, 0.0
        %1180 = vadd.xlane.f32.xlu0 %v1179
        %v1181 = vpop.xlane.xlu0 %1180
        %v1182 = vsel %vm1111, %v1178, 0.0
        %1183 = vadd.xlane.f32.xlu0 %v1182
        %v1184 = vpop.xlane.xlu0 %1183
        %v1185 = vadd.f32 %v1181, %v1184
        %v1186 = vrot.slane %v1185, 4
        %v1187 = vadd.f32 %v1185, %v1186
        %v1188 = vrot.slane %v1187, 2
        %v1189 = vadd.f32 %v1187, %v1188
        %v1190 = vrot.slane %v1189, 1
        %v1191 = vadd.f32 %v1189, %v1190
        %v1192 = vmul.f32 %v1191, 0.00390625
        %v1193 = vadd.f32 %v1192, 1e-05
        %v1194 = vrsqrt.pop %v1193
        %v1195 = vmul.f32 %v1194, %v1193
        %v1196 = vmul.f32 %v1195, %v1194
        %v1197 = vmul.f32 0.5, %v1196
        %v1198 = vsub.f32 1.5, %v1197
        %v1199 = vmul.f32 %v1194, %v1198
        %vm1200 = vweird.f32 %v1193
        %vm1201 = vweird.f32 %v1194
        %vm1202 = vmor %vm1200, %vm1201
        %v1203 = vsel %vm1202, %v1194, %v1199
        %v1204 = vmul.f32 %v1175, %v1203
        %v1205 = vmul.f32 %v1176, %v1203
        %v1206 = vmul.f32 %v1204, 0.2
        %v1207 = vmul.f32 %v1205, 0.2
        %v1208 = vmax.f32 %v1204, %v1206
        %v1209 = vmax.f32 %v1205, %v1207
        %1212 = vrot.lane.b32.xlu0 %v1159, 1
        %v1213 = vpop.permute.xlu0 %1212
        %1214 = vrot.lane.b32.xlu0 %v1160, 1
        %v1215 = vpop.permute.xlu0 %1214
        %1218 = vst.msk [vmem:[#allocation3 + $0x1] sm:$0xff] %vm226, %v1213
        %1219 = vst.msk [vmem:[#allocation3 + $0x9] sm:$0xff] %vm226, %v1215
        %1222 = vrot.lane.b32.xlu0 %v1208, 1
        %v1223 = vpop.permute.xlu0 %1222
        %1224 = vrot.lane.b32.xlu0 %v1209, 1
        %v1225 = vpop.permute.xlu0 %1224
        %s1228 = scalar_lea.vmem [#allocation3], 24
        %1229 = vst.msk [vmem:[%s1228 + $0x1] sm:$0xff] %vm226, %v1223
        %1230 = vst.msk [vmem:[%s1228 + $0x9] sm:$0xff] %vm226, %v1225
        %v1231 = vld [vmem:[#allocation3] sm:$0xff]
        %v1232 = vld [vmem:[#allocation3 + $0x8] sm:$0xff]
        %s1233 = sld [smem:[#allocation7]]
        %v1234 = vstv %s1233
        %v1235 = vmul.f32 %v1234, %v1231
        %v1236 = vmul.f32 %v1234, %v1232
        %v1237 = vadd.f32 %v1235, 0.0
        %v1238 = vadd.f32 %v1236, 0.0
        %s1239 = sld [smem:[#allocation7 + $0x12]]
        %v1240 = vstv %s1239
        %v1241 = vmul.f32 %v1240, %v1231
        %v1242 = vmul.f32 %v1240, %v1232
        %v1243 = vadd.f32 %v1241, 0.0
        %v1244 = vadd.f32 %v1242, 0.0
        %s1245 = sld [smem:[#allocation7 + $0x24]]
        %v1246 = vstv %s1245
        %v1247 = vmul.f32 %v1246, %v1231
        %v1248 = vmul.f32 %v1246, %v1232
        %v1249 = vadd.f32 %v1247, 0.0
        %v1250 = vadd.f32 %v1248, 0.0
        %s1251 = sld [smem:[#allocation7 + $0x36]]
        %v1252 = vstv %s1251
        %v1253 = vmul.f32 %v1252, %v1231
        %v1254 = vmul.f32 %v1252, %v1232
        %v1255 = vadd.f32 %v1253, 0.0
        %v1256 = vadd.f32 %v1254, 0.0
        %s1257 = sld [smem:[#allocation7 + $0x48]]
        %v1258 = vstv %s1257
        %v1259 = vmul.f32 %v1258, %v1231
        %v1260 = vmul.f32 %v1258, %v1232
        %v1261 = vadd.f32 %v1259, 0.0
        %v1262 = vadd.f32 %v1260, 0.0
        %s1263 = sld [smem:[#allocation7 + $0x5a]]
        %v1264 = vstv %s1263
        %v1265 = vmul.f32 %v1264, %v1231
        %v1266 = vmul.f32 %v1264, %v1232
        %v1267 = vadd.f32 %v1265, 0.0
        %v1268 = vadd.f32 %v1266, 0.0
        %s1269 = sld [smem:[#allocation7 + $0x6c]]
        %v1270 = vstv %s1269
        %v1271 = vmul.f32 %v1270, %v1231
        %v1272 = vmul.f32 %v1270, %v1232
        %v1273 = vadd.f32 %v1271, 0.0
        %v1274 = vadd.f32 %v1272, 0.0
        %s1275 = sld [smem:[#allocation7 + $0x7e]]
        %v1276 = vstv %s1275
        %v1277 = vmul.f32 %v1276, %v1231
        %v1278 = vmul.f32 %v1276, %v1232
        %v1279 = vadd.f32 %v1277, 0.0
        %v1280 = vadd.f32 %v1278, 0.0
        %s1281 = sld [smem:[#allocation7 + $0x1]]
        %v1282 = vstv %s1281
        %v1283 = vmul.f32 %v1282, %v1231
        %v1284 = vmul.f32 %v1282, %v1232
        %1287 = vrot.lane.b32.xlu0 %v1283, 127
        %v1288 = vpop.permute.xlu0 %1287
        %1289 = vrot.lane.b32.xlu0 %v1284, 127
        %v1290 = vpop.permute.xlu0 %1289
        %v1293 = vadd.f32 %v1237, %v1288
        %v1294 = vadd.f32 %v1238, %v1290
        %s1295 = sld [smem:[#allocation7 + $0x13]]
        %v1296 = vstv %s1295
        %v1297 = vmul.f32 %v1296, %v1231
        %v1298 = vmul.f32 %v1296, %v1232
        %1301 = vrot.lane.b32.xlu0 %v1297, 127
        %v1302 = vpop.permute.xlu0 %1301
        %1303 = vrot.lane.b32.xlu0 %v1298, 127
        %v1304 = vpop.permute.xlu0 %1303
        %v1307 = vadd.f32 %v1243, %v1302
        %v1308 = vadd.f32 %v1244, %v1304
        %s1309 = sld [smem:[#allocation7 + $0x25]]
        %v1310 = vstv %s1309
        %v1311 = vmul.f32 %v1310, %v1231
        %v1312 = vmul.f32 %v1310, %v1232
        %1315 = vrot.lane.b32.xlu0 %v1311, 127
        %v1316 = vpop.permute.xlu0 %1315
        %1317 = vrot.lane.b32.xlu0 %v1312, 127
        %v1318 = vpop.permute.xlu0 %1317
        %v1321 = vadd.f32 %v1249, %v1316
        %v1322 = vadd.f32 %v1250, %v1318
        %s1323 = sld [smem:[#allocation7 + $0x37]]
        %v1324 = vstv %s1323
        %v1325 = vmul.f32 %v1324, %v1231
        %v1326 = vmul.f32 %v1324, %v1232
        %1329 = vrot.lane.b32.xlu0 %v1325, 127
        %v1330 = vpop.permute.xlu0 %1329
        %1331 = vrot.lane.b32.xlu0 %v1326, 127
        %v1332 = vpop.permute.xlu0 %1331
        %v1335 = vadd.f32 %v1255, %v1330
        %v1336 = vadd.f32 %v1256, %v1332
        %s1337 = sld [smem:[#allocation7 + $0x49]]
        %v1338 = vstv %s1337
        %v1339 = vmul.f32 %v1338, %v1231
        %v1340 = vmul.f32 %v1338, %v1232
        %1343 = vrot.lane.b32.xlu0 %v1339, 127
        %v1344 = vpop.permute.xlu0 %1343
        %1345 = vrot.lane.b32.xlu0 %v1340, 127
        %v1346 = vpop.permute.xlu0 %1345
        %v1349 = vadd.f32 %v1261, %v1344
        %v1350 = vadd.f32 %v1262, %v1346
        %s1351 = sld [smem:[#allocation7 + $0x5b]]
        %v1352 = vstv %s1351
        %v1353 = vmul.f32 %v1352, %v1231
        %v1354 = vmul.f32 %v1352, %v1232
        %1357 = vrot.lane.b32.xlu0 %v1353, 127
        %v1358 = vpop.permute.xlu0 %1357
        %1359 = vrot.lane.b32.xlu0 %v1354, 127
        %v1360 = vpop.permute.xlu0 %1359
        %v1363 = vadd.f32 %v1267, %v1358
        %v1364 = vadd.f32 %v1268, %v1360
        %s1365 = sld [smem:[#allocation7 + $0x6d]]
        %v1366 = vstv %s1365
        %v1367 = vmul.f32 %v1366, %v1231
        %v1368 = vmul.f32 %v1366, %v1232
        %1371 = vrot.lane.b32.xlu0 %v1367, 127
        %v1372 = vpop.permute.xlu0 %1371
        %1373 = vrot.lane.b32.xlu0 %v1368, 127
        %v1374 = vpop.permute.xlu0 %1373
        %v1377 = vadd.f32 %v1273, %v1372
        %v1378 = vadd.f32 %v1274, %v1374
        %s1379 = sld [smem:[#allocation7 + $0x7f]]
        %v1380 = vstv %s1379
        %v1381 = vmul.f32 %v1380, %v1231
        %v1382 = vmul.f32 %v1380, %v1232
        %1385 = vrot.lane.b32.xlu0 %v1381, 127
        %v1386 = vpop.permute.xlu0 %1385
        %1387 = vrot.lane.b32.xlu0 %v1382, 127
        %v1388 = vpop.permute.xlu0 %1387
        %v1391 = vadd.f32 %v1279, %v1386
        %v1392 = vadd.f32 %v1280, %v1388
        %s1393 = sld [smem:[#allocation7 + $0x2]]
        %v1394 = vstv %s1393
        %v1395 = vmul.f32 %v1394, %v1231
        %v1396 = vmul.f32 %v1394, %v1232
        %1399 = vrot.lane.b32.xlu0 %v1395, 126
        %v1400 = vpop.permute.xlu0 %1399
        %1401 = vrot.lane.b32.xlu0 %v1396, 126
        %v1402 = vpop.permute.xlu0 %1401
        %v1405 = vadd.f32 %v1293, %v1400
        %v1406 = vadd.f32 %v1294, %v1402
        %s1407 = sld [smem:[#allocation7 + $0x14]]
        %v1408 = vstv %s1407
        %v1409 = vmul.f32 %v1408, %v1231
        %v1410 = vmul.f32 %v1408, %v1232
        %1413 = vrot.lane.b32.xlu0 %v1409, 126
        %v1414 = vpop.permute.xlu0 %1413
        %1415 = vrot.lane.b32.xlu0 %v1410, 126
        %v1416 = vpop.permute.xlu0 %1415
        %v1419 = vadd.f32 %v1307, %v1414
        %v1420 = vadd.f32 %v1308, %v1416
        %s1421 = sld [smem:[#allocation7 + $0x26]]
        %v1422 = vstv %s1421
        %v1423 = vmul.f32 %v1422, %v1231
        %v1424 = vmul.f32 %v1422, %v1232
        %1427 = vrot.lane.b32.xlu0 %v1423, 126
        %v1428 = vpop.permute.xlu0 %1427
        %1429 = vrot.lane.b32.xlu0 %v1424, 126
        %v1430 = vpop.permute.xlu0 %1429
        %v1433 = vadd.f32 %v1321, %v1428
        %v1434 = vadd.f32 %v1322, %v1430
        %s1435 = sld [smem:[#allocation7 + $0x38]]
        %v1436 = vstv %s1435
        %v1437 = vmul.f32 %v1436, %v1231
        %v1438 = vmul.f32 %v1436, %v1232
        %1441 = vrot.lane.b32.xlu0 %v1437, 126
        %v1442 = vpop.permute.xlu0 %1441
        %1443 = vrot.lane.b32.xlu0 %v1438, 126
        %v1444 = vpop.permute.xlu0 %1443
        %v1447 = vadd.f32 %v1335, %v1442
        %v1448 = vadd.f32 %v1336, %v1444
        %s1449 = sld [smem:[#allocation7 + $0x4a]]
        %v1450 = vstv %s1449
        %v1451 = vmul.f32 %v1450, %v1231
        %v1452 = vmul.f32 %v1450, %v1232
        %1455 = vrot.lane.b32.xlu0 %v1451, 126
        %v1456 = vpop.permute.xlu0 %1455
        %1457 = vrot.lane.b32.xlu0 %v1452, 126
        %v1458 = vpop.permute.xlu0 %1457
        %v1461 = vadd.f32 %v1349, %v1456
        %v1462 = vadd.f32 %v1350, %v1458
        %s1463 = sld [smem:[#allocation7 + $0x5c]]
        %v1464 = vstv %s1463
        %v1465 = vmul.f32 %v1464, %v1231
        %v1466 = vmul.f32 %v1464, %v1232
        %1469 = vrot.lane.b32.xlu0 %v1465, 126
        %v1470 = vpop.permute.xlu0 %1469
        %1471 = vrot.lane.b32.xlu0 %v1466, 126
        %v1472 = vpop.permute.xlu0 %1471
        %v1475 = vadd.f32 %v1363, %v1470
        %v1476 = vadd.f32 %v1364, %v1472
        %s1477 = sld [smem:[#allocation7 + $0x6e]]
        %v1478 = vstv %s1477
        %v1479 = vmul.f32 %v1478, %v1231
        %v1480 = vmul.f32 %v1478, %v1232
        %1483 = vrot.lane.b32.xlu0 %v1479, 126
        %v1484 = vpop.permute.xlu0 %1483
        %1485 = vrot.lane.b32.xlu0 %v1480, 126
        %v1486 = vpop.permute.xlu0 %1485
        %v1489 = vadd.f32 %v1377, %v1484
        %v1490 = vadd.f32 %v1378, %v1486
        %s1491 = sld [smem:[#allocation7 + $0x80]]
        %v1492 = vstv %s1491
        %v1493 = vmul.f32 %v1492, %v1231
        %v1494 = vmul.f32 %v1492, %v1232
        %1497 = vrot.lane.b32.xlu0 %v1493, 126
        %v1498 = vpop.permute.xlu0 %1497
        %1499 = vrot.lane.b32.xlu0 %v1494, 126
        %v1500 = vpop.permute.xlu0 %1499
        %v1503 = vadd.f32 %v1391, %v1498
        %v1504 = vadd.f32 %v1392, %v1500
        %v1505 = vld [vmem:[#allocation3 + $0x1] sm:$0xff]
        %v1506 = vld [vmem:[#allocation3 + $0x9] sm:$0xff]
        %s1507 = sld [smem:[#allocation7 + $0x3]]
        %v1508 = vstv %s1507
        %v1509 = vmul.f32 %v1508, %v1505
        %v1510 = vmul.f32 %v1508, %v1506
        %v1511 = vadd.f32 %v1405, %v1509
        %v1512 = vadd.f32 %v1406, %v1510
        %s1513 = sld [smem:[#allocation7 + $0x15]]
        %v1514 = vstv %s1513
        %v1515 = vmul.f32 %v1514, %v1505
        %v1516 = vmul.f32 %v1514, %v1506
        %v1517 = vadd.f32 %v1419, %v1515
        %v1518 = vadd.f32 %v1420, %v1516
        %s1519 = sld [smem:[#allocation7 + $0x27]]
        %v1520 = vstv %s1519
        %v1521 = vmul.f32 %v1520, %v1505
        %v1522 = vmul.f32 %v1520, %v1506
        %v1523 = vadd.f32 %v1433, %v1521
        %v1524 = vadd.f32 %v1434, %v1522
        %s1525 = sld [smem:[#allocation7 + $0x39]]
        %v1526 = vstv %s1525
        %v1527 = vmul.f32 %v1526, %v1505
        %v1528 = vmul.f32 %v1526, %v1506
        %v1529 = vadd.f32 %v1447, %v1527
        %v1530 = vadd.f32 %v1448, %v1528
        %s1531 = sld [smem:[#allocation7 + $0x4b]]
        %v1532 = vstv %s1531
        %v1533 = vmul.f32 %v1532, %v1505
        %v1534 = vmul.f32 %v1532, %v1506
        %v1535 = vadd.f32 %v1461, %v1533
        %v1536 = vadd.f32 %v1462, %v1534
        %s1537 = sld [smem:[#allocation7 + $0x5d]]
        %v1538 = vstv %s1537
        %v1539 = vmul.f32 %v1538, %v1505
        %v1540 = vmul.f32 %v1538, %v1506
        %v1541 = vadd.f32 %v1475, %v1539
        %v1542 = vadd.f32 %v1476, %v1540
        %s1543 = sld [smem:[#allocation7 + $0x6f]]
        %v1544 = vstv %s1543
        %v1545 = vmul.f32 %v1544, %v1505
        %v1546 = vmul.f32 %v1544, %v1506
        %v1547 = vadd.f32 %v1489, %v1545
        %v1548 = vadd.f32 %v1490, %v1546
        %s1549 = sld [smem:[#allocation7 + $0x81]]
        %v1550 = vstv %s1549
        %v1551 = vmul.f32 %v1550, %v1505
        %v1552 = vmul.f32 %v1550, %v1506
        %v1553 = vadd.f32 %v1503, %v1551
        %v1554 = vadd.f32 %v1504, %v1552
        %s1555 = sld [smem:[#allocation7 + $0x4]]
        %v1556 = vstv %s1555
        %v1557 = vmul.f32 %v1556, %v1505
        %v1558 = vmul.f32 %v1556, %v1506
        %1561 = vrot.lane.b32.xlu0 %v1557, 127
        %v1562 = vpop.permute.xlu0 %1561
        %1563 = vrot.lane.b32.xlu0 %v1558, 127
        %v1564 = vpop.permute.xlu0 %1563
        %v1567 = vadd.f32 %v1511, %v1562
        %v1568 = vadd.f32 %v1512, %v1564
        %s1569 = sld [smem:[#allocation7 + $0x16]]
        %v1570 = vstv %s1569
        %v1571 = vmul.f32 %v1570, %v1505
        %v1572 = vmul.f32 %v1570, %v1506
        %1575 = vrot.lane.b32.xlu0 %v1571, 127
        %v1576 = vpop.permute.xlu0 %1575
        %1577 = vrot.lane.b32.xlu0 %v1572, 127
        %v1578 = vpop.permute.xlu0 %1577
        %v1581 = vadd.f32 %v1517, %v1576
        %v1582 = vadd.f32 %v1518, %v1578
        %s1583 = sld [smem:[#allocation7 + $0x28]]
        %v1584 = vstv %s1583
        %v1585 = vmul.f32 %v1584, %v1505
        %v1586 = vmul.f32 %v1584, %v1506
        %1589 = vrot.lane.b32.xlu0 %v1585, 127
        %v1590 = vpop.permute.xlu0 %1589
        %1591 = vrot.lane.b32.xlu0 %v1586, 127
        %v1592 = vpop.permute.xlu0 %1591
        %v1595 = vadd.f32 %v1523, %v1590
        %v1596 = vadd.f32 %v1524, %v1592
        %s1597 = sld [smem:[#allocation7 + $0x3a]]
        %v1598 = vstv %s1597
        %v1599 = vmul.f32 %v1598, %v1505
        %v1600 = vmul.f32 %v1598, %v1506
        %1603 = vrot.lane.b32.xlu0 %v1599, 127
        %v1604 = vpop.permute.xlu0 %1603
        %1605 = vrot.lane.b32.xlu0 %v1600, 127
        %v1606 = vpop.permute.xlu0 %1605
        %v1609 = vadd.f32 %v1529, %v1604
        %v1610 = vadd.f32 %v1530, %v1606
        %s1611 = sld [smem:[#allocation7 + $0x4c]]
        %v1612 = vstv %s1611
        %v1613 = vmul.f32 %v1612, %v1505
        %v1614 = vmul.f32 %v1612, %v1506
        %1617 = vrot.lane.b32.xlu0 %v1613, 127
        %v1618 = vpop.permute.xlu0 %1617
        %1619 = vrot.lane.b32.xlu0 %v1614, 127
        %v1620 = vpop.permute.xlu0 %1619
        %v1623 = vadd.f32 %v1535, %v1618
        %v1624 = vadd.f32 %v1536, %v1620
        %s1625 = sld [smem:[#allocation7 + $0x5e]]
        %v1626 = vstv %s1625
        %v1627 = vmul.f32 %v1626, %v1505
        %v1628 = vmul.f32 %v1626, %v1506
        %1631 = vrot.lane.b32.xlu0 %v1627, 127
        %v1632 = vpop.permute.xlu0 %1631
        %1633 = vrot.lane.b32.xlu0 %v1628, 127
        %v1634 = vpop.permute.xlu0 %1633
        %v1637 = vadd.f32 %v1541, %v1632
        %v1638 = vadd.f32 %v1542, %v1634
        %s1639 = sld [smem:[#allocation7 + $0x70]]
        %v1640 = vstv %s1639
        %v1641 = vmul.f32 %v1640, %v1505
        %v1642 = vmul.f32 %v1640, %v1506
        %1645 = vrot.lane.b32.xlu0 %v1641, 127
        %v1646 = vpop.permute.xlu0 %1645
        %1647 = vrot.lane.b32.xlu0 %v1642, 127
        %v1648 = vpop.permute.xlu0 %1647
        %v1651 = vadd.f32 %v1547, %v1646
        %v1652 = vadd.f32 %v1548, %v1648
        %s1653 = sld [smem:[#allocation7 + $0x82]]
        %v1654 = vstv %s1653
        %v1655 = vmul.f32 %v1654, %v1505
        %v1656 = vmul.f32 %v1654, %v1506
        %1659 = vrot.lane.b32.xlu0 %v1655, 127
        %v1660 = vpop.permute.xlu0 %1659
        %1661 = vrot.lane.b32.xlu0 %v1656, 127
        %v1662 = vpop.permute.xlu0 %1661
        %v1665 = vadd.f32 %v1553, %v1660
        %v1666 = vadd.f32 %v1554, %v1662
        %s1667 = sld [smem:[#allocation7 + $0x5]]
        %v1668 = vstv %s1667
        %v1669 = vmul.f32 %v1668, %v1505
        %v1670 = vmul.f32 %v1668, %v1506
        %1673 = vrot.lane.b32.xlu0 %v1669, 126
        %v1674 = vpop.permute.xlu0 %1673
        %1675 = vrot.lane.b32.xlu0 %v1670, 126
        %v1676 = vpop.permute.xlu0 %1675
        %v1679 = vadd.f32 %v1567, %v1674
        %v1680 = vadd.f32 %v1568, %v1676
        %s1681 = sld [smem:[#allocation7 + $0x17]]
        %v1682 = vstv %s1681
        %v1683 = vmul.f32 %v1682, %v1505
        %v1684 = vmul.f32 %v1682, %v1506
        %1687 = vrot.lane.b32.xlu0 %v1683, 126
        %v1688 = vpop.permute.xlu0 %1687
        %1689 = vrot.lane.b32.xlu0 %v1684, 126
        %v1690 = vpop.permute.xlu0 %1689
        %v1693 = vadd.f32 %v1581, %v1688
        %v1694 = vadd.f32 %v1582, %v1690
        %s1695 = sld [smem:[#allocation7 + $0x29]]
        %v1696 = vstv %s1695
        %v1697 = vmul.f32 %v1696, %v1505
        %v1698 = vmul.f32 %v1696, %v1506
        %1701 = vrot.lane.b32.xlu0 %v1697, 126
        %v1702 = vpop.permute.xlu0 %1701
        %1703 = vrot.lane.b32.xlu0 %v1698, 126
        %v1704 = vpop.permute.xlu0 %1703
        %v1707 = vadd.f32 %v1595, %v1702
        %v1708 = vadd.f32 %v1596, %v1704
        %s1709 = sld [smem:[#allocation7 + $0x3b]]
        %v1710 = vstv %s1709
        %v1711 = vmul.f32 %v1710, %v1505
        %v1712 = vmul.f32 %v1710, %v1506
        %1715 = vrot.lane.b32.xlu0 %v1711, 126
        %v1716 = vpop.permute.xlu0 %1715
        %1717 = vrot.lane.b32.xlu0 %v1712, 126
        %v1718 = vpop.permute.xlu0 %1717
        %v1721 = vadd.f32 %v1609, %v1716
        %v1722 = vadd.f32 %v1610, %v1718
        %s1723 = sld [smem:[#allocation7 + $0x4d]]
        %v1724 = vstv %s1723
        %v1725 = vmul.f32 %v1724, %v1505
        %v1726 = vmul.f32 %v1724, %v1506
        %1729 = vrot.lane.b32.xlu0 %v1725, 126
        %v1730 = vpop.permute.xlu0 %1729
        %1731 = vrot.lane.b32.xlu0 %v1726, 126
        %v1732 = vpop.permute.xlu0 %1731
        %v1735 = vadd.f32 %v1623, %v1730
        %v1736 = vadd.f32 %v1624, %v1732
        %s1737 = sld [smem:[#allocation7 + $0x5f]]
        %v1738 = vstv %s1737
        %v1739 = vmul.f32 %v1738, %v1505
        %v1740 = vmul.f32 %v1738, %v1506
        %1743 = vrot.lane.b32.xlu0 %v1739, 126
        %v1744 = vpop.permute.xlu0 %1743
        %1745 = vrot.lane.b32.xlu0 %v1740, 126
        %v1746 = vpop.permute.xlu0 %1745
        %v1749 = vadd.f32 %v1637, %v1744
        %v1750 = vadd.f32 %v1638, %v1746
        %s1751 = sld [smem:[#allocation7 + $0x71]]
        %v1752 = vstv %s1751
        %v1753 = vmul.f32 %v1752, %v1505
        %v1754 = vmul.f32 %v1752, %v1506
        %1757 = vrot.lane.b32.xlu0 %v1753, 126
        %v1758 = vpop.permute.xlu0 %1757
        %1759 = vrot.lane.b32.xlu0 %v1754, 126
        %v1760 = vpop.permute.xlu0 %1759
        %v1763 = vadd.f32 %v1651, %v1758
        %v1764 = vadd.f32 %v1652, %v1760
        %s1765 = sld [smem:[#allocation7 + $0x83]]
        %v1766 = vstv %s1765
        %v1767 = vmul.f32 %v1766, %v1505
        %v1768 = vmul.f32 %v1766, %v1506
        %1771 = vrot.lane.b32.xlu0 %v1767, 126
        %v1772 = vpop.permute.xlu0 %1771
        %1773 = vrot.lane.b32.xlu0 %v1768, 126
        %v1774 = vpop.permute.xlu0 %1773
        %v1777 = vadd.f32 %v1665, %v1772
        %v1778 = vadd.f32 %v1666, %v1774
        %v1779 = vld [vmem:[#allocation3 + $0x2] sm:$0xff]
        %v1780 = vld [vmem:[#allocation3 + $0xa] sm:$0xff]
        %s1781 = sld [smem:[#allocation7 + $0x6]]
        %v1782 = vstv %s1781
        %v1783 = vmul.f32 %v1782, %v1779
        %v1784 = vmul.f32 %v1782, %v1780
        %v1785 = vadd.f32 %v1679, %v1783
        %v1786 = vadd.f32 %v1680, %v1784
        %s1787 = sld [smem:[#allocation7 + $0x18]]
        %v1788 = vstv %s1787
        %v1789 = vmul.f32 %v1788, %v1779
        %v1790 = vmul.f32 %v1788, %v1780
        %v1791 = vadd.f32 %v1693, %v1789
        %v1792 = vadd.f32 %v1694, %v1790
        %s1793 = sld [smem:[#allocation7 + $0x2a]]
        %v1794 = vstv %s1793
        %v1795 = vmul.f32 %v1794, %v1779
        %v1796 = vmul.f32 %v1794, %v1780
        %v1797 = vadd.f32 %v1707, %v1795
        %v1798 = vadd.f32 %v1708, %v1796
        %s1799 = sld [smem:[#allocation7 + $0x3c]]
        %v1800 = vstv %s1799
        %v1801 = vmul.f32 %v1800, %v1779
        %v1802 = vmul.f32 %v1800, %v1780
        %v1803 = vadd.f32 %v1721, %v1801
        %v1804 = vadd.f32 %v1722, %v1802
        %s1805 = sld [smem:[#allocation7 + $0x4e]]
        %v1806 = vstv %s1805
        %v1807 = vmul.f32 %v1806, %v1779
        %v1808 = vmul.f32 %v1806, %v1780
        %v1809 = vadd.f32 %v1735, %v1807
        %v1810 = vadd.f32 %v1736, %v1808
        %s1811 = sld [smem:[#allocation7 + $0x60]]
        %v1812 = vstv %s1811
        %v1813 = vmul.f32 %v1812, %v1779
        %v1814 = vmul.f32 %v1812, %v1780
        %v1815 = vadd.f32 %v1749, %v1813
        %v1816 = vadd.f32 %v1750, %v1814
        %s1817 = sld [smem:[#allocation7 + $0x72]]
        %v1818 = vstv %s1817
        %v1819 = vmul.f32 %v1818, %v1779
        %v1820 = vmul.f32 %v1818, %v1780
        %v1821 = vadd.f32 %v1763, %v1819
        %v1822 = vadd.f32 %v1764, %v1820
        %s1823 = sld [smem:[#allocation7 + $0x84]]
        %v1824 = vstv %s1823
        %v1825 = vmul.f32 %v1824, %v1779
        %v1826 = vmul.f32 %v1824, %v1780
        %v1827 = vadd.f32 %v1777, %v1825
        %v1828 = vadd.f32 %v1778, %v1826
        %s1829 = sld [smem:[#allocation7 + $0x7]]
        %v1830 = vstv %s1829
        %v1831 = vmul.f32 %v1830, %v1779
        %v1832 = vmul.f32 %v1830, %v1780
        %1835 = vrot.lane.b32.xlu0 %v1831, 127
        %v1836 = vpop.permute.xlu0 %1835
        %1837 = vrot.lane.b32.xlu0 %v1832, 127
        %v1838 = vpop.permute.xlu0 %1837
        %v1841 = vadd.f32 %v1785, %v1836
        %v1842 = vadd.f32 %v1786, %v1838
        %s1843 = sld [smem:[#allocation7 + $0x19]]
        %v1844 = vstv %s1843
        %v1845 = vmul.f32 %v1844, %v1779
        %v1846 = vmul.f32 %v1844, %v1780
        %1849 = vrot.lane.b32.xlu0 %v1845, 127
        %v1850 = vpop.permute.xlu0 %1849
        %1851 = vrot.lane.b32.xlu0 %v1846, 127
        %v1852 = vpop.permute.xlu0 %1851
        %v1855 = vadd.f32 %v1791, %v1850
        %v1856 = vadd.f32 %v1792, %v1852
        %s1857 = sld [smem:[#allocation7 + $0x2b]]
        %v1858 = vstv %s1857
        %v1859 = vmul.f32 %v1858, %v1779
        %v1860 = vmul.f32 %v1858, %v1780
        %1863 = vrot.lane.b32.xlu0 %v1859, 127
        %v1864 = vpop.permute.xlu0 %1863
        %1865 = vrot.lane.b32.xlu0 %v1860, 127
        %v1866 = vpop.permute.xlu0 %1865
        %v1869 = vadd.f32 %v1797, %v1864
        %v1870 = vadd.f32 %v1798, %v1866
        %s1871 = sld [smem:[#allocation7 + $0x3d]]
        %v1872 = vstv %s1871
        %v1873 = vmul.f32 %v1872, %v1779
        %v1874 = vmul.f32 %v1872, %v1780
        %1877 = vrot.lane.b32.xlu0 %v1873, 127
        %v1878 = vpop.permute.xlu0 %1877
        %1879 = vrot.lane.b32.xlu0 %v1874, 127
        %v1880 = vpop.permute.xlu0 %1879
        %v1883 = vadd.f32 %v1803, %v1878
        %v1884 = vadd.f32 %v1804, %v1880
        %s1885 = sld [smem:[#allocation7 + $0x4f]]
        %v1886 = vstv %s1885
        %v1887 = vmul.f32 %v1886, %v1779
        %v1888 = vmul.f32 %v1886, %v1780
        %1891 = vrot.lane.b32.xlu0 %v1887, 127
        %v1892 = vpop.permute.xlu0 %1891
        %1893 = vrot.lane.b32.xlu0 %v1888, 127
        %v1894 = vpop.permute.xlu0 %1893
        %v1897 = vadd.f32 %v1809, %v1892
        %v1898 = vadd.f32 %v1810, %v1894
        %s1899 = sld [smem:[#allocation7 + $0x61]]
        %v1900 = vstv %s1899
        %v1901 = vmul.f32 %v1900, %v1779
        %v1902 = vmul.f32 %v1900, %v1780
        %1905 = vrot.lane.b32.xlu0 %v1901, 127
        %v1906 = vpop.permute.xlu0 %1905
        %1907 = vrot.lane.b32.xlu0 %v1902, 127
        %v1908 = vpop.permute.xlu0 %1907
        %v1911 = vadd.f32 %v1815, %v1906
        %v1912 = vadd.f32 %v1816, %v1908
        %s1913 = sld [smem:[#allocation7 + $0x73]]
        %v1914 = vstv %s1913
        %v1915 = vmul.f32 %v1914, %v1779
        %v1916 = vmul.f32 %v1914, %v1780
        %1919 = vrot.lane.b32.xlu0 %v1915, 127
        %v1920 = vpop.permute.xlu0 %1919
        %1921 = vrot.lane.b32.xlu0 %v1916, 127
        %v1922 = vpop.permute.xlu0 %1921
        %v1925 = vadd.f32 %v1821, %v1920
        %v1926 = vadd.f32 %v1822, %v1922
        %s1927 = sld [smem:[#allocation7 + $0x85]]
        %v1928 = vstv %s1927
        %v1929 = vmul.f32 %v1928, %v1779
        %v1930 = vmul.f32 %v1928, %v1780
        %1933 = vrot.lane.b32.xlu0 %v1929, 127
        %v1934 = vpop.permute.xlu0 %1933
        %1935 = vrot.lane.b32.xlu0 %v1930, 127
        %v1936 = vpop.permute.xlu0 %1935
        %v1939 = vadd.f32 %v1827, %v1934
        %v1940 = vadd.f32 %v1828, %v1936
        %s1941 = sld [smem:[#allocation7 + $0x8]]
        %v1942 = vstv %s1941
        %v1943 = vmul.f32 %v1942, %v1779
        %v1944 = vmul.f32 %v1942, %v1780
        %1947 = vrot.lane.b32.xlu0 %v1943, 126
        %v1948 = vpop.permute.xlu0 %1947
        %1949 = vrot.lane.b32.xlu0 %v1944, 126
        %v1950 = vpop.permute.xlu0 %1949
        %v1953 = vadd.f32 %v1841, %v1948
        %v1954 = vadd.f32 %v1842, %v1950
        %s1955 = sld [smem:[#allocation7 + $0x1a]]
        %v1956 = vstv %s1955
        %v1957 = vmul.f32 %v1956, %v1779
        %v1958 = vmul.f32 %v1956, %v1780
        %1961 = vrot.lane.b32.xlu0 %v1957, 126
        %v1962 = vpop.permute.xlu0 %1961
        %1963 = vrot.lane.b32.xlu0 %v1958, 126
        %v1964 = vpop.permute.xlu0 %1963
        %v1967 = vadd.f32 %v1855, %v1962
        %v1968 = vadd.f32 %v1856, %v1964
        %s1969 = sld [smem:[#allocation7 + $0x2c]]
        %v1970 = vstv %s1969
        %v1971 = vmul.f32 %v1970, %v1779
        %v1972 = vmul.f32 %v1970, %v1780
        %1975 = vrot.lane.b32.xlu0 %v1971, 126
        %v1976 = vpop.permute.xlu0 %1975
        %1977 = vrot.lane.b32.xlu0 %v1972, 126
        %v1978 = vpop.permute.xlu0 %1977
        %v1981 = vadd.f32 %v1869, %v1976
        %v1982 = vadd.f32 %v1870, %v1978
        %s1983 = sld [smem:[#allocation7 + $0x3e]]
        %v1984 = vstv %s1983
        %v1985 = vmul.f32 %v1984, %v1779
        %v1986 = vmul.f32 %v1984, %v1780
        %1989 = vrot.lane.b32.xlu0 %v1985, 126
        %v1990 = vpop.permute.xlu0 %1989
        %1991 = vrot.lane.b32.xlu0 %v1986, 126
        %v1992 = vpop.permute.xlu0 %1991
        %v1995 = vadd.f32 %v1883, %v1990
        %v1996 = vadd.f32 %v1884, %v1992
        %s1997 = sld [smem:[#allocation7 + $0x50]]
        %v1998 = vstv %s1997
        %v1999 = vmul.f32 %v1998, %v1779
        %v2000 = vmul.f32 %v1998, %v1780
        %2003 = vrot.lane.b32.xlu0 %v1999, 126
        %v2004 = vpop.permute.xlu0 %2003
        %2005 = vrot.lane.b32.xlu0 %v2000, 126
        %v2006 = vpop.permute.xlu0 %2005
        %v2009 = vadd.f32 %v1897, %v2004
        %v2010 = vadd.f32 %v1898, %v2006
        %s2011 = sld [smem:[#allocation7 + $0x62]]
        %v2012 = vstv %s2011
        %v2013 = vmul.f32 %v2012, %v1779
        %v2014 = vmul.f32 %v2012, %v1780
        %2017 = vrot.lane.b32.xlu0 %v2013, 126
        %v2018 = vpop.permute.xlu0 %2017
        %2019 = vrot.lane.b32.xlu0 %v2014, 126
        %v2020 = vpop.permute.xlu0 %2019
        %v2023 = vadd.f32 %v1911, %v2018
        %v2024 = vadd.f32 %v1912, %v2020
        %s2025 = sld [smem:[#allocation7 + $0x74]]
        %v2026 = vstv %s2025
        %v2027 = vmul.f32 %v2026, %v1779
        %v2028 = vmul.f32 %v2026, %v1780
        %2031 = vrot.lane.b32.xlu0 %v2027, 126
        %v2032 = vpop.permute.xlu0 %2031
        %2033 = vrot.lane.b32.xlu0 %v2028, 126
        %v2034 = vpop.permute.xlu0 %2033
        %v2037 = vadd.f32 %v1925, %v2032
        %v2038 = vadd.f32 %v1926, %v2034
        %s2039 = sld [smem:[#allocation7 + $0x86]]
        %v2040 = vstv %s2039
        %v2041 = vmul.f32 %v2040, %v1779
        %v2042 = vmul.f32 %v2040, %v1780
        %2045 = vrot.lane.b32.xlu0 %v2041, 126
        %v2046 = vpop.permute.xlu0 %2045
        %2047 = vrot.lane.b32.xlu0 %v2042, 126
        %v2048 = vpop.permute.xlu0 %2047
        %v2051 = vadd.f32 %v1939, %v2046
        %v2052 = vadd.f32 %v1940, %v2048
        %v2053 = vld [vmem:[%s1228] sm:$0xff]
        %v2054 = vld [vmem:[%s1228 + $0x8] sm:$0xff]
        %s2055 = sld [smem:[#allocation7 + $0x9]]
        %v2056 = vstv %s2055
        %v2057 = vmul.f32 %v2056, %v2053
        %v2058 = vmul.f32 %v2056, %v2054
        %v2059 = vadd.f32 %v1953, %v2057
        %v2060 = vadd.f32 %v1954, %v2058
        %s2061 = sld [smem:[#allocation7 + $0x1b]]
        %v2062 = vstv %s2061
        %v2063 = vmul.f32 %v2062, %v2053
        %v2064 = vmul.f32 %v2062, %v2054
        %v2065 = vadd.f32 %v1967, %v2063
        %v2066 = vadd.f32 %v1968, %v2064
        %s2067 = sld [smem:[#allocation7 + $0x2d]]
        %v2068 = vstv %s2067
        %v2069 = vmul.f32 %v2068, %v2053
        %v2070 = vmul.f32 %v2068, %v2054
        %v2071 = vadd.f32 %v1981, %v2069
        %v2072 = vadd.f32 %v1982, %v2070
        %s2073 = sld [smem:[#allocation7 + $0x3f]]
        %v2074 = vstv %s2073
        %v2075 = vmul.f32 %v2074, %v2053
        %v2076 = vmul.f32 %v2074, %v2054
        %v2077 = vadd.f32 %v1995, %v2075
        %v2078 = vadd.f32 %v1996, %v2076
        %s2079 = sld [smem:[#allocation7 + $0x51]]
        %v2080 = vstv %s2079
        %v2081 = vmul.f32 %v2080, %v2053
        %v2082 = vmul.f32 %v2080, %v2054
        %v2083 = vadd.f32 %v2009, %v2081
        %v2084 = vadd.f32 %v2010, %v2082
        %s2085 = sld [smem:[#allocation7 + $0x63]]
        %v2086 = vstv %s2085
        %v2087 = vmul.f32 %v2086, %v2053
        %v2088 = vmul.f32 %v2086, %v2054
        %v2089 = vadd.f32 %v2023, %v2087
        %v2090 = vadd.f32 %v2024, %v2088
        %s2091 = sld [smem:[#allocation7 + $0x75]]
        %v2092 = vstv %s2091
        %v2093 = vmul.f32 %v2092, %v2053
        %v2094 = vmul.f32 %v2092, %v2054
        %v2095 = vadd.f32 %v2037, %v2093
        %v2096 = vadd.f32 %v2038, %v2094
        %s2097 = sld [smem:[#allocation7 + $0x87]]
        %v2098 = vstv %s2097
        %v2099 = vmul.f32 %v2098, %v2053
        %v2100 = vmul.f32 %v2098, %v2054
        %v2101 = vadd.f32 %v2051, %v2099
        %v2102 = vadd.f32 %v2052, %v2100
        %s2103 = sld [smem:[#allocation7 + $0xa]]
        %v2104 = vstv %s2103
        %v2105 = vmul.f32 %v2104, %v2053
        %v2106 = vmul.f32 %v2104, %v2054
        %2109 = vrot.lane.b32.xlu0 %v2105, 127
        %v2110 = vpop.permute.xlu0 %2109
        %2111 = vrot.lane.b32.xlu0 %v2106, 127
        %v2112 = vpop.permute.xlu0 %2111
        %v2115 = vadd.f32 %v2059, %v2110
        %v2116 = vadd.f32 %v2060, %v2112
        %s2117 = sld [smem:[#allocation7 + $0x1c]]
        %v2118 = vstv %s2117
        %v2119 = vmul.f32 %v2118, %v2053
        %v2120 = vmul.f32 %v2118, %v2054
        %2123 = vrot.lane.b32.xlu0 %v2119, 127
        %v2124 = vpop.permute.xlu0 %2123
        %2125 = vrot.lane.b32.xlu0 %v2120, 127
        %v2126 = vpop.permute.xlu0 %2125
        %v2129 = vadd.f32 %v2065, %v2124
        %v2130 = vadd.f32 %v2066, %v2126
        %s2131 = sld [smem:[#allocation7 + $0x2e]]
        %v2132 = vstv %s2131
        %v2133 = vmul.f32 %v2132, %v2053
        %v2134 = vmul.f32 %v2132, %v2054
        %2137 = vrot.lane.b32.xlu0 %v2133, 127
        %v2138 = vpop.permute.xlu0 %2137
        %2139 = vrot.lane.b32.xlu0 %v2134, 127
        %v2140 = vpop.permute.xlu0 %2139
        %v2143 = vadd.f32 %v2071, %v2138
        %v2144 = vadd.f32 %v2072, %v2140
        %s2145 = sld [smem:[#allocation7 + $0x40]]
        %v2146 = vstv %s2145
        %v2147 = vmul.f32 %v2146, %v2053
        %v2148 = vmul.f32 %v2146, %v2054
        %2151 = vrot.lane.b32.xlu0 %v2147, 127
        %v2152 = vpop.permute.xlu0 %2151
        %2153 = vrot.lane.b32.xlu0 %v2148, 127
        %v2154 = vpop.permute.xlu0 %2153
        %v2157 = vadd.f32 %v2077, %v2152
        %v2158 = vadd.f32 %v2078, %v2154
        %s2159 = sld [smem:[#allocation7 + $0x52]]
        %v2160 = vstv %s2159
        %v2161 = vmul.f32 %v2160, %v2053
        %v2162 = vmul.f32 %v2160, %v2054
        %2165 = vrot.lane.b32.xlu0 %v2161, 127
        %v2166 = vpop.permute.xlu0 %2165
        %2167 = vrot.lane.b32.xlu0 %v2162, 127
        %v2168 = vpop.permute.xlu0 %2167
        %v2171 = vadd.f32 %v2083, %v2166
        %v2172 = vadd.f32 %v2084, %v2168
        %s2173 = sld [smem:[#allocation7 + $0x64]]
        %v2174 = vstv %s2173
        %v2175 = vmul.f32 %v2174, %v2053
        %v2176 = vmul.f32 %v2174, %v2054
        %2179 = vrot.lane.b32.xlu0 %v2175, 127
        %v2180 = vpop.permute.xlu0 %2179
        %2181 = vrot.lane.b32.xlu0 %v2176, 127
        %v2182 = vpop.permute.xlu0 %2181
        %v2185 = vadd.f32 %v2089, %v2180
        %v2186 = vadd.f32 %v2090, %v2182
        %s2187 = sld [smem:[#allocation7 + $0x76]]
        %v2188 = vstv %s2187
        %v2189 = vmul.f32 %v2188, %v2053
        %v2190 = vmul.f32 %v2188, %v2054
        %2193 = vrot.lane.b32.xlu0 %v2189, 127
        %v2194 = vpop.permute.xlu0 %2193
        %2195 = vrot.lane.b32.xlu0 %v2190, 127
        %v2196 = vpop.permute.xlu0 %2195
        %v2199 = vadd.f32 %v2095, %v2194
        %v2200 = vadd.f32 %v2096, %v2196
        %s2201 = sld [smem:[#allocation7 + $0x88]]
        %v2202 = vstv %s2201
        %v2203 = vmul.f32 %v2202, %v2053
        %v2204 = vmul.f32 %v2202, %v2054
        %2207 = vrot.lane.b32.xlu0 %v2203, 127
        %v2208 = vpop.permute.xlu0 %2207
        %2209 = vrot.lane.b32.xlu0 %v2204, 127
        %v2210 = vpop.permute.xlu0 %2209
        %v2213 = vadd.f32 %v2101, %v2208
        %v2214 = vadd.f32 %v2102, %v2210
        %s2215 = sld [smem:[#allocation7 + $0xb]]
        %v2216 = vstv %s2215
        %v2217 = vmul.f32 %v2216, %v2053
        %v2218 = vmul.f32 %v2216, %v2054
        %2221 = vrot.lane.b32.xlu0 %v2217, 126
        %v2222 = vpop.permute.xlu0 %2221
        %2223 = vrot.lane.b32.xlu0 %v2218, 126
        %v2224 = vpop.permute.xlu0 %2223
        %v2227 = vadd.f32 %v2115, %v2222
        %v2228 = vadd.f32 %v2116, %v2224
        %s2229 = sld [smem:[#allocation7 + $0x1d]]
        %v2230 = vstv %s2229
        %v2231 = vmul.f32 %v2230, %v2053
        %v2232 = vmul.f32 %v2230, %v2054
        %2235 = vrot.lane.b32.xlu0 %v2231, 126
        %v2236 = vpop.permute.xlu0 %2235
        %2237 = vrot.lane.b32.xlu0 %v2232, 126
        %v2238 = vpop.permute.xlu0 %2237
        %v2241 = vadd.f32 %v2129, %v2236
        %v2242 = vadd.f32 %v2130, %v2238
        %s2243 = sld [smem:[#allocation7 + $0x2f]]
        %v2244 = vstv %s2243
        %v2245 = vmul.f32 %v2244, %v2053
        %v2246 = vmul.f32 %v2244, %v2054
        %2249 = vrot.lane.b32.xlu0 %v2245, 126
        %v2250 = vpop.permute.xlu0 %2249
        %2251 = vrot.lane.b32.xlu0 %v2246, 126
        %v2252 = vpop.permute.xlu0 %2251
        %v2255 = vadd.f32 %v2143, %v2250
        %v2256 = vadd.f32 %v2144, %v2252
        %s2257 = sld [smem:[#allocation7 + $0x41]]
        %v2258 = vstv %s2257
        %v2259 = vmul.f32 %v2258, %v2053
        %v2260 = vmul.f32 %v2258, %v2054
        %2263 = vrot.lane.b32.xlu0 %v2259, 126
        %v2264 = vpop.permute.xlu0 %2263
        %2265 = vrot.lane.b32.xlu0 %v2260, 126
        %v2266 = vpop.permute.xlu0 %2265
        %v2269 = vadd.f32 %v2157, %v2264
        %v2270 = vadd.f32 %v2158, %v2266
        %s2271 = sld [smem:[#allocation7 + $0x53]]
        %v2272 = vstv %s2271
        %v2273 = vmul.f32 %v2272, %v2053
        %v2274 = vmul.f32 %v2272, %v2054
        %2277 = vrot.lane.b32.xlu0 %v2273, 126
        %v2278 = vpop.permute.xlu0 %2277
        %2279 = vrot.lane.b32.xlu0 %v2274, 126
        %v2280 = vpop.permute.xlu0 %2279
        %v2283 = vadd.f32 %v2171, %v2278
        %v2284 = vadd.f32 %v2172, %v2280
        %s2285 = sld [smem:[#allocation7 + $0x65]]
        %v2286 = vstv %s2285
        %v2287 = vmul.f32 %v2286, %v2053
        %v2288 = vmul.f32 %v2286, %v2054
        %2291 = vrot.lane.b32.xlu0 %v2287, 126
        %v2292 = vpop.permute.xlu0 %2291
        %2293 = vrot.lane.b32.xlu0 %v2288, 126
        %v2294 = vpop.permute.xlu0 %2293
        %v2297 = vadd.f32 %v2185, %v2292
        %v2298 = vadd.f32 %v2186, %v2294
        %s2299 = sld [smem:[#allocation7 + $0x77]]
        %v2300 = vstv %s2299
        %v2301 = vmul.f32 %v2300, %v2053
        %v2302 = vmul.f32 %v2300, %v2054
        %2305 = vrot.lane.b32.xlu0 %v2301, 126
        %v2306 = vpop.permute.xlu0 %2305
        %2307 = vrot.lane.b32.xlu0 %v2302, 126
        %v2308 = vpop.permute.xlu0 %2307
        %v2311 = vadd.f32 %v2199, %v2306
        %v2312 = vadd.f32 %v2200, %v2308
        %s2313 = sld [smem:[#allocation7 + $0x89]]
        %v2314 = vstv %s2313
        %v2315 = vmul.f32 %v2314, %v2053
        %v2316 = vmul.f32 %v2314, %v2054
        %2319 = vrot.lane.b32.xlu0 %v2315, 126
        %v2320 = vpop.permute.xlu0 %2319
        %2321 = vrot.lane.b32.xlu0 %v2316, 126
        %v2322 = vpop.permute.xlu0 %2321
        %v2325 = vadd.f32 %v2213, %v2320
        %v2326 = vadd.f32 %v2214, %v2322
        %v2327 = vld [vmem:[%s1228 + $0x1] sm:$0xff]
        %v2328 = vld [vmem:[%s1228 + $0x9] sm:$0xff]
        %s2329 = sld [smem:[#allocation7 + $0xc]]
        %v2330 = vstv %s2329
        %v2331 = vmul.f32 %v2330, %v2327
        %v2332 = vmul.f32 %v2330, %v2328
        %v2333 = vadd.f32 %v2227, %v2331
        %v2334 = vadd.f32 %v2228, %v2332
        %s2335 = sld [smem:[#allocation7 + $0x1e]]
        %v2336 = vstv %s2335
        %v2337 = vmul.f32 %v2336, %v2327
        %v2338 = vmul.f32 %v2336, %v2328
        %v2339 = vadd.f32 %v2241, %v2337
        %v2340 = vadd.f32 %v2242, %v2338
        %s2341 = sld [smem:[#allocation7 + $0x30]]
        %v2342 = vstv %s2341
        %v2343 = vmul.f32 %v2342, %v2327
        %v2344 = vmul.f32 %v2342, %v2328
        %v2345 = vadd.f32 %v2255, %v2343
        %v2346 = vadd.f32 %v2256, %v2344
        %s2347 = sld [smem:[#allocation7 + $0x42]]
        %v2348 = vstv %s2347
        %v2349 = vmul.f32 %v2348, %v2327
        %v2350 = vmul.f32 %v2348, %v2328
        %v2351 = vadd.f32 %v2269, %v2349
        %v2352 = vadd.f32 %v2270, %v2350
        %s2353 = sld [smem:[#allocation7 + $0x54]]
        %v2354 = vstv %s2353
        %v2355 = vmul.f32 %v2354, %v2327
        %v2356 = vmul.f32 %v2354, %v2328
        %v2357 = vadd.f32 %v2283, %v2355
        %v2358 = vadd.f32 %v2284, %v2356
        %s2359 = sld [smem:[#allocation7 + $0x66]]
        %v2360 = vstv %s2359
        %v2361 = vmul.f32 %v2360, %v2327
        %v2362 = vmul.f32 %v2360, %v2328
        %v2363 = vadd.f32 %v2297, %v2361
        %v2364 = vadd.f32 %v2298, %v2362
        %s2365 = sld [smem:[#allocation7 + $0x78]]
        %v2366 = vstv %s2365
        %v2367 = vmul.f32 %v2366, %v2327
        %v2368 = vmul.f32 %v2366, %v2328
        %v2369 = vadd.f32 %v2311, %v2367
        %v2370 = vadd.f32 %v2312, %v2368
        %s2371 = sld [smem:[#allocation7 + $0x8a]]
        %v2372 = vstv %s2371
        %v2373 = vmul.f32 %v2372, %v2327
        %v2374 = vmul.f32 %v2372, %v2328
        %v2375 = vadd.f32 %v2325, %v2373
        %v2376 = vadd.f32 %v2326, %v2374
        %s2377 = sld [smem:[#allocation7 + $0xd]]
        %v2378 = vstv %s2377
        %v2379 = vmul.f32 %v2378, %v2327
        %v2380 = vmul.f32 %v2378, %v2328
        %2383 = vrot.lane.b32.xlu0 %v2379, 127
        %v2384 = vpop.permute.xlu0 %2383
        %2385 = vrot.lane.b32.xlu0 %v2380, 127
        %v2386 = vpop.permute.xlu0 %2385
        %v2389 = vadd.f32 %v2333, %v2384
        %v2390 = vadd.f32 %v2334, %v2386
        %s2391 = sld [smem:[#allocation7 + $0x1f]]
        %v2392 = vstv %s2391
        %v2393 = vmul.f32 %v2392, %v2327
        %v2394 = vmul.f32 %v2392, %v2328
        %2397 = vrot.lane.b32.xlu0 %v2393, 127
        %v2398 = vpop.permute.xlu0 %2397
        %2399 = vrot.lane.b32.xlu0 %v2394, 127
        %v2400 = vpop.permute.xlu0 %2399
        %v2403 = vadd.f32 %v2339, %v2398
        %v2404 = vadd.f32 %v2340, %v2400
        %s2405 = sld [smem:[#allocation7 + $0x31]]
        %v2406 = vstv %s2405
        %v2407 = vmul.f32 %v2406, %v2327
        %v2408 = vmul.f32 %v2406, %v2328
        %2411 = vrot.lane.b32.xlu0 %v2407, 127
        %v2412 = vpop.permute.xlu0 %2411
        %2413 = vrot.lane.b32.xlu0 %v2408, 127
        %v2414 = vpop.permute.xlu0 %2413
        %v2417 = vadd.f32 %v2345, %v2412
        %v2418 = vadd.f32 %v2346, %v2414
        %s2419 = sld [smem:[#allocation7 + $0x43]]
        %v2420 = vstv %s2419
        %v2421 = vmul.f32 %v2420, %v2327
        %v2422 = vmul.f32 %v2420, %v2328
        %2425 = vrot.lane.b32.xlu0 %v2421, 127
        %v2426 = vpop.permute.xlu0 %2425
        %2427 = vrot.lane.b32.xlu0 %v2422, 127
        %v2428 = vpop.permute.xlu0 %2427
        %v2431 = vadd.f32 %v2351, %v2426
        %v2432 = vadd.f32 %v2352, %v2428
        %s2433 = sld [smem:[#allocation7 + $0x55]]
        %v2434 = vstv %s2433
        %v2435 = vmul.f32 %v2434, %v2327
        %v2436 = vmul.f32 %v2434, %v2328
        %2439 = vrot.lane.b32.xlu0 %v2435, 127
        %v2440 = vpop.permute.xlu0 %2439
        %2441 = vrot.lane.b32.xlu0 %v2436, 127
        %v2442 = vpop.permute.xlu0 %2441
        %v2445 = vadd.f32 %v2357, %v2440
        %v2446 = vadd.f32 %v2358, %v2442
        %s2447 = sld [smem:[#allocation7 + $0x67]]
        %v2448 = vstv %s2447
        %v2449 = vmul.f32 %v2448, %v2327
        %v2450 = vmul.f32 %v2448, %v2328
        %2453 = vrot.lane.b32.xlu0 %v2449, 127
        %v2454 = vpop.permute.xlu0 %2453
        %2455 = vrot.lane.b32.xlu0 %v2450, 127
        %v2456 = vpop.permute.xlu0 %2455
        %v2459 = vadd.f32 %v2363, %v2454
        %v2460 = vadd.f32 %v2364, %v2456
        %s2461 = sld [smem:[#allocation7 + $0x79]]
        %v2462 = vstv %s2461
        %v2463 = vmul.f32 %v2462, %v2327
        %v2464 = vmul.f32 %v2462, %v2328
        %2467 = vrot.lane.b32.xlu0 %v2463, 127
        %v2468 = vpop.permute.xlu0 %2467
        %2469 = vrot.lane.b32.xlu0 %v2464, 127
        %v2470 = vpop.permute.xlu0 %2469
        %v2473 = vadd.f32 %v2369, %v2468
        %v2474 = vadd.f32 %v2370, %v2470
        %s2475 = sld [smem:[#allocation7 + $0x8b]]
        %v2476 = vstv %s2475
        %v2477 = vmul.f32 %v2476, %v2327
        %v2478 = vmul.f32 %v2476, %v2328
        %2481 = vrot.lane.b32.xlu0 %v2477, 127
        %v2482 = vpop.permute.xlu0 %2481
        %2483 = vrot.lane.b32.xlu0 %v2478, 127
        %v2484 = vpop.permute.xlu0 %2483
        %v2487 = vadd.f32 %v2375, %v2482
        %v2488 = vadd.f32 %v2376, %v2484
        %s2489 = sld [smem:[#allocation7 + $0xe]]
        %v2490 = vstv %s2489
        %v2491 = vmul.f32 %v2490, %v2327
        %v2492 = vmul.f32 %v2490, %v2328
        %2495 = vrot.lane.b32.xlu0 %v2491, 126
        %v2496 = vpop.permute.xlu0 %2495
        %2497 = vrot.lane.b32.xlu0 %v2492, 126
        %v2498 = vpop.permute.xlu0 %2497
        %v2501 = vadd.f32 %v2389, %v2496
        %v2502 = vadd.f32 %v2390, %v2498
        %s2503 = sld [smem:[#allocation7 + $0x20]]
        %v2504 = vstv %s2503
        %v2505 = vmul.f32 %v2504, %v2327
        %v2506 = vmul.f32 %v2504, %v2328
        %2509 = vrot.lane.b32.xlu0 %v2505, 126
        %v2510 = vpop.permute.xlu0 %2509
        %2511 = vrot.lane.b32.xlu0 %v2506, 126
        %v2512 = vpop.permute.xlu0 %2511
        %v2515 = vadd.f32 %v2403, %v2510
        %v2516 = vadd.f32 %v2404, %v2512
        %s2517 = sld [smem:[#allocation7 + $0x32]]
        %v2518 = vstv %s2517
        %v2519 = vmul.f32 %v2518, %v2327
        %v2520 = vmul.f32 %v2518, %v2328
        %2523 = vrot.lane.b32.xlu0 %v2519, 126
        %v2524 = vpop.permute.xlu0 %2523
        %2525 = vrot.lane.b32.xlu0 %v2520, 126
        %v2526 = vpop.permute.xlu0 %2525
        %v2529 = vadd.f32 %v2417, %v2524
        %v2530 = vadd.f32 %v2418, %v2526
        %s2531 = sld [smem:[#allocation7 + $0x44]]
        %v2532 = vstv %s2531
        %v2533 = vmul.f32 %v2532, %v2327
        %v2534 = vmul.f32 %v2532, %v2328
        %2537 = vrot.lane.b32.xlu0 %v2533, 126
        %v2538 = vpop.permute.xlu0 %2537
        %2539 = vrot.lane.b32.xlu0 %v2534, 126
        %v2540 = vpop.permute.xlu0 %2539
        %v2543 = vadd.f32 %v2431, %v2538
        %v2544 = vadd.f32 %v2432, %v2540
        %s2545 = sld [smem:[#allocation7 + $0x56]]
        %v2546 = vstv %s2545
        %v2547 = vmul.f32 %v2546, %v2327
        %v2548 = vmul.f32 %v2546, %v2328
        %2551 = vrot.lane.b32.xlu0 %v2547, 126
        %v2552 = vpop.permute.xlu0 %2551
        %2553 = vrot.lane.b32.xlu0 %v2548, 126
        %v2554 = vpop.permute.xlu0 %2553
        %v2557 = vadd.f32 %v2445, %v2552
        %v2558 = vadd.f32 %v2446, %v2554
        %s2559 = sld [smem:[#allocation7 + $0x68]]
        %v2560 = vstv %s2559
        %v2561 = vmul.f32 %v2560, %v2327
        %v2562 = vmul.f32 %v2560, %v2328
        %2565 = vrot.lane.b32.xlu0 %v2561, 126
        %v2566 = vpop.permute.xlu0 %2565
        %2567 = vrot.lane.b32.xlu0 %v2562, 126
        %v2568 = vpop.permute.xlu0 %2567
        %v2571 = vadd.f32 %v2459, %v2566
        %v2572 = vadd.f32 %v2460, %v2568
        %s2573 = sld [smem:[#allocation7 + $0x7a]]
        %v2574 = vstv %s2573
        %v2575 = vmul.f32 %v2574, %v2327
        %v2576 = vmul.f32 %v2574, %v2328
        %2579 = vrot.lane.b32.xlu0 %v2575, 126
        %v2580 = vpop.permute.xlu0 %2579
        %2581 = vrot.lane.b32.xlu0 %v2576, 126
        %v2582 = vpop.permute.xlu0 %2581
        %v2585 = vadd.f32 %v2473, %v2580
        %v2586 = vadd.f32 %v2474, %v2582
        %s2587 = sld [smem:[#allocation7 + $0x8c]]
        %v2588 = vstv %s2587
        %v2589 = vmul.f32 %v2588, %v2327
        %v2590 = vmul.f32 %v2588, %v2328
        %2593 = vrot.lane.b32.xlu0 %v2589, 126
        %v2594 = vpop.permute.xlu0 %2593
        %2595 = vrot.lane.b32.xlu0 %v2590, 126
        %v2596 = vpop.permute.xlu0 %2595
        %v2599 = vadd.f32 %v2487, %v2594
        %v2600 = vadd.f32 %v2488, %v2596
        %v2601 = vld [vmem:[%s1228 + $0x2] sm:$0xff]
        %v2602 = vld [vmem:[%s1228 + $0xa] sm:$0xff]
        %s2603 = sld [smem:[#allocation7 + $0xf]]
        %v2604 = vstv %s2603
        %v2605 = vmul.f32 %v2604, %v2601
        %v2606 = vmul.f32 %v2604, %v2602
        %v2607 = vadd.f32 %v2501, %v2605
        %v2608 = vadd.f32 %v2502, %v2606
        %s2609 = sld [smem:[#allocation7 + $0x21]]
        %v2610 = vstv %s2609
        %v2611 = vmul.f32 %v2610, %v2601
        %v2612 = vmul.f32 %v2610, %v2602
        %v2613 = vadd.f32 %v2515, %v2611
        %v2614 = vadd.f32 %v2516, %v2612
        %s2615 = sld [smem:[#allocation7 + $0x33]]
        %v2616 = vstv %s2615
        %v2617 = vmul.f32 %v2616, %v2601
        %v2618 = vmul.f32 %v2616, %v2602
        %v2619 = vadd.f32 %v2529, %v2617
        %v2620 = vadd.f32 %v2530, %v2618
        %s2621 = sld [smem:[#allocation7 + $0x45]]
        %v2622 = vstv %s2621
        %v2623 = vmul.f32 %v2622, %v2601
        %v2624 = vmul.f32 %v2622, %v2602
        %v2625 = vadd.f32 %v2543, %v2623
        %v2626 = vadd.f32 %v2544, %v2624
        %s2627 = sld [smem:[#allocation7 + $0x57]]
        %v2628 = vstv %s2627
        %v2629 = vmul.f32 %v2628, %v2601
        %v2630 = vmul.f32 %v2628, %v2602
        %v2631 = vadd.f32 %v2557, %v2629
        %v2632 = vadd.f32 %v2558, %v2630
        %s2633 = sld [smem:[#allocation7 + $0x69]]
        %v2634 = vstv %s2633
        %v2635 = vmul.f32 %v2634, %v2601
        %v2636 = vmul.f32 %v2634, %v2602
        %v2637 = vadd.f32 %v2571, %v2635
        %v2638 = vadd.f32 %v2572, %v2636
        %s2639 = sld [smem:[#allocation7 + $0x7b]]
        %v2640 = vstv %s2639
        %v2641 = vmul.f32 %v2640, %v2601
        %v2642 = vmul.f32 %v2640, %v2602
        %v2643 = vadd.f32 %v2585, %v2641
        %v2644 = vadd.f32 %v2586, %v2642
        %s2645 = sld [smem:[#allocation7 + $0x8d]]
        %v2646 = vstv %s2645
        %v2647 = vmul.f32 %v2646, %v2601
        %v2648 = vmul.f32 %v2646, %v2602
        %v2649 = vadd.f32 %v2599, %v2647
        %v2650 = vadd.f32 %v2600, %v2648
        %s2651 = sld [smem:[#allocation7 + $0x10]]
        %v2652 = vstv %s2651
        %v2653 = vmul.f32 %v2652, %v2601
        %v2654 = vmul.f32 %v2652, %v2602
        %2657 = vrot.lane.b32.xlu0 %v2653, 127
        %v2658 = vpop.permute.xlu0 %2657
        %2659 = vrot.lane.b32.xlu0 %v2654, 127
        %v2660 = vpop.permute.xlu0 %2659
        %v2663 = vadd.f32 %v2607, %v2658
        %v2664 = vadd.f32 %v2608, %v2660
        %s2665 = sld [smem:[#allocation7 + $0x22]]
        %v2666 = vstv %s2665
        %v2667 = vmul.f32 %v2666, %v2601
        %v2668 = vmul.f32 %v2666, %v2602
        %2671 = vrot.lane.b32.xlu0 %v2667, 127
        %v2672 = vpop.permute.xlu0 %2671
        %2673 = vrot.lane.b32.xlu0 %v2668, 127
        %v2674 = vpop.permute.xlu0 %2673
        %v2677 = vadd.f32 %v2613, %v2672
        %v2678 = vadd.f32 %v2614, %v2674
        %s2679 = sld [smem:[#allocation7 + $0x34]]
        %v2680 = vstv %s2679
        %v2681 = vmul.f32 %v2680, %v2601
        %v2682 = vmul.f32 %v2680, %v2602
        %2685 = vrot.lane.b32.xlu0 %v2681, 127
        %v2686 = vpop.permute.xlu0 %2685
        %2687 = vrot.lane.b32.xlu0 %v2682, 127
        %v2688 = vpop.permute.xlu0 %2687
        %v2691 = vadd.f32 %v2619, %v2686
        %v2692 = vadd.f32 %v2620, %v2688
        %s2693 = sld [smem:[#allocation7 + $0x46]]
        %v2694 = vstv %s2693
        %v2695 = vmul.f32 %v2694, %v2601
        %v2696 = vmul.f32 %v2694, %v2602
        %2699 = vrot.lane.b32.xlu0 %v2695, 127
        %v2700 = vpop.permute.xlu0 %2699
        %2701 = vrot.lane.b32.xlu0 %v2696, 127
        %v2702 = vpop.permute.xlu0 %2701
        %v2705 = vadd.f32 %v2625, %v2700
        %v2706 = vadd.f32 %v2626, %v2702
        %s2707 = sld [smem:[#allocation7 + $0x58]]
        %v2708 = vstv %s2707
        %v2709 = vmul.f32 %v2708, %v2601
        %v2710 = vmul.f32 %v2708, %v2602
        %2713 = vrot.lane.b32.xlu0 %v2709, 127
        %v2714 = vpop.permute.xlu0 %2713
        %2715 = vrot.lane.b32.xlu0 %v2710, 127
        %v2716 = vpop.permute.xlu0 %2715
        %v2719 = vadd.f32 %v2631, %v2714
        %v2720 = vadd.f32 %v2632, %v2716
        %s2721 = sld [smem:[#allocation7 + $0x6a]]
        %v2722 = vstv %s2721
        %v2723 = vmul.f32 %v2722, %v2601
        %v2724 = vmul.f32 %v2722, %v2602
        %2727 = vrot.lane.b32.xlu0 %v2723, 127
        %v2728 = vpop.permute.xlu0 %2727
        %2729 = vrot.lane.b32.xlu0 %v2724, 127
        %v2730 = vpop.permute.xlu0 %2729
        %v2733 = vadd.f32 %v2637, %v2728
        %v2734 = vadd.f32 %v2638, %v2730
        %s2735 = sld [smem:[#allocation7 + $0x7c]]
        %v2736 = vstv %s2735
        %v2737 = vmul.f32 %v2736, %v2601
        %v2738 = vmul.f32 %v2736, %v2602
        %2741 = vrot.lane.b32.xlu0 %v2737, 127
        %v2742 = vpop.permute.xlu0 %2741
        %2743 = vrot.lane.b32.xlu0 %v2738, 127
        %v2744 = vpop.permute.xlu0 %2743
        %v2747 = vadd.f32 %v2643, %v2742
        %v2748 = vadd.f32 %v2644, %v2744
        %s2749 = sld [smem:[#allocation7 + $0x8e]]
        %v2750 = vstv %s2749
        %v2751 = vmul.f32 %v2750, %v2601
        %v2752 = vmul.f32 %v2750, %v2602
        %2755 = vrot.lane.b32.xlu0 %v2751, 127
        %v2756 = vpop.permute.xlu0 %2755
        %2757 = vrot.lane.b32.xlu0 %v2752, 127
        %v2758 = vpop.permute.xlu0 %2757
        %v2761 = vadd.f32 %v2649, %v2756
        %v2762 = vadd.f32 %v2650, %v2758
        %s2763 = sld [smem:[#allocation7 + $0x11]]
        %v2764 = vstv %s2763
        %v2765 = vmul.f32 %v2764, %v2601
        %v2766 = vmul.f32 %v2764, %v2602
        %2769 = vrot.lane.b32.xlu0 %v2765, 126
        %v2770 = vpop.permute.xlu0 %2769
        %2771 = vrot.lane.b32.xlu0 %v2766, 126
        %v2772 = vpop.permute.xlu0 %2771
        %v2775 = vadd.f32 %v2663, %v2770
        %v2776 = vadd.f32 %v2664, %v2772
        %s2777 = sld [smem:[#allocation7 + $0x23]]
        %v2778 = vstv %s2777
        %v2779 = vmul.f32 %v2778, %v2601
        %v2780 = vmul.f32 %v2778, %v2602
        %2783 = vrot.lane.b32.xlu0 %v2779, 126
        %v2784 = vpop.permute.xlu0 %2783
        %2785 = vrot.lane.b32.xlu0 %v2780, 126
        %v2786 = vpop.permute.xlu0 %2785
        %v2789 = vadd.f32 %v2677, %v2784
        %v2790 = vadd.f32 %v2678, %v2786
        %s2791 = sld [smem:[#allocation7 + $0x35]]
        %v2792 = vstv %s2791
        %v2793 = vmul.f32 %v2792, %v2601
        %v2794 = vmul.f32 %v2792, %v2602
        %2797 = vrot.lane.b32.xlu0 %v2793, 126
        %v2798 = vpop.permute.xlu0 %2797
        %2799 = vrot.lane.b32.xlu0 %v2794, 126
        %v2800 = vpop.permute.xlu0 %2799
        %v2803 = vadd.f32 %v2691, %v2798
        %v2804 = vadd.f32 %v2692, %v2800
        %s2805 = sld [smem:[#allocation7 + $0x47]]
        %v2806 = vstv %s2805
        %v2807 = vmul.f32 %v2806, %v2601
        %v2808 = vmul.f32 %v2806, %v2602
        %2811 = vrot.lane.b32.xlu0 %v2807, 126
        %v2812 = vpop.permute.xlu0 %2811
        %2813 = vrot.lane.b32.xlu0 %v2808, 126
        %v2814 = vpop.permute.xlu0 %2813
        %v2817 = vadd.f32 %v2705, %v2812
        %v2818 = vadd.f32 %v2706, %v2814
        %s2819 = sld [smem:[#allocation7 + $0x59]]
        %v2820 = vstv %s2819
        %v2821 = vmul.f32 %v2820, %v2601
        %v2822 = vmul.f32 %v2820, %v2602
        %2825 = vrot.lane.b32.xlu0 %v2821, 126
        %v2826 = vpop.permute.xlu0 %2825
        %2827 = vrot.lane.b32.xlu0 %v2822, 126
        %v2828 = vpop.permute.xlu0 %2827
        %v2831 = vadd.f32 %v2719, %v2826
        %v2832 = vadd.f32 %v2720, %v2828
        %s2833 = sld [smem:[#allocation7 + $0x6b]]
        %v2834 = vstv %s2833
        %v2835 = vmul.f32 %v2834, %v2601
        %v2836 = vmul.f32 %v2834, %v2602
        %2839 = vrot.lane.b32.xlu0 %v2835, 126
        %v2840 = vpop.permute.xlu0 %2839
        %2841 = vrot.lane.b32.xlu0 %v2836, 126
        %v2842 = vpop.permute.xlu0 %2841
        %v2845 = vadd.f32 %v2733, %v2840
        %v2846 = vadd.f32 %v2734, %v2842
        %s2847 = sld [smem:[#allocation7 + $0x7d]]
        %v2848 = vstv %s2847
        %v2849 = vmul.f32 %v2848, %v2601
        %v2850 = vmul.f32 %v2848, %v2602
        %2853 = vrot.lane.b32.xlu0 %v2849, 126
        %v2854 = vpop.permute.xlu0 %2853
        %2855 = vrot.lane.b32.xlu0 %v2850, 126
        %v2856 = vpop.permute.xlu0 %2855
        %v2859 = vadd.f32 %v2747, %v2854
        %v2860 = vadd.f32 %v2748, %v2856
        %s2861 = sld [smem:[#allocation7 + $0x8f]]
        %v2862 = vstv %s2861
        %v2863 = vmul.f32 %v2862, %v2601
        %v2864 = vmul.f32 %v2862, %v2602
        %2867 = vrot.lane.b32.xlu0 %v2863, 126
        %v2868 = vpop.permute.xlu0 %2867
        %2869 = vrot.lane.b32.xlu0 %v2864, 126
        %v2870 = vpop.permute.xlu0 %2869
        %v2873 = vadd.f32 %v2761, %v2868
        %v2874 = vadd.f32 %v2762, %v2870
        %v2875 = vsel %vm1111, %v2775, 0.0
        %2876 = vadd.xlane.f32.xlu0 %v2875
        %v2877 = vpop.xlane.xlu0 %2876
        %v2878 = vsel %vm1111, %v2776, 0.0
        %2879 = vadd.xlane.f32.xlu0 %v2878
        %v2880 = vpop.xlane.xlu0 %2879
        %v2881 = vadd.f32 %v2877, %v2880
        %v2882 = vrot.slane %v2881, 4
        %v2883 = vadd.f32 %v2881, %v2882
        %v2884 = vrot.slane %v2883, 2
        %v2885 = vadd.f32 %v2883, %v2884
        %v2886 = vrot.slane %v2885, 1
        %v2887 = vadd.f32 %v2885, %v2886
        %v2888 = vmul.f32 %v2887, 0.00390625
        %v2889 = vsub.f32 %v2775, %v2888
        %v2890 = vsub.f32 %v2776, %v2888
        %v2891 = vmul.f32 %v2889, %v2889
        %v2892 = vmul.f32 %v2890, %v2890
        %v2893 = vsel %vm1111, %v2891, 0.0
        %2894 = vadd.xlane.f32.xlu0 %v2893
        %v2895 = vpop.xlane.xlu0 %2894
        %v2896 = vsel %vm1111, %v2892, 0.0
        %2897 = vadd.xlane.f32.xlu0 %v2896
        %v2898 = vpop.xlane.xlu0 %2897
        %v2899 = vadd.f32 %v2895, %v2898
        %v2900 = vrot.slane %v2899, 4
        %v2901 = vadd.f32 %v2899, %v2900
        %v2902 = vrot.slane %v2901, 2
        %v2903 = vadd.f32 %v2901, %v2902
        %v2904 = vrot.slane %v2903, 1
        %v2905 = vadd.f32 %v2903, %v2904
        %v2906 = vmul.f32 %v2905, 0.00390625
        %v2907 = vadd.f32 %v2906, 1e-05
        %v2908 = vrsqrt.pop %v2907
        %v2909 = vmul.f32 %v2908, %v2907
        %v2910 = vmul.f32 %v2909, %v2908
        %v2911 = vmul.f32 0.5, %v2910
        %v2912 = vsub.f32 1.5, %v2911
        %v2913 = vmul.f32 %v2908, %v2912
        %vm2914 = vweird.f32 %v2907
        %vm2915 = vweird.f32 %v2908
        %vm2916 = vmor %vm2914, %vm2915
        %v2917 = vsel %vm2916, %v2908, %v2913
        %v2918 = vmul.f32 %v2889, %v2917
        %v2919 = vmul.f32 %v2890, %v2917
        %v2920 = vmul.f32 %v2918, 0.2
        %v2921 = vmul.f32 %v2919, 0.2
        %v2922 = vmax.f32 %v2918, %v2920
        %v2923 = vmax.f32 %v2919, %v2921
        %v2924 = vsel %vm1111, %v2789, 0.0
        %2925 = vadd.xlane.f32.xlu0 %v2924
        %v2926 = vpop.xlane.xlu0 %2925
        %v2927 = vsel %vm1111, %v2790, 0.0
        %2928 = vadd.xlane.f32.xlu0 %v2927
        %v2929 = vpop.xlane.xlu0 %2928
        %v2930 = vadd.f32 %v2926, %v2929
        %v2931 = vrot.slane %v2930, 4
        %v2932 = vadd.f32 %v2930, %v2931
        %v2933 = vrot.slane %v2932, 2
        %v2934 = vadd.f32 %v2932, %v2933
        %v2935 = vrot.slane %v2934, 1
        %v2936 = vadd.f32 %v2934, %v2935
        %v2937 = vmul.f32 %v2936, 0.00390625
        %v2938 = vsub.f32 %v2789, %v2937
        %v2939 = vsub.f32 %v2790, %v2937
        %v2940 = vmul.f32 %v2938, %v2938
        %v2941 = vmul.f32 %v2939, %v2939
        %v2942 = vsel %vm1111, %v2940, 0.0
        %2943 = vadd.xlane.f32.xlu0 %v2942
        %v2944 = vpop.xlane.xlu0 %2943
        %v2945 = vsel %vm1111, %v2941, 0.0
        %2946 = vadd.xlane.f32.xlu0 %v2945
        %v2947 = vpop.xlane.xlu0 %2946
        %v2948 = vadd.f32 %v2944, %v2947
        %v2949 = vrot.slane %v2948, 4
        %v2950 = vadd.f32 %v2948, %v2949
        %v2951 = vrot.slane %v2950, 2
        %v2952 = vadd.f32 %v2950, %v2951
        %v2953 = vrot.slane %v2952, 1
        %v2954 = vadd.f32 %v2952, %v2953
        %v2955 = vmul.f32 %v2954, 0.00390625
        %v2956 = vadd.f32 %v2955, 1e-05
        %v2957 = vrsqrt.pop %v2956
        %v2958 = vmul.f32 %v2957, %v2956
        %v2959 = vmul.f32 %v2958, %v2957
        %v2960 = vmul.f32 0.5, %v2959
        %v2961 = vsub.f32 1.5, %v2960
        %v2962 = vmul.f32 %v2957, %v2961
        %vm2963 = vweird.f32 %v2956
        %vm2964 = vweird.f32 %v2957
        %vm2965 = vmor %vm2963, %vm2964
        %v2966 = vsel %vm2965, %v2957, %v2962
        %v2967 = vmul.f32 %v2938, %v2966
        %v2968 = vmul.f32 %v2939, %v2966
        %v2969 = vmul.f32 %v2967, 0.2
        %v2970 = vmul.f32 %v2968, 0.2
        %v2971 = vmax.f32 %v2967, %v2969
        %v2972 = vmax.f32 %v2968, %v2970
        %v2973 = vsel %vm1111, %v2803, 0.0
        %2974 = vadd.xlane.f32.xlu0 %v2973
        %v2975 = vpop.xlane.xlu0 %2974
        %v2976 = vsel %vm1111, %v2804, 0.0
        %2977 = vadd.xlane.f32.xlu0 %v2976
        %v2978 = vpop.xlane.xlu0 %2977
        %v2979 = vadd.f32 %v2975, %v2978
        %v2980 = vrot.slane %v2979, 4
        %v2981 = vadd.f32 %v2979, %v2980
        %v2982 = vrot.slane %v2981, 2
        %v2983 = vadd.f32 %v2981, %v2982
        %v2984 = vrot.slane %v2983, 1
        %v2985 = vadd.f32 %v2983, %v2984
        %v2986 = vmul.f32 %v2985, 0.00390625
        %v2987 = vsub.f32 %v2803, %v2986
        %v2988 = vsub.f32 %v2804, %v2986
        %v2989 = vmul.f32 %v2987, %v2987
        %v2990 = vmul.f32 %v2988, %v2988
        %v2991 = vsel %vm1111, %v2989, 0.0
        %2992 = vadd.xlane.f32.xlu0 %v2991
        %v2993 = vpop.xlane.xlu0 %2992
        %v2994 = vsel %vm1111, %v2990, 0.0
        %2995 = vadd.xlane.f32.xlu0 %v2994
        %v2996 = vpop.xlane.xlu0 %2995
        %v2997 = vadd.f32 %v2993, %v2996
        %v2998 = vrot.slane %v2997, 4
        %v2999 = vadd.f32 %v2997, %v2998
        %v3000 = vrot.slane %v2999, 2
        %v3001 = vadd.f32 %v2999, %v3000
        %v3002 = vrot.slane %v3001, 1
        %v3003 = vadd.f32 %v3001, %v3002
        %v3004 = vmul.f32 %v3003, 0.00390625
        %v3005 = vadd.f32 %v3004, 1e-05
        %v3006 = vrsqrt.pop %v3005
        %v3007 = vmul.f32 %v3006, %v3005
        %v3008 = vmul.f32 %v3007, %v3006
        %v3009 = vmul.f32 0.5, %v3008
        %v3010 = vsub.f32 1.5, %v3009
        %v3011 = vmul.f32 %v3006, %v3010
        %vm3012 = vweird.f32 %v3005
        %vm3013 = vweird.f32 %v3006
        %vm3014 = vmor %vm3012, %vm3013
        %v3015 = vsel %vm3014, %v3006, %v3011
        %v3016 = vmul.f32 %v2987, %v3015
        %v3017 = vmul.f32 %v2988, %v3015
        %v3018 = vmul.f32 %v3016, 0.2
        %v3019 = vmul.f32 %v3017, 0.2
        %v3020 = vmax.f32 %v3016, %v3018
        %v3021 = vmax.f32 %v3017, %v3019
        %v3022 = vsel %vm1111, %v2817, 0.0
        %3023 = vadd.xlane.f32.xlu0 %v3022
        %v3024 = vpop.xlane.xlu0 %3023
        %v3025 = vsel %vm1111, %v2818, 0.0
        %3026 = vadd.xlane.f32.xlu0 %v3025
        %v3027 = vpop.xlane.xlu0 %3026
        %v3028 = vadd.f32 %v3024, %v3027
        %v3029 = vrot.slane %v3028, 4
        %v3030 = vadd.f32 %v3028, %v3029
        %v3031 = vrot.slane %v3030, 2
        %v3032 = vadd.f32 %v3030, %v3031
        %v3033 = vrot.slane %v3032, 1
        %v3034 = vadd.f32 %v3032, %v3033
        %v3035 = vmul.f32 %v3034, 0.00390625
        %v3036 = vsub.f32 %v2817, %v3035
        %v3037 = vsub.f32 %v2818, %v3035
        %v3038 = vmul.f32 %v3036, %v3036
        %v3039 = vmul.f32 %v3037, %v3037
        %v3040 = vsel %vm1111, %v3038, 0.0
        %3041 = vadd.xlane.f32.xlu0 %v3040
        %v3042 = vpop.xlane.xlu0 %3041
        %v3043 = vsel %vm1111, %v3039, 0.0
        %3044 = vadd.xlane.f32.xlu0 %v3043
        %v3045 = vpop.xlane.xlu0 %3044
        %v3046 = vadd.f32 %v3042, %v3045
        %v3047 = vrot.slane %v3046, 4
        %v3048 = vadd.f32 %v3046, %v3047
        %v3049 = vrot.slane %v3048, 2
        %v3050 = vadd.f32 %v3048, %v3049
        %v3051 = vrot.slane %v3050, 1
        %v3052 = vadd.f32 %v3050, %v3051
        %v3053 = vmul.f32 %v3052, 0.00390625
        %v3054 = vadd.f32 %v3053, 1e-05
        %v3055 = vrsqrt.pop %v3054
        %v3056 = vmul.f32 %v3055, %v3054
        %v3057 = vmul.f32 %v3056, %v3055
        %v3058 = vmul.f32 0.5, %v3057
        %v3059 = vsub.f32 1.5, %v3058
        %v3060 = vmul.f32 %v3055, %v3059
        %vm3061 = vweird.f32 %v3054
        %vm3062 = vweird.f32 %v3055
        %vm3063 = vmor %vm3061, %vm3062
        %v3064 = vsel %vm3063, %v3055, %v3060
        %v3065 = vmul.f32 %v3036, %v3064
        %v3066 = vmul.f32 %v3037, %v3064
        %v3067 = vmul.f32 %v3065, 0.2
        %v3068 = vmul.f32 %v3066, 0.2
        %v3069 = vmax.f32 %v3065, %v3067
        %v3070 = vmax.f32 %v3066, %v3068
        %v3071 = vsel %vm1111, %v2831, 0.0
        %3072 = vadd.xlane.f32.xlu0 %v3071
        %v3073 = vpop.xlane.xlu0 %3072
        %v3074 = vsel %vm1111, %v2832, 0.0
        %3075 = vadd.xlane.f32.xlu0 %v3074
        %v3076 = vpop.xlane.xlu0 %3075
        %v3077 = vadd.f32 %v3073, %v3076
        %v3078 = vrot.slane %v3077, 4
        %v3079 = vadd.f32 %v3077, %v3078
        %v3080 = vrot.slane %v3079, 2
        %v3081 = vadd.f32 %v3079, %v3080
        %v3082 = vrot.slane %v3081, 1
        %v3083 = vadd.f32 %v3081, %v3082
        %v3084 = vmul.f32 %v3083, 0.00390625
        %v3085 = vsub.f32 %v2831, %v3084
        %v3086 = vsub.f32 %v2832, %v3084
        %v3087 = vmul.f32 %v3085, %v3085
        %v3088 = vmul.f32 %v3086, %v3086
        %v3089 = vsel %vm1111, %v3087, 0.0
        %3090 = vadd.xlane.f32.xlu0 %v3089
        %v3091 = vpop.xlane.xlu0 %3090
        %v3092 = vsel %vm1111, %v3088, 0.0
        %3093 = vadd.xlane.f32.xlu0 %v3092
        %v3094 = vpop.xlane.xlu0 %3093
        %v3095 = vadd.f32 %v3091, %v3094
        %v3096 = vrot.slane %v3095, 4
        %v3097 = vadd.f32 %v3095, %v3096
        %v3098 = vrot.slane %v3097, 2
        %v3099 = vadd.f32 %v3097, %v3098
        %v3100 = vrot.slane %v3099, 1
        %v3101 = vadd.f32 %v3099, %v3100
        %v3102 = vmul.f32 %v3101, 0.00390625
        %v3103 = vadd.f32 %v3102, 1e-05
        %v3104 = vrsqrt.pop %v3103
        %v3105 = vmul.f32 %v3104, %v3103
        %v3106 = vmul.f32 %v3105, %v3104
        %v3107 = vmul.f32 0.5, %v3106
        %v3108 = vsub.f32 1.5, %v3107
        %v3109 = vmul.f32 %v3104, %v3108
        %vm3110 = vweird.f32 %v3103
        %vm3111 = vweird.f32 %v3104
        %vm3112 = vmor %vm3110, %vm3111
        %v3113 = vsel %vm3112, %v3104, %v3109
        %v3114 = vmul.f32 %v3085, %v3113
        %v3115 = vmul.f32 %v3086, %v3113
        %v3116 = vmul.f32 %v3114, 0.2
        %v3117 = vmul.f32 %v3115, 0.2
        %v3118 = vmax.f32 %v3114, %v3116
        %v3119 = vmax.f32 %v3115, %v3117
        %v3120 = vsel %vm1111, %v2845, 0.0
        %3121 = vadd.xlane.f32.xlu0 %v3120
        %v3122 = vpop.xlane.xlu0 %3121
        %v3123 = vsel %vm1111, %v2846, 0.0
        %3124 = vadd.xlane.f32.xlu0 %v3123
        %v3125 = vpop.xlane.xlu0 %3124
        %v3126 = vadd.f32 %v3122, %v3125
        %v3127 = vrot.slane %v3126, 4
        %v3128 = vadd.f32 %v3126, %v3127
        %v3129 = vrot.slane %v3128, 2
        %v3130 = vadd.f32 %v3128, %v3129
        %v3131 = vrot.slane %v3130, 1
        %v3132 = vadd.f32 %v3130, %v3131
        %v3133 = vmul.f32 %v3132, 0.00390625
        %v3134 = vsub.f32 %v2845, %v3133
        %v3135 = vsub.f32 %v2846, %v3133
        %v3136 = vmul.f32 %v3134, %v3134
        %v3137 = vmul.f32 %v3135, %v3135
        %v3138 = vsel %vm1111, %v3136, 0.0
        %3139 = vadd.xlane.f32.xlu0 %v3138
        %v3140 = vpop.xlane.xlu0 %3139
        %v3141 = vsel %vm1111, %v3137, 0.0
        %3142 = vadd.xlane.f32.xlu0 %v3141
        %v3143 = vpop.xlane.xlu0 %3142
        %v3144 = vadd.f32 %v3140, %v3143
        %v3145 = vrot.slane %v3144, 4
        %v3146 = vadd.f32 %v3144, %v3145
        %v3147 = vrot.slane %v3146, 2
        %v3148 = vadd.f32 %v3146, %v3147
        %v3149 = vrot.slane %v3148, 1
        %v3150 = vadd.f32 %v3148, %v3149
        %v3151 = vmul.f32 %v3150, 0.00390625
        %v3152 = vadd.f32 %v3151, 1e-05
        %v3153 = vrsqrt.pop %v3152
        %v3154 = vmul.f32 %v3153, %v3152
        %v3155 = vmul.f32 %v3154, %v3153
        %v3156 = vmul.f32 0.5, %v3155
        %v3157 = vsub.f32 1.5, %v3156
        %v3158 = vmul.f32 %v3153, %v3157
        %vm3159 = vweird.f32 %v3152
        %vm3160 = vweird.f32 %v3153
        %vm3161 = vmor %vm3159, %vm3160
        %v3162 = vsel %vm3161, %v3153, %v3158
        %v3163 = vmul.f32 %v3134, %v3162
        %v3164 = vmul.f32 %v3135, %v3162
        %v3165 = vmul.f32 %v3163, 0.2
        %v3166 = vmul.f32 %v3164, 0.2
        %v3167 = vmax.f32 %v3163, %v3165
        %v3168 = vmax.f32 %v3164, %v3166
        %v3169 = vsel %vm1111, %v2859, 0.0
        %3170 = vadd.xlane.f32.xlu0 %v3169
        %v3171 = vpop.xlane.xlu0 %3170
        %v3172 = vsel %vm1111, %v2860, 0.0
        %3173 = vadd.xlane.f32.xlu0 %v3172
        %v3174 = vpop.xlane.xlu0 %3173
        %v3175 = vadd.f32 %v3171, %v3174
        %v3176 = vrot.slane %v3175, 4
        %v3177 = vadd.f32 %v3175, %v3176
        %v3178 = vrot.slane %v3177, 2
        %v3179 = vadd.f32 %v3177, %v3178
        %v3180 = vrot.slane %v3179, 1
        %v3181 = vadd.f32 %v3179, %v3180
        %v3182 = vmul.f32 %v3181, 0.00390625
        %v3183 = vsub.f32 %v2859, %v3182
        %v3184 = vsub.f32 %v2860, %v3182
        %v3185 = vmul.f32 %v3183, %v3183
        %v3186 = vmul.f32 %v3184, %v3184
        %v3187 = vsel %vm1111, %v3185, 0.0
        %3188 = vadd.xlane.f32.xlu0 %v3187
        %v3189 = vpop.xlane.xlu0 %3188
        %v3190 = vsel %vm1111, %v3186, 0.0
        %3191 = vadd.xlane.f32.xlu0 %v3190
        %v3192 = vpop.xlane.xlu0 %3191
        %v3193 = vadd.f32 %v3189, %v3192
        %v3194 = vrot.slane %v3193, 4
        %v3195 = vadd.f32 %v3193, %v3194
        %v3196 = vrot.slane %v3195, 2
        %v3197 = vadd.f32 %v3195, %v3196
        %v3198 = vrot.slane %v3197, 1
        %v3199 = vadd.f32 %v3197, %v3198
        %v3200 = vmul.f32 %v3199, 0.00390625
        %v3201 = vadd.f32 %v3200, 1e-05
        %v3202 = vrsqrt.pop %v3201
        %v3203 = vmul.f32 %v3202, %v3201
        %v3204 = vmul.f32 %v3203, %v3202
        %v3205 = vmul.f32 0.5, %v3204
        %v3206 = vsub.f32 1.5, %v3205
        %v3207 = vmul.f32 %v3202, %v3206
        %vm3208 = vweird.f32 %v3201
        %vm3209 = vweird.f32 %v3202
        %vm3210 = vmor %vm3208, %vm3209
        %v3211 = vsel %vm3210, %v3202, %v3207
        %v3212 = vmul.f32 %v3183, %v3211
        %v3213 = vmul.f32 %v3184, %v3211
        %v3214 = vmul.f32 %v3212, 0.2
        %v3215 = vmul.f32 %v3213, 0.2
        %v3216 = vmax.f32 %v3212, %v3214
        %v3217 = vmax.f32 %v3213, %v3215
        %v3218 = vsel %vm1111, %v2873, 0.0
        %3219 = vadd.xlane.f32.xlu0 %v3218
        %v3220 = vpop.xlane.xlu0 %3219
        %v3221 = vsel %vm1111, %v2874, 0.0
        %3222 = vadd.xlane.f32.xlu0 %v3221
        %v3223 = vpop.xlane.xlu0 %3222
        %v3224 = vadd.f32 %v3220, %v3223
        %v3225 = vrot.slane %v3224, 4
        %v3226 = vadd.f32 %v3224, %v3225
        %v3227 = vrot.slane %v3226, 2
        %v3228 = vadd.f32 %v3226, %v3227
        %v3229 = vrot.slane %v3228, 1
        %v3230 = vadd.f32 %v3228, %v3229
        %v3231 = vmul.f32 %v3230, 0.00390625
        %v3232 = vsub.f32 %v2873, %v3231
        %v3233 = vsub.f32 %v2874, %v3231
        %v3234 = vmul.f32 %v3232, %v3232
        %v3235 = vmul.f32 %v3233, %v3233
        %v3236 = vsel %vm1111, %v3234, 0.0
        %3237 = vadd.xlane.f32.xlu0 %v3236
        %v3238 = vpop.xlane.xlu0 %3237
        %v3239 = vsel %vm1111, %v3235, 0.0
        %3240 = vadd.xlane.f32.xlu0 %v3239
        %v3241 = vpop.xlane.xlu0 %3240
        %v3242 = vadd.f32 %v3238, %v3241
        %v3243 = vrot.slane %v3242, 4
        %v3244 = vadd.f32 %v3242, %v3243
        %v3245 = vrot.slane %v3244, 2
        %v3246 = vadd.f32 %v3244, %v3245
        %v3247 = vrot.slane %v3246, 1
        %v3248 = vadd.f32 %v3246, %v3247
        %v3249 = vmul.f32 %v3248, 0.00390625
        %v3250 = vadd.f32 %v3249, 1e-05
        %v3251 = vrsqrt.pop %v3250
        %v3252 = vmul.f32 %v3251, %v3250
        %v3253 = vmul.f32 %v3252, %v3251
        %v3254 = vmul.f32 0.5, %v3253
        %v3255 = vsub.f32 1.5, %v3254
        %v3256 = vmul.f32 %v3251, %v3255
        %vm3257 = vweird.f32 %v3250
        %vm3258 = vweird.f32 %v3251
        %vm3259 = vmor %vm3257, %vm3258
        %v3260 = vsel %vm3259, %v3251, %v3256
        %v3261 = vmul.f32 %v3232, %v3260
        %v3262 = vmul.f32 %v3233, %v3260
        %v3263 = vmul.f32 %v3261, 0.2
        %v3264 = vmul.f32 %v3262, 0.2
        %v3265 = vmax.f32 %v3261, %v3263
        %v3266 = vmax.f32 %v3262, %v3264
        %3267 = vst.msk [vmem:[%s190] sm:$0xff] %vm1111, %v2922
        %3268 = vst.msk [vmem:[%s190 + $0x8] sm:$0xff] %vm1111, %v2923
        %s3269 = scalar_lea.vmem %s190, 16 [#allocation9]
        %3270 = vst.msk [vmem:[%s3269] sm:$0xff] %vm1111, %v2971
        %3271 = vst.msk [vmem:[%s3269 + $0x8] sm:$0xff] %vm1111, %v2972
        %s3272 = scalar_lea.vmem %s190, 32 [#allocation9]
        %3273 = vst.msk [vmem:[%s3272] sm:$0xff] %vm1111, %v3020
        %3274 = vst.msk [vmem:[%s3272 + $0x8] sm:$0xff] %vm1111, %v3021
        %s3275 = scalar_lea.vmem %s190, 48 [#allocation9]
        %3276 = vst.msk [vmem:[%s3275] sm:$0xff] %vm1111, %v3069
        %3277 = vst.msk [vmem:[%s3275 + $0x8] sm:$0xff] %vm1111, %v3070
        %s3278 = scalar_lea.vmem %s190, 64 [#allocation9]
        %3279 = vst.msk [vmem:[%s3278] sm:$0xff] %vm1111, %v3118
        %3280 = vst.msk [vmem:[%s3278 + $0x8] sm:$0xff] %vm1111, %v3119
        %s3281 = scalar_lea.vmem %s190, 80 [#allocation9]
        %3282 = vst.msk [vmem:[%s3281] sm:$0xff] %vm1111, %v3167
        %3283 = vst.msk [vmem:[%s3281 + $0x8] sm:$0xff] %vm1111, %v3168
        %s3284 = scalar_lea.vmem %s190, 96 [#allocation9]
        %3285 = vst.msk [vmem:[%s3284] sm:$0xff] %vm1111, %v3216
        %3286 = vst.msk [vmem:[%s3284 + $0x8] sm:$0xff] %vm1111, %v3217
        %s3287 = scalar_lea.vmem %s190, 112 [#allocation9]
        %3288 = vst.msk [vmem:[%s3287] sm:$0xff] %vm1111, %v3265
        %3289 = vst.msk [vmem:[%s3287 + $0x8] sm:$0xff] %vm1111, %v3266
        %s3290 = sand.u32 %s95, 1
        %s3291 = scalar_lea.sflag [#allocation5], %s3290
        %s3292 = sand.u32 %s95, 1
        %s3293 = smul.addr %s3292, 128
        %s3294 = scalar_lea.vmem [#allocation9], %s3293
        // Predicated region
        $region41: #{conv_block_bbd.1} parent=31 // pred_check
          %p3295 = pneg %p105
        $region42: #{conv_block_bbd.1} parent=31 // pred_check_branch
          %3297 = sbr.rel (%p3295) target = $region44
        $region43: #{conv_block_bbd.1} parent=31 // pred_region
          %3299 = vsyncadd %s3291, 0
          %s3300 = smul.addr %s19, 16
          %s3301 = smul.addr %s3300, 8
          %s3302 = scalar_lea.hbm %s3, %s3301
          %s3303 = sshll.u32 %s3294, 4
          %s3304 = int_to_ptr.vmem [resolvable:$true] %s3303
          %s3305 = sshll.u32 %s3302, 4
          %s3306 = int_to_ptr.hbm [resolvable:$true] %s3305
          %3311 = dma.vmem_to_hbm [thread:$0]  %s3304, 2048, %s3306, %s3291, 128, 128, 8
        $region44: #{conv_block_bbd.1} parent=31 // pred_fallthru
          _
      $region32: #{conv_block_bbd.1} parent=5 // pred_fallthru
        _
      %p3312 = scmp.le.s32.totalorder 2, %s14
      // Predicated region
      $region45: #{conv_block_bbd.1} parent=5 // pred_check
        %p3313 = pneg %p3312
      $region46: #{conv_block_bbd.1} parent=5 // pred_check_branch
        %3315 = sbr.rel (%p3313) target = $region48
      $region47: #{conv_block_bbd.1} parent=5 // pred_region
        %s3316 = ssub.s32 %s14, 2
        // Predicated region
        $region49: #{conv_block_bbd.1} parent=47 // pred_check
          %p3317 = pneg %p111
        $region50: #{conv_block_bbd.1} parent=47 // pred_check_branch
          %3319 = sbr.rel (%p3317) target = $region52
        $region51: #{conv_block_bbd.1} parent=47 // pred_region
          %s3320 = sand.u32 %s96, 1
          %s3321 = scalar_lea.sflag [#allocation5], %s3320
          %s3322 = sand.u32 %s96, 1
          %s3323 = smul.addr %s3322, 128
          %s3324 = scalar_lea.vmem [#allocation9], %s3323
          %3326 = dma.done %s3321, 2048
        $region52: #{conv_block_bbd.1} parent=47 // pred_fallthru
          _
      $region48: #{conv_block_bbd.1} parent=5 // pred_fallthru
        _
    $region6: #{conv_block_bbd.1} parent=1 // loop_footer
      %s18 = sadd.s32 1, %s14
    $region7: #{conv_block_bbd.1} parent=1 // loop_footer_branch
      %13 = sbr.rel target = $region3
    $region8: #{conv_block_bbd.1} parent=1 // loop_exit
      _
    %3327 = vsyncpa [#allocation5], 1
    %s3328 = scalar_lea.sflag [#allocation5], 1
    %3329 = vsyncpa %s3328, 1
    %3330 = vsyncpa [#allocation6], 1
    %s3331 = scalar_lea.sflag [#allocation6], 1
    %3332 = vsyncpa %s3331, 1
    %3333 = vsyncpa [#allocation8], 1

</llo_original>
